<compile_context>
chip_gen: v7x
topology: tpu7x:2x2x1
jax: 0.10.0
libtpu: 0.0.40
codegen_flags: <defaults>
</compile_context>

<pallas_src>
import functools

import jax
import jax.numpy as jnp
import numpy as np
from jax.experimental import pallas as pl
from jax.experimental.pallas import tpu as pltpu

C1 = 128   # res1a / res1b channel width
C2 = 256   # res1c / res2a / output channel width


def _resblock_kernel(x_ref, w12_ref, w1b_ref, w1c_ref, o_ref,
                     pad_ref, im2col_ref, *, H, W):
    # x_ref:      (1, H*W, Cin) f32        current batch image (flattened)
    # w12_ref:    (Cin, 384)    bf16       [res1a | res2a] 1x1 weights
    # w1b_ref:    (1152, 128)   bf16       res1b 3x3 weights, rows = (ky*3+kx)*128 + cin
    # w1c_ref:    (128, 256)    bf16       res1c 1x1 weights
    # o_ref:      (1, H*W, 256) f32        output block
    # pad_ref:    (H+2, W+2, 128) bf16     zero-padded res1a activation (scratch)
    # im2col_ref: (H*W, 1152)  bf16        im2col buffer for the 3x3 conv (scratch)
    HW = H * W

    # ---- res1a + res2a fused: one (HW, Cin) x (Cin, 384) matmul + ReLU ------
    x = x_ref[0].astype(jnp.bfloat16)                         # (HW, Cin)
    a12 = jnp.dot(x, w12_ref[...], preferred_element_type=jnp.float32)
    a12 = jnp.maximum(a12, 0.0)                               # (HW, 384) f32

    # res2a goes straight into the output VMEM block (residual accumulator).
    o_ref[0] = a12[:, C1:]

    # ---- res1b: zero-pad the res1a activation (padding=1 semantics) ---------
    # Only the 1-element border needs zeroing; the interior is fully
    # overwritten below.  Done every grid step so the kernel is correct even
    # when the 'parallel' batch axis is sharded across TensorCores (each core
    # has its own private scratch).
    zrow = jnp.zeros((1, W + 2, C1), jnp.bfloat16)
    pad_ref[0:1, :, :] = zrow
    pad_ref[H + 1:H + 2, :, :] = zrow
    zcol = jnp.zeros((H + 2, 1, C1), jnp.bfloat16)
    pad_ref[:, 0:1, :] = zcol
    pad_ref[:, W + 1:W + 2, :] = zcol

    pad_ref[1:H + 1, 1:W + 1, :] = (
        a12[:, :C1].astype(jnp.bfloat16).reshape(H, W, C1))

    # ---- im2col (HW, 9*128): one strided W-shift read per kx (3 reads), -----
    # ---- the 3 ky slices per kx come from the already-loaded column.    -----
    for kx in range(3):
        col = pad_ref[:, kx:kx + W, :]                        # (H+2, W, 128)
        for ky in range(3):
            k = ky * 3 + kx
            im2col_ref[:, k * C1:(k + 1) * C1] = (
                col[ky:ky + H].reshape(HW, C1))

    # ---- res1b as one K=1152 MXU matmul + ReLU -------------------------------
    b1 = jnp.dot(im2col_ref[...], w1b_ref[...],
                 preferred_element_type=jnp.float32)          # (HW, 128)
    b1 = jnp.maximum(b1, 0.0)

    # ---- res1c + ReLU, residual add into the output block -------------------
    c1 = jnp.dot(b1.astype(jnp.bfloat16), w1c_ref[...],
                 preferred_element_type=jnp.float32)          # (HW, 256)
    c1 = jnp.maximum(c1, 0.0)
    o_ref[0] = o_ref[0] + c1


def resblock_pallas(x, w12, w1b, w1c):
    """x: (N, H, W, Cin) f32.  Weights pre-packed in bf16 matmul form."""
    N, H, W, CIN = x.shape
    HW = H * W
    x_flat = x.reshape(N, HW, CIN)     # layout plumbing in the wrapper
    kernel = functools.partial(_resblock_kernel, H=H, W=W)
    out = pl.pallas_call(
        kernel,
        out_shape=jax.ShapeDtypeStruct((N, HW, C2), jnp.float32),
        grid=(N,),
        in_specs=[
            pl.BlockSpec((1, HW, CIN), lambda n: (n, 0, 0)),
            pl.BlockSpec((CIN, C1 + C2), lambda n: (0, 0)),
            pl.BlockSpec((9 * C1, C1), lambda n: (0, 0)),
            pl.BlockSpec((C1, C2), lambda n: (0, 0)),
        ],
        out_specs=pl.BlockSpec((1, HW, C2), lambda n: (n, 0, 0)),
        scratch_shapes=[
            pltpu.VMEM((H + 2, W + 2, C1), jnp.bfloat16),   # padded res1a act
            pltpu.VMEM((HW, 9 * C1), jnp.bfloat16),         # im2col buffer
        ],
        compiler_params=pltpu.CompilerParams(
            dimension_semantics=("parallel",)),             # batch -> both TCs on v7x
    )(x_flat, w12, w1b, w1c)
    return out.reshape(N, H, W, C2)


# ----------------------------- f32 reference ---------------------------------
def _conv_relu_ref(x, w_hwio, padding):
    y = jax.lax.conv_general_dilated(
        x, w_hwio, window_strides=(1, 1), padding=padding,
        dimension_numbers=("NHWC", "HWIO", "NHWC"))
    return jnp.maximum(y, 0.0)


def resblock_ref(x, w1a_hwio, w1b_hwio, w1c_hwio, w2a_hwio):
    out1 = _conv_relu_ref(x, w1a_hwio, "VALID")
    out1 = _conv_relu_ref(out1, w1b_hwio, [(1, 1), (1, 1)])
    out1 = _conv_relu_ref(out1, w1c_hwio, "VALID")
    out2 = _conv_relu_ref(x, w2a_hwio, "VALID")
    return out1 + out2


if __name__ == "__main__":
    N, H, W, CIN = 2, 16, 16, 4

    key = jax.random.PRNGKey(0)
    kx_, k1a, k1b, k1c, k2a = jax.random.split(key, 5)

    # Deterministic synthetic parameters (bias-free convs), HWIO layout, f32.
    x = jax.random.normal(kx_, (N, H, W, CIN), jnp.float32)
    w1a_hwio = jax.random.normal(k1a, (1, 1, CIN, C1), jnp.float32) * 0.2
    w1b_hwio = jax.random.normal(k1b, (3, 3, C1, C1), jnp.float32) * 0.05
    w1c_hwio = jax.random.normal(k1c, (1, 1, C1, C2), jnp.float32) * 0.05
    w2a_hwio = jax.random.normal(k2a, (1, 1, CIN, C2), jnp.float32) * 0.2

    # Matmul-form bf16 weights for the kernel (f32 accumulation inside).
    w12 = jnp.concatenate(
        [w1a_hwio.reshape(CIN, C1), w2a_hwio.reshape(CIN, C2)],
        axis=1).astype(jnp.bfloat16)                       # (Cin, 384)
    w1b = w1b_hwio.reshape(9 * C1, C1).astype(jnp.bfloat16)   # rows: (ky*3+kx)*128 + cin
    w1c = w1c_hwio.reshape(C1, C2).astype(jnp.bfloat16)

    out = jax.block_until_ready(resblock_pallas(x, w12, w1b, w1c))
    ref = jax.block_until_ready(
        resblock_ref(x, w1a_hwio, w1b_hwio, w1c_hwio, w2a_hwio))

    np.testing.assert_allclose(np.asarray(out), np.asarray(ref),
                               rtol=1e-2, atol=1e-2)
    print("KERNEL_OK")
</pallas_src>

<mosaic_0001>
module attributes {stable_mosaic.version = 11 : i64} {
  func.func @_resblock_kernel(%arg0: i32, %arg1: memref<1x256x4xf32, #tpu.memory_space<vmem>>, %arg2: memref<4x384xbf16, #tpu.memory_space<vmem>>, %arg3: memref<1152x128xbf16, #tpu.memory_space<vmem>>, %arg4: memref<128x256xbf16, #tpu.memory_space<vmem>>, %arg5: memref<1x256x256xf32, #tpu.memory_space<vmem>>, %arg6: memref<18x18x128xbf16, #tpu.memory_space<vmem>>, %arg7: memref<256x1152xbf16, #tpu.memory_space<vmem>>) attributes {dimension_semantics = [#tpu.dimension_semantics<parallel>], iteration_bounds = array<i64: 2>, scalar_prefetch = 0 : i64, scratch_operands = 2 : i64, tpu.core_type = #tpu.core_type<tc>, window_params = [{transform_indices = @transform_0, window_bounds = array<i64: 1, 256, 4>}, {pipeline_mode = #tpu.pipeline_mode<synchronous>, transform_indices = @transform_1, window_bounds = array<i64: 4, 384>}, {pipeline_mode = #tpu.pipeline_mode<synchronous>, transform_indices = @transform_2, window_bounds = array<i64: 1152, 128>}, {pipeline_mode = #tpu.pipeline_mode<synchronous>, transform_indices = @transform_3, window_bounds = array<i64: 128, 256>}, {transform_indices = @transform_4, window_bounds = array<i64: 1, 256, 256>}]} {
    %c0 = arith.constant 0 : index
    %c0_0 = arith.constant 0 : index
    %c0_1 = arith.constant 0 : index
    %0 = vector.load %arg1[%c0, %c0_0, %c0_1] : memref<1x256x4xf32, #tpu.memory_space<vmem>>, vector<1x256x4xf32>
    %1 = vector.shape_cast %0 : vector<1x256x4xf32> to vector<256x4xf32>
    %2 = arith.truncf %1 : vector<256x4xf32> to vector<256x4xbf16>
    %c0_2 = arith.constant 0 : index
    %c0_3 = arith.constant 0 : index
    %3 = vector.load %arg2[%c0_2, %c0_3] : memref<4x384xbf16, #tpu.memory_space<vmem>>, vector<4x384xbf16>
    %cst = arith.constant dense<0.000000e+00> : vector<256x384xf32>
    %4 = tpu.matmul %2, %3, %cst {dimension_numbers = #tpu.dot_dimension_numbers<[1], [0], [0], [1], [0, 0, 1, 1], [], []>} : vector<256x4xbf16>, vector<4x384xbf16>, vector<256x384xf32> -> vector<256x384xf32>
    %cst_4 = arith.constant 0.000000e+00 : f32
    %5 = vector.broadcast %cst_4 : f32 to vector<256x384xf32>
    %6 = arith.maximumf %4, %5 : vector<256x384xf32>
    %7 = vector.extract_strided_slice %6 {offsets = [0, 128], sizes = [256, 256], strides = [1, 1]} : vector<256x384xf32> to vector<256x256xf32>
    %c0_5 = arith.constant 0 : index
    %c0_6 = arith.constant 0 : index
    %c0_7 = arith.constant 0 : index
    %8 = vector.load %arg5[%c0_5, %c0_6, %c0_7] : memref<1x256x256xf32, #tpu.memory_space<vmem>>, vector<1x256x256xf32>
    %9 = vector.shape_cast %8 : vector<1x256x256xf32> to vector<256x256xf32>
    %10 = vector.shape_cast %7 : vector<256x256xf32> to vector<1x256x256xf32>
    tpu.vector_store %arg5[%c0_5, %c0_6, %c0_7], %10 {strides = array<i32>} : memref<1x256x256xf32, #tpu.memory_space<vmem>>, vector<1x256x256xf32>,
    %cst_8 = arith.constant 0.000000e+00 : bf16
    %11 = vector.broadcast %cst_8 : bf16 to vector<1x18x128xbf16>
    %c0_9 = arith.constant 0 : index
    %c0_10 = arith.constant 0 : index
    %c0_11 = arith.constant 0 : index
    %12 = vector.load %arg6[%c0_9, %c0_10, %c0_11] : memref<18x18x128xbf16, #tpu.memory_space<vmem>>, vector<1x18x128xbf16>
    tpu.vector_store %arg6[%c0_9, %c0_10, %c0_11], %11 {strides = array<i32>} : memref<18x18x128xbf16, #tpu.memory_space<vmem>>, vector<1x18x128xbf16>,
    %c17 = arith.constant 17 : index
    %c0_12 = arith.constant 0 : index
    %c0_13 = arith.constant 0 : index
    %13 = vector.load %arg6[%c17, %c0_12, %c0_13] : memref<18x18x128xbf16, #tpu.memory_space<vmem>>, vector<1x18x128xbf16>
    tpu.vector_store %arg6[%c17, %c0_12, %c0_13], %11 {strides = array<i32>} : memref<18x18x128xbf16, #tpu.memory_space<vmem>>, vector<1x18x128xbf16>,
    %cst_14 = arith.constant 0.000000e+00 : bf16
    %14 = vector.broadcast %cst_14 : bf16 to vector<18x1x128xbf16>
    %c0_15 = arith.constant 0 : index
    %c0_16 = arith.constant 0 : index
    %c0_17 = arith.constant 0 : index
    %15 = vector.load %arg6[%c0_15, %c0_16, %c0_17] : memref<18x18x128xbf16, #tpu.memory_space<vmem>>, vector<18x1x128xbf16>
    tpu.vector_store %arg6[%c0_15, %c0_16, %c0_17], %14 {strides = array<i32>} : memref<18x18x128xbf16, #tpu.memory_space<vmem>>, vector<18x1x128xbf16>,
    %c0_18 = arith.constant 0 : index
    %c17_19 = arith.constant 17 : index
    %c0_20 = arith.constant 0 : index
    %16 = vector.load %arg6[%c0_18, %c17_19, %c0_20] : memref<18x18x128xbf16, #tpu.memory_space<vmem>>, vector<18x1x128xbf16>
    tpu.vector_store %arg6[%c0_18, %c17_19, %c0_20], %14 {strides = array<i32>} : memref<18x18x128xbf16, #tpu.memory_space<vmem>>, vector<18x1x128xbf16>,
    %17 = vector.extract_strided_slice %6 {offsets = [0, 0], sizes = [256, 128], strides = [1, 1]} : vector<256x384xf32> to vector<256x128xf32>
    %18 = arith.truncf %17 : vector<256x128xf32> to vector<256x128xbf16>
    %19 = vector.shape_cast %18 : vector<256x128xbf16> to vector<16x16x128xbf16>
    %c1 = arith.constant 1 : index
    %c1_21 = arith.constant 1 : index
    %c0_22 = arith.constant 0 : index
    %20 = vector.load %arg6[%c1, %c1_21, %c0_22] : memref<18x18x128xbf16, #tpu.memory_space<vmem>>, vector<16x16x128xbf16>
    tpu.vector_store %arg6[%c1, %c1_21, %c0_22], %19 {strides = array<i32>} : memref<18x18x128xbf16, #tpu.memory_space<vmem>>, vector<16x16x128xbf16>,
    %c0_23 = arith.constant 0 : index
    %c0_24 = arith.constant 0 : index
    %c0_25 = arith.constant 0 : index
    %21 = vector.load %arg6[%c0_23, %c0_24, %c0_25] : memref<18x18x128xbf16, #tpu.memory_space<vmem>>, vector<18x16x128xbf16>
    %22 = vector.extract_strided_slice %21 {offsets = [0, 0, 0], sizes = [16, 16, 128], strides = [1, 1, 1]} : vector<18x16x128xbf16> to vector<16x16x128xbf16>
    %23 = vector.shape_cast %22 : vector<16x16x128xbf16> to vector<256x128xbf16>
    %c0_26 = arith.constant 0 : index
    %c0_27 = arith.constant 0 : index
    %24 = vector.load %arg7[%c0_26, %c0_27] : memref<256x1152xbf16, #tpu.memory_space<vmem>>, vector<256x128xbf16>
    tpu.vector_store %arg7[%c0_26, %c0_27], %23 {strides = array<i32>} : memref<256x1152xbf16, #tpu.memory_space<vmem>>, vector<256x128xbf16>,
    %25 = vector.extract_strided_slice %21 {offsets = [1, 0, 0], sizes = [16, 16, 128], strides = [1, 1, 1]} : vector<18x16x128xbf16> to vector<16x16x128xbf16>
    %26 = vector.shape_cast %25 : vector<16x16x128xbf16> to vector<256x128xbf16>
    %c0_28 = arith.constant 0 : index
    %c384 = arith.constant 384 : index
    %27 = vector.load %arg7[%c0_28, %c384] : memref<256x1152xbf16, #tpu.memory_space<vmem>>, vector<256x128xbf16>
    tpu.vector_store %arg7[%c0_28, %c384], %26 {strides = array<i32>} : memref<256x1152xbf16, #tpu.memory_space<vmem>>, vector<256x128xbf16>,
    %28 = vector.extract_strided_slice %21 {offsets = [2, 0, 0], sizes = [16, 16, 128], strides = [1, 1, 1]} : vector<18x16x128xbf16> to vector<16x16x128xbf16>
    %29 = vector.shape_cast %28 : vector<16x16x128xbf16> to vector<256x128xbf16>
    %c0_29 = arith.constant 0 : index
    %c768 = arith.constant 768 : index
    %30 = vector.load %arg7[%c0_29, %c768] : memref<256x1152xbf16, #tpu.memory_space<vmem>>, vector<256x128xbf16>
    tpu.vector_store %arg7[%c0_29, %c768], %29 {strides = array<i32>} : memref<256x1152xbf16, #tpu.memory_space<vmem>>, vector<256x128xbf16>,
    %c0_30 = arith.constant 0 : index
    %c1_31 = arith.constant 1 : index
    %c0_32 = arith.constant 0 : index
    %31 = vector.load %arg6[%c0_30, %c1_31, %c0_32] : memref<18x18x128xbf16, #tpu.memory_space<vmem>>, vector<18x16x128xbf16>
    %32 = vector.extract_strided_slice %31 {offsets = [0, 0, 0], sizes = [16, 16, 128], strides = [1, 1, 1]} : vector<18x16x128xbf16> to vector<16x16x128xbf16>
    %33 = vector.shape_cast %32 : vector<16x16x128xbf16> to vector<256x128xbf16>
    %c0_33 = arith.constant 0 : index
    %c128 = arith.constant 128 : index
    %34 = vector.load %arg7[%c0_33, %c128] : memref<256x1152xbf16, #tpu.memory_space<vmem>>, vector<256x128xbf16>
    tpu.vector_store %arg7[%c0_33, %c128], %33 {strides = array<i32>} : memref<256x1152xbf16, #tpu.memory_space<vmem>>, vector<256x128xbf16>,
    %35 = vector.extract_strided_slice %31 {offsets = [1, 0, 0], sizes = [16, 16, 128], strides = [1, 1, 1]} : vector<18x16x128xbf16> to vector<16x16x128xbf16>
    %36 = vector.shape_cast %35 : vector<16x16x128xbf16> to vector<256x128xbf16>
    %c0_34 = arith.constant 0 : index
    %c512 = arith.constant 512 : index
    %37 = vector.load %arg7[%c0_34, %c512] : memref<256x1152xbf16, #tpu.memory_space<vmem>>, vector<256x128xbf16>
    tpu.vector_store %arg7[%c0_34, %c512], %36 {strides = array<i32>} : memref<256x1152xbf16, #tpu.memory_space<vmem>>, vector<256x128xbf16>,
    %38 = vector.extract_strided_slice %31 {offsets = [2, 0, 0], sizes = [16, 16, 128], strides = [1, 1, 1]} : vector<18x16x128xbf16> to vector<16x16x128xbf16>
    %39 = vector.shape_cast %38 : vector<16x16x128xbf16> to vector<256x128xbf16>
    %c0_35 = arith.constant 0 : index
    %c896 = arith.constant 896 : index
    %40 = vector.load %arg7[%c0_35, %c896] : memref<256x1152xbf16, #tpu.memory_space<vmem>>, vector<256x128xbf16>
    tpu.vector_store %arg7[%c0_35, %c896], %39 {strides = array<i32>} : memref<256x1152xbf16, #tpu.memory_space<vmem>>, vector<256x128xbf16>,
    %c0_36 = arith.constant 0 : index
    %c2 = arith.constant 2 : index
    %c0_37 = arith.constant 0 : index
    %41 = vector.load %arg6[%c0_36, %c2, %c0_37] : memref<18x18x128xbf16, #tpu.memory_space<vmem>>, vector<18x16x128xbf16>
    %42 = vector.extract_strided_slice %41 {offsets = [0, 0, 0], sizes = [16, 16, 128], strides = [1, 1, 1]} : vector<18x16x128xbf16> to vector<16x16x128xbf16>
    %43 = vector.shape_cast %42 : vector<16x16x128xbf16> to vector<256x128xbf16>
    %c0_38 = arith.constant 0 : index
    %c256 = arith.constant 256 : index
    %44 = vector.load %arg7[%c0_38, %c256] : memref<256x1152xbf16, #tpu.memory_space<vmem>>, vector<256x128xbf16>
    tpu.vector_store %arg7[%c0_38, %c256], %43 {strides = array<i32>} : memref<256x1152xbf16, #tpu.memory_space<vmem>>, vector<256x128xbf16>,
    %45 = vector.extract_strided_slice %41 {offsets = [1, 0, 0], sizes = [16, 16, 128], strides = [1, 1, 1]} : vector<18x16x128xbf16> to vector<16x16x128xbf16>
    %46 = vector.shape_cast %45 : vector<16x16x128xbf16> to vector<256x128xbf16>
    %c0_39 = arith.constant 0 : index
    %c640 = arith.constant 640 : index
    %47 = vector.load %arg7[%c0_39, %c640] : memref<256x1152xbf16, #tpu.memory_space<vmem>>, vector<256x128xbf16>
    tpu.vector_store %arg7[%c0_39, %c640], %46 {strides = array<i32>} : memref<256x1152xbf16, #tpu.memory_space<vmem>>, vector<256x128xbf16>,
    %48 = vector.extract_strided_slice %41 {offsets = [2, 0, 0], sizes = [16, 16, 128], strides = [1, 1, 1]} : vector<18x16x128xbf16> to vector<16x16x128xbf16>
    %49 = vector.shape_cast %48 : vector<16x16x128xbf16> to vector<256x128xbf16>
    %c0_40 = arith.constant 0 : index
    %c1024 = arith.constant 1024 : index
    %50 = vector.load %arg7[%c0_40, %c1024] : memref<256x1152xbf16, #tpu.memory_space<vmem>>, vector<256x128xbf16>
    tpu.vector_store %arg7[%c0_40, %c1024], %49 {strides = array<i32>} : memref<256x1152xbf16, #tpu.memory_space<vmem>>, vector<256x128xbf16>,
    %c0_41 = arith.constant 0 : index
    %c0_42 = arith.constant 0 : index
    %51 = vector.load %arg7[%c0_41, %c0_42] : memref<256x1152xbf16, #tpu.memory_space<vmem>>, vector<256x1152xbf16>
    %c0_43 = arith.constant 0 : index
    %c0_44 = arith.constant 0 : index
    %52 = vector.load %arg3[%c0_43, %c0_44] : memref<1152x128xbf16, #tpu.memory_space<vmem>>, vector<1152x128xbf16>
    %cst_45 = arith.constant dense<0.000000e+00> : vector<256x128xf32>
    %53 = tpu.matmul %51, %52, %cst_45 {dimension_numbers = #tpu.dot_dimension_numbers<[1], [0], [0], [1], [0, 0, 1, 1], [], []>} : vector<256x1152xbf16>, vector<1152x128xbf16>, vector<256x128xf32> -> vector<256x128xf32>
    %cst_46 = arith.constant 0.000000e+00 : f32
    %54 = vector.broadcast %cst_46 : f32 to vector<256x128xf32>
    %55 = arith.maximumf %53, %54 : vector<256x128xf32>
    %56 = arith.truncf %55 : vector<256x128xf32> to vector<256x128xbf16>
    %c0_47 = arith.constant 0 : index
    %c0_48 = arith.constant 0 : index
    %57 = vector.load %arg4[%c0_47, %c0_48] : memref<128x256xbf16, #tpu.memory_space<vmem>>, vector<128x256xbf16>
    %cst_49 = arith.constant dense<0.000000e+00> : vector<256x256xf32>
    %58 = tpu.matmul %56, %57, %cst_49 {dimension_numbers = #tpu.dot_dimension_numbers<[1], [0], [0], [1], [0, 0, 1, 1], [], []>} : vector<256x128xbf16>, vector<128x256xbf16>, vector<256x256xf32> -> vector<256x256xf32>
    %cst_50 = arith.constant 0.000000e+00 : f32
    %59 = vector.broadcast %cst_50 : f32 to vector<256x256xf32>
    %60 = arith.maximumf %58, %59 : vector<256x256xf32>
    %c0_51 = arith.constant 0 : index
    %c0_52 = arith.constant 0 : index
    %c0_53 = arith.constant 0 : index
    %61 = vector.load %arg5[%c0_51, %c0_52, %c0_53] : memref<1x256x256xf32, #tpu.memory_space<vmem>>, vector<1x256x256xf32>
    %62 = vector.shape_cast %61 : vector<1x256x256xf32> to vector<256x256xf32>
    %63 = arith.addf %62, %60 : vector<256x256xf32>
    %c0_54 = arith.constant 0 : index
    %c0_55 = arith.constant 0 : index
    %c0_56 = arith.constant 0 : index
    %64 = vector.load %arg5[%c0_54, %c0_55, %c0_56] : memref<1x256x256xf32, #tpu.memory_space<vmem>>, vector<1x256x256xf32>
    %65 = vector.shape_cast %64 : vector<1x256x256xf32> to vector<256x256xf32>
    %66 = vector.shape_cast %63 : vector<256x256xf32> to vector<1x256x256xf32>
    tpu.vector_store %arg5[%c0_54, %c0_55, %c0_56], %66 {strides = array<i32>} : memref<1x256x256xf32, #tpu.memory_space<vmem>>, vector<1x256x256xf32>,
    return
  }
  func.func @transform_0(%arg0: i32) -> (i32, i32, i32) {
    %c0_i32 = arith.constant 0 : i32
    %c0_i32_0 = arith.constant 0 : i32
    %c0_i32_1 = arith.constant 0 : i32
    return %arg0, %c0_i32, %c0_i32_0 : i32, i32, i32
  }
  func.func @transform_1(%arg0: i32) -> (i32, i32) {
    %c0_i32 = arith.constant 0 : i32
    %c0_i32_0 = arith.constant 0 : i32
    %c0_i32_1 = arith.constant 0 : i32
    return %c0_i32, %c0_i32_0 : i32, i32
  }
  func.func @transform_2(%arg0: i32) -> (i32, i32) {
    %c0_i32 = arith.constant 0 : i32
    %c0_i32_0 = arith.constant 0 : i32
    %c0_i32_1 = arith.constant 0 : i32
    return %c0_i32, %c0_i32_0 : i32, i32
  }
  func.func @transform_3(%arg0: i32) -> (i32, i32) {
    %c0_i32 = arith.constant 0 : i32
    %c0_i32_0 = arith.constant 0 : i32
    %c0_i32_1 = arith.constant 0 : i32
    return %c0_i32, %c0_i32_0 : i32, i32
  }
  func.func @transform_4(%arg0: i32) -> (i32, i32, i32) {
    %c0_i32 = arith.constant 0 : i32
    %c0_i32_0 = arith.constant 0 : i32
    %c0_i32_1 = arith.constant 0 : i32
    return %arg0, %c0_i32, %c0_i32_0 : i32, i32, i32
  }
}

</mosaic_0001>

<llo_original>
// kernel: tpu_custom_call.1
$region0: #{tpu_custom_call.1}
  #allocation0 [shape = 'u32[]', space=smem, size = 0x4, offset = 0x4, fixed_abs, tag = 'smem constant byte address 0x4 - core index']
  #allocation1 [shape = 'u32[144,128]{1,0:T(1,128)}', space=vmem, size = 0x12000, scoped, tag = 'internal scratch']
  #allocation2 [shape = 'bf16[18,18,128]{2,1,0:T(8,128)(2,1)}', space=vmem, size = 0x1b000, scoped, tag = 'scratch operand']
  #allocation3 [shape = 'bf16[256,1152]{1,0:T(16,128)(2,1)}', space=vmem, size = 0x90000, scoped, tag = 'scratch operand']
  %s0 = inlined_call_operand.vmem [shape: f32[2,256,4], index: 0, kind: input, shape index: {}]
  %s1 = inlined_call_operand.vmem [shape: bf16[4,384], index: 1, kind: input, shape index: {}]
  %s2 = inlined_call_operand.hbm [shape: bf16[1152,128], index: 2, kind: input, shape index: {}]
  %s3 = inlined_call_operand.vmem [shape: bf16[128,256], index: 3, kind: input, shape index: {}]
  %s4 = inlined_call_operand.hbm [shape: f32[2,256,256], index: 4, kind: output, shape index: {}]
  %s5 = sld [smem:[#allocation0]]
  $region53: #{tpu_custom_call.1} parent=0
    _
  %s7 = ssub.s32 1, %s5
  %s8 = scalar_select 0, %s7, %s5
  $region1: #{tpu_custom_call.1} parent=0
    #allocation4 [shape = 'u8[294912]{0}', space=vmem, size = 0x48000, scoped, tag = 'input window, operand 2, single buffered']
    #allocation5 [shape = 's32[2]{0}', space=sflag, size = 0x8, scoped, tag = 'scoped memory for tpu_custom_call.1']
    #allocation6 [shape = 's32[2]{0}', space=sflag, size = 0x8, scoped, tag = 'scoped memory for tpu_custom_call.1']
    #allocation7 [shape = 'u8[524288]{0}', space=vmem, size = 0x80000, scoped, tag = 'output window, operand 0']
    %9 = vsyncpa [#allocation5], 0
    %10 = vsyncpa [#allocation6], 0
    %s11 = scalar_lea.sflag [#allocation6], 1
    %12 = vsyncpa %s11, 0
    loop: start=0, step=1, limit=4
    $region2: #{tpu_custom_call.1} parent=1 // loop_pre_header
      _
    $region3: #{tpu_custom_call.1} parent=1 // loop_header
      %s14 = sphi 0, %s18
      %p15 = scmp.ge.s32.totalorder %s14, 4
      %s24 = sphi 0, %s26
      %s27 = sphi 0, %s24
      %s28 = sphi 0, %s27
      %s44 = sphi 0, %s28
      %s48 = sphi 0, %s48
      %s50 = sphi 0, %s48
      %s51 = sphi 0, %s50
      %s65 = sphi 0, %s51
      %s69 = sphi 0, %s69
      %s71 = sphi 0, %s69
      %s72 = sphi 0, %s71
      %s86 = sphi 0, %s72
      %s90 = sphi 0, %s90
      %s92 = sphi 0, %s90
      %s93 = sphi 0, %s92
      %s107 = sphi 0, %s93
      %s113 = sphi 0, %s115
      %s116 = sphi 0, %s113
      %s117 = sphi 0, %s116
      %s133 = sphi 0, %s117
    $region4: #{tpu_custom_call.1} parent=1 // loop_header_branch
      %17 = sbr.rel (%p15) target = $region8
    $region5: #{tpu_custom_call.1} parent=1 // loop_body
      %s19 = ssub.s32 %s14, 1
      %s20 = ssub.s32 %s14, 2
      %s21 = sadd.s32 %s14, 1
      %s22 = ssub.s32 %s14, %s21
      %p23 = scmp.eq.s32.totalorder %s22, 0
      %s25 = sadd.s32 %s24, 1
      %s26 = scalar_select %p23, %s24, %s25
      %p29 = pneg %p23
      %p30 = scmp.eq.s32.totalorder %s14, 1
      %p31 = por %p29, %p30
      %p32 = scmp.ne.s32.totalorder %s24, %s27
      %p33 = scmp.eq.s32.totalorder %s14, 0
      %p34 = por %p32, %p33
      %p35 = scmp.ne.s32.totalorder %s24, %s27
      %p36 = scmp.eq.s32.totalorder %s19, 1
      %p37 = por %p35, %p36
      %p38 = scmp.ne.s32.totalorder %s27, %s28
      %p39 = scmp.eq.s32.totalorder %s19, 0
      %p40 = por %p38, %p39
      %p41 = scmp.ne.s32.totalorder %s27, %s28
      %p42 = scmp.eq.s32.totalorder %s20, 1
      %p43 = por %p41, %p42
      %p45 = scmp.ne.s32.totalorder %s28, %s44
      %p46 = scmp.eq.s32.totalorder %s20, 0
      %p47 = por %p45, %p46
      %s49 = sadd.s32 %s48, 1
      %p52 = scmp.eq.s32.totalorder %s14, 1
      %p53 = scmp.ne.s32.totalorder %s48, %s50
      %p54 = scmp.eq.s32.totalorder %s14, 0
      %p55 = por %p53, %p54
      %p56 = scmp.ne.s32.totalorder %s48, %s50
      %p57 = scmp.eq.s32.totalorder %s19, 1
      %p58 = por %p56, %p57
      %p59 = scmp.ne.s32.totalorder %s50, %s51
      %p60 = scmp.eq.s32.totalorder %s19, 0
      %p61 = por %p59, %p60
      %p62 = scmp.ne.s32.totalorder %s50, %s51
      %p63 = scmp.eq.s32.totalorder %s20, 1
      %p64 = por %p62, %p63
      %p66 = scmp.ne.s32.totalorder %s51, %s65
      %p67 = scmp.eq.s32.totalorder %s20, 0
      %p68 = por %p66, %p67
      %s70 = sadd.s32 %s69, 1
      %p73 = scmp.eq.s32.totalorder %s14, 1
      %p74 = scmp.ne.s32.totalorder %s69, %s71
      %p75 = scmp.eq.s32.totalorder %s14, 0
      %p76 = por %p74, %p75
      %p77 = scmp.ne.s32.totalorder %s69, %s71
      %p78 = scmp.eq.s32.totalorder %s19, 1
      %p79 = por %p77, %p78
      %p80 = scmp.ne.s32.totalorder %s71, %s72
      %p81 = scmp.eq.s32.totalorder %s19, 0
      %p82 = por %p80, %p81
      %p83 = scmp.ne.s32.totalorder %s71, %s72
      %p84 = scmp.eq.s32.totalorder %s20, 1
      %p85 = por %p83, %p84
      %p87 = scmp.ne.s32.totalorder %s72, %s86
      %p88 = scmp.eq.s32.totalorder %s20, 0
      %p89 = por %p87, %p88
      %s91 = sadd.s32 %s90, 1
      %p94 = scmp.eq.s32.totalorder %s14, 1
      %p95 = scmp.ne.s32.totalorder %s90, %s92
      %p96 = scmp.eq.s32.totalorder %s14, 0
      %p97 = por %p95, %p96
      %p98 = scmp.ne.s32.totalorder %s90, %s92
      %p99 = scmp.eq.s32.totalorder %s19, 1
      %p100 = por %p98, %p99
      %p101 = scmp.ne.s32.totalorder %s92, %s93
      %p102 = scmp.eq.s32.totalorder %s19, 0
      %p103 = por %p101, %p102
      %p104 = scmp.ne.s32.totalorder %s92, %s93
      %p105 = scmp.eq.s32.totalorder %s20, 1
      %p106 = por %p104, %p105
      %p108 = scmp.ne.s32.totalorder %s93, %s107
      %p109 = scmp.eq.s32.totalorder %s20, 0
      %p110 = por %p108, %p109
      %s111 = ssub.s32 %s14, %s21
      %p112 = scmp.eq.s32.totalorder %s111, 0
      %s114 = sadd.s32 %s113, 1
      %s115 = scalar_select %p112, %s113, %s114
      %p118 = pneg %p112
      %p119 = scmp.eq.s32.totalorder %s14, 1
      %p120 = por %p118, %p119
      %p121 = scmp.ne.s32.totalorder %s113, %s116
      %p122 = scmp.eq.s32.totalorder %s14, 0
      %p123 = por %p121, %p122
      %p124 = scmp.ne.s32.totalorder %s113, %s116
      %p125 = scmp.eq.s32.totalorder %s19, 1
      %p126 = por %p124, %p125
      %p127 = scmp.ne.s32.totalorder %s116, %s117
      %p128 = scmp.eq.s32.totalorder %s19, 0
      %p129 = por %p127, %p128
      %p130 = scmp.ne.s32.totalorder %s116, %s117
      %p131 = scmp.eq.s32.totalorder %s20, 1
      %p132 = por %p130, %p131
      %p134 = scmp.ne.s32.totalorder %s117, %s133
      %p135 = scmp.eq.s32.totalorder %s20, 0
      %p136 = por %p134, %p135
      %p137 = scmp.le.s32.totalorder 1, %s14
      %p138 = scmp.lt.s32.totalorder %s14, 3
      %p139 = pnand %p137, %p138
      %p140 = pneg %p139
      // Predicated region
      $region9: #{tpu_custom_call.1} parent=5 // pred_check
        _
      $region10: #{tpu_custom_call.1} parent=5 // pred_check_branch
        %142 = sbr.rel (%p139) target = $region12
      $region11: #{tpu_custom_call.1} parent=5 // pred_region
        %s143 = ssub.s32 %s14, 1
        // Predicated region
        $region13: #{tpu_custom_call.1} parent=11 // pred_check
          %p144 = pneg %p61
        $region14: #{tpu_custom_call.1} parent=11 // pred_check_branch
          %146 = sbr.rel (%p144) target = $region16
        $region15: #{tpu_custom_call.1} parent=11 // pred_region
          _
        $region16: #{tpu_custom_call.1} parent=11 // pred_fallthru
          _
        // Predicated region
        $region17: #{tpu_custom_call.1} parent=11 // pred_check
          %p147 = pneg %p82
        $region18: #{tpu_custom_call.1} parent=11 // pred_check_branch
          %149 = sbr.rel (%p147) target = $region20
        $region19: #{tpu_custom_call.1} parent=11 // pred_region
          %s151 = ssub.s32 9216, 9216
          %152 = vsyncadd [#allocation5], %s151
          %s153 = sshll.u32 [#allocation4], 4
          %s154 = int_to_ptr.vmem [resolvable:$true] %s153
          %159 = dma.hbm_to_vmem [thread:$0]  %s2, 9216, %s154, [#allocation5], 64, 64, 4
        $region20: #{tpu_custom_call.1} parent=11 // pred_fallthru
          _
        // Predicated region
        $region21: #{tpu_custom_call.1} parent=11 // pred_check
          %p160 = pneg %p103
        $region22: #{tpu_custom_call.1} parent=11 // pred_check_branch
          %162 = sbr.rel (%p160) target = $region24
        $region23: #{tpu_custom_call.1} parent=11 // pred_region
          _
        $region24: #{tpu_custom_call.1} parent=11 // pred_fallthru
          _
      $region12: #{tpu_custom_call.1} parent=5 // pred_fallthru
        _
      %p163 = scmp.lt.s32.totalorder %s14, 2
      // Predicated region
      $region25: #{tpu_custom_call.1} parent=5 // pred_check
        %p164 = pneg %p163
      $region26: #{tpu_custom_call.1} parent=5 // pred_check_branch
        %166 = sbr.rel (%p164) target = $region28
      $region27: #{tpu_custom_call.1} parent=5 // pred_region
        // Predicated region
        $region29: #{tpu_custom_call.1} parent=27 // pred_check
          %p167 = pneg %p34
        $region30: #{tpu_custom_call.1} parent=27 // pred_check_branch
          %169 = sbr.rel (%p167) target = $region32
        $region31: #{tpu_custom_call.1} parent=27 // pred_region
          %p170 = scmp.lt.s32.totalorder %s14, 1
          %s171 = scalar_select %p170, %s14, 1
          %s172 = smul.addr %s171, 32
          %s173 = smul.addr %s172, 8
          %s174 = scalar_lea.vmem %s0, %s173
        $region32: #{tpu_custom_call.1} parent=27 // pred_fallthru
          _
      $region28: #{tpu_custom_call.1} parent=5 // pred_fallthru
        _
      %p175 = scmp.le.s32.totalorder 1, %s14
      %p176 = scmp.lt.s32.totalorder %s14, 3
      %p177 = pnand %p175, %p176
      %p178 = pneg %p177
      // Predicated region
      $region33: #{tpu_custom_call.1} parent=5 // pred_check
        _
      $region34: #{tpu_custom_call.1} parent=5 // pred_check_branch
        %180 = sbr.rel (%p177) target = $region36
      $region35: #{tpu_custom_call.1} parent=5 // pred_region
        %s181 = ssub.s32 %s14, 1
        // Predicated region
        $region37: #{tpu_custom_call.1} parent=35 // pred_check
          %p182 = pneg %p82
        $region38: #{tpu_custom_call.1} parent=35 // pred_check_branch
          %184 = sbr.rel (%p182) target = $region40
        $region39: #{tpu_custom_call.1} parent=35 // pred_region
          %185 = dma.done [#allocation5], 9216
        $region40: #{tpu_custom_call.1} parent=35 // pred_fallthru
          _
        %p186 = scmp.lt.s32.totalorder %s19, 1
        %s187 = scalar_select %p186, %s19, 1
        %s188 = smul.addr %s187, 32
        %s189 = smul.addr %s188, 8
        %s190 = scalar_lea.vmem %s0, %s189
        %p191 = pneg %p40
        %p192 = pneg %p37
        %p193 = pneg %p61
        %p194 = pneg %p58
        %p195 = pneg %p82
        %p196 = pneg %p79
        %p197 = pneg %p103
        %p198 = pneg %p100
        %p199 = pneg %p129
        %p200 = pneg %p126
        %s201 = sand.u32 %s116, 1
        %s202 = scalar_lea.sflag [#allocation6], %s201
        %s203 = sand.u32 %s116, 1
        %s204 = smul.addr %s203, 512
        %s205 = scalar_lea.vmem [#allocation7], %s204
        %p206 = scmp.lt.s32.totalorder %s19, 1
        %s207 = scalar_select %p206, %s19, 1
        %s208 = smul.addr %s207, 32
        %s209 = smul.addr %s208, 8
        %s210 = scalar_lea.vmem %s0, %s209
        %v212 = vld [vmem:[%s210] sm:$0xff]
        %v213 = vld [vmem:[%s210 + $0x8] sm:$0xff]
        %v214 = vld [vmem:[%s210 + $0x10] sm:$0xff]
        %v215 = vld [vmem:[%s210 + $0x18] sm:$0xff]
        %v216 = vld [vmem:[%s210 + $0x20] sm:$0xff]
        %v217 = vld [vmem:[%s210 + $0x28] sm:$0xff]
        %v218 = vld [vmem:[%s210 + $0x30] sm:$0xff]
        %v219 = vld [vmem:[%s210 + $0x38] sm:$0xff]
        %v220 = vld [vmem:[%s210 + $0x40] sm:$0xff]
        %v221 = vld [vmem:[%s210 + $0x48] sm:$0xff]
        %v222 = vld [vmem:[%s210 + $0x50] sm:$0xff]
        %v223 = vld [vmem:[%s210 + $0x58] sm:$0xff]
        %v224 = vld [vmem:[%s210 + $0x60] sm:$0xff]
        %v225 = vld [vmem:[%s210 + $0x68] sm:$0xff]
        %v226 = vld [vmem:[%s210 + $0x70] sm:$0xff]
        %v227 = vld [vmem:[%s210 + $0x78] sm:$0xff]
        %v228 = vld [vmem:[%s210 + $0x80] sm:$0xff]
        %v229 = vld [vmem:[%s210 + $0x88] sm:$0xff]
        %v230 = vld [vmem:[%s210 + $0x90] sm:$0xff]
        %v231 = vld [vmem:[%s210 + $0x98] sm:$0xff]
        %v232 = vld [vmem:[%s210 + $0xa0] sm:$0xff]
        %v233 = vld [vmem:[%s210 + $0xa8] sm:$0xff]
        %v234 = vld [vmem:[%s210 + $0xb0] sm:$0xff]
        %v235 = vld [vmem:[%s210 + $0xb8] sm:$0xff]
        %v236 = vld [vmem:[%s210 + $0xc0] sm:$0xff]
        %v237 = vld [vmem:[%s210 + $0xc8] sm:$0xff]
        %v238 = vld [vmem:[%s210 + $0xd0] sm:$0xff]
        %v239 = vld [vmem:[%s210 + $0xd8] sm:$0xff]
        %v240 = vld [vmem:[%s210 + $0xe0] sm:$0xff]
        %v241 = vld [vmem:[%s210 + $0xe8] sm:$0xff]
        %v242 = vld [vmem:[%s210 + $0xf0] sm:$0xff]
        %v243 = vld [vmem:[%s210 + $0xf8] sm:$0xff]
        %v244 = vpack.c.bf16 %v213, %v212
        %v245 = vpack.c.bf16 %v215, %v214
        %v246 = vpack.c.bf16 %v217, %v216
        %v247 = vpack.c.bf16 %v219, %v218
        %v248 = vpack.c.bf16 %v221, %v220
        %v249 = vpack.c.bf16 %v223, %v222
        %v250 = vpack.c.bf16 %v225, %v224
        %v251 = vpack.c.bf16 %v227, %v226
        %v252 = vpack.c.bf16 %v229, %v228
        %v253 = vpack.c.bf16 %v231, %v230
        %v254 = vpack.c.bf16 %v233, %v232
        %v255 = vpack.c.bf16 %v235, %v234
        %v256 = vpack.c.bf16 %v237, %v236
        %v257 = vpack.c.bf16 %v239, %v238
        %v258 = vpack.c.bf16 %v241, %v240
        %v259 = vpack.c.bf16 %v243, %v242
        %v260 = vld [vmem:[%s1] sm:$0x3f]
        %v262 = vcombine.high %v260, %v260
        %v264 = vunpack.c.l.s4 1983009808
        %v265 = vunpack.c.0.s8 %v264
        %v266 = vlaneseq
        %v267 = vshrl.u32 %v266, 7
        %v268 = vsub.s32 %v265, %v267
        %v269 = vrot.slane %v260, %v268
        %v271 = vunpack.c.l.s4 1983009808
        %v272 = vunpack.c.0.s8 %v271
        %v273 = vlaneseq
        %v274 = vshrl.u32 %v273, 7
        %v275 = vsub.s32 %v272, %v274
        %v276 = vrot.slane %v262, %v275
        %v277 = vcombine.high %v269, %v269
        %vm278 = vcmask 31744
        %v280 = vsel %vm278, %v244, 0
        %v283 = vsel %vm278, %v245, 0
        %v286 = vsel %vm278, %v246, 0
        %v289 = vsel %vm278, %v247, 0
        %v292 = vsel %vm278, %v248, 0
        %v295 = vsel %vm278, %v249, 0
        %v298 = vsel %vm278, %v250, 0
        %v301 = vsel %vm278, %v251, 0
        %v304 = vsel %vm278, %v252, 0
        %v307 = vsel %vm278, %v253, 0
        %v310 = vsel %vm278, %v254, 0
        %v313 = vsel %vm278, %v255, 0
        %v316 = vsel %vm278, %v256, 0
        %v319 = vsel %vm278, %v257, 0
        %v322 = vsel %vm278, %v258, 0
        %v325 = vsel %vm278, %v259, 0
        %vm327 = vcmask 1041408
        %v329 = vsel %vm327, %v269, 0
        %v332 = vsel %vm327, %v277, 0
        %v335 = vsel %vm327, %v276, 0
        %337 = vmatprep.subr.bf16.mxu0 %v332
        %338 = vmatpush1.bf16.msra.mxu0 %v329
        %339 = vmatprep.subr.bf16.mxu0 0
        %340 = vmatpush1.bf16.msra.mxu0 0
        %341 = vmatprep.subr.bf16.mxu0 0
        %342 = vmatpush1.bf16.msra.mxu0 0
        %343 = vmatprep.subr.bf16.mxu0 0
        %344 = vmatpush1.bf16.msra.mxu0 0
        %345 = vmatprep.subr.bf16.mxu0 0
        %346 = vmatpush1.bf16.msra.mxu0 0
        %347 = vmatprep.subr.bf16.mxu0 0
        %348 = vmatpush1.bf16.msra.mxu0 0
        %349 = vmatprep.subr.bf16.mxu0 0
        %350 = vmatpush1.bf16.msra.mxu0 0
        %351 = vmatprep.subr.bf16.mxu0 0
        %352 = vmatpush1.bf16.msra.mxu0 0
        %353 = vmatprep.subr.bf16.mxu0 0
        %354 = vmatpush1.bf16.msra.mxu0 0
        %355 = vmatprep.subr.bf16.mxu0 0
        %356 = vmatpush1.bf16.msra.mxu0 0
        %357 = vmatprep.subr.bf16.mxu0 0
        %358 = vmatpush1.bf16.msra.mxu0 0
        %359 = vmatprep.subr.bf16.mxu0 0
        %360 = vmatpush1.bf16.msra.mxu0 0
        %361 = vmatprep.subr.bf16.mxu0 0
        %362 = vmatpush1.bf16.msra.mxu0 0
        %363 = vmatprep.subr.bf16.mxu0 0
        %364 = vmatpush1.bf16.msra.mxu0 0
        %365 = vmatprep.subr.bf16.mxu0 0
        %366 = vmatpush1.bf16.msra.mxu0 0
        %367 = vmatprep.subr.bf16.mxu0 0
        %368 = vmatpush1.bf16.msra.mxu0 0
        %369 = vmatprep.mubr.bf16.mxu0 0
        %370 = vmatmul.mubr.bf16.gmra.mrb[0].mxu0 %v280
        %v371 = vpop.f32.mrb[0].mxu0
        %v372 = vadd.f32 0.0, %v371
        %v373 = vpop.f32.mrb[0].mxu0
        %v374 = vadd.f32 0.0, %v373
        %v375 = vpop.f32.mrb[0].mxu0
        %v376 = vadd.f32 0.0, %v375
        %v377 = vpop.f32.mrb[0].mxu0
        %v378 = vadd.f32 0.0, %v377
        %379 = vmatprep.mubr.bf16.mxu0 0
        %380 = vmatmul.mubr.bf16.gmra.mrb[0].mxu0 %v283
        %v381 = vpop.f32.mrb[0].mxu0
        %v382 = vadd.f32 0.0, %v381
        %v383 = vpop.f32.mrb[0].mxu0
        %v384 = vadd.f32 0.0, %v383
        %v385 = vpop.f32.mrb[0].mxu0
        %v386 = vadd.f32 0.0, %v385
        %v387 = vpop.f32.mrb[0].mxu0
        %v388 = vadd.f32 0.0, %v387
        %389 = vmatprep.mubr.bf16.mxu0 0
        %390 = vmatmul.mubr.bf16.gmra.mrb[0].mxu0 %v286
        %v391 = vpop.f32.mrb[0].mxu0
        %v392 = vadd.f32 0.0, %v391
        %v393 = vpop.f32.mrb[0].mxu0
        %v394 = vadd.f32 0.0, %v393
        %v395 = vpop.f32.mrb[0].mxu0
        %v396 = vadd.f32 0.0, %v395
        %v397 = vpop.f32.mrb[0].mxu0
        %v398 = vadd.f32 0.0, %v397
        %399 = vmatprep.mubr.bf16.mxu0 0
        %400 = vmatmul.mubr.bf16.gmra.mrb[0].mxu0 %v289
        %v401 = vpop.f32.mrb[0].mxu0
        %v402 = vadd.f32 0.0, %v401
        %v403 = vpop.f32.mrb[0].mxu0
        %v404 = vadd.f32 0.0, %v403
        %v405 = vpop.f32.mrb[0].mxu0
        %v406 = vadd.f32 0.0, %v405
        %v407 = vpop.f32.mrb[0].mxu0
        %v408 = vadd.f32 0.0, %v407
        %409 = vmatprep.mubr.bf16.mxu0 0
        %410 = vmatmul.mubr.bf16.gmra.mrb[0].mxu0 %v292
        %v411 = vpop.f32.mrb[0].mxu0
        %v412 = vadd.f32 0.0, %v411
        %v413 = vpop.f32.mrb[0].mxu0
        %v414 = vadd.f32 0.0, %v413
        %v415 = vpop.f32.mrb[0].mxu0
        %v416 = vadd.f32 0.0, %v415
        %v417 = vpop.f32.mrb[0].mxu0
        %v418 = vadd.f32 0.0, %v417
        %419 = vmatprep.mubr.bf16.mxu0 0
        %420 = vmatmul.mubr.bf16.gmra.mrb[0].mxu0 %v295
        %v421 = vpop.f32.mrb[0].mxu0
        %v422 = vadd.f32 0.0, %v421
        %v423 = vpop.f32.mrb[0].mxu0
        %v424 = vadd.f32 0.0, %v423
        %v425 = vpop.f32.mrb[0].mxu0
        %v426 = vadd.f32 0.0, %v425
        %v427 = vpop.f32.mrb[0].mxu0
        %v428 = vadd.f32 0.0, %v427
        %429 = vmatprep.mubr.bf16.mxu0 0
        %430 = vmatmul.mubr.bf16.gmra.mrb[0].mxu0 %v298
        %v431 = vpop.f32.mrb[0].mxu0
        %v432 = vadd.f32 0.0, %v431
        %v433 = vpop.f32.mrb[0].mxu0
        %v434 = vadd.f32 0.0, %v433
        %v435 = vpop.f32.mrb[0].mxu0
        %v436 = vadd.f32 0.0, %v435
        %v437 = vpop.f32.mrb[0].mxu0
        %v438 = vadd.f32 0.0, %v437
        %439 = vmatprep.mubr.bf16.mxu0 0
        %440 = vmatmul.mubr.bf16.gmra.mrb[0].mxu0 %v301
        %v441 = vpop.f32.mrb[0].mxu0
        %v442 = vadd.f32 0.0, %v441
        %v443 = vpop.f32.mrb[0].mxu0
        %v444 = vadd.f32 0.0, %v443
        %v445 = vpop.f32.mrb[0].mxu0
        %v446 = vadd.f32 0.0, %v445
        %v447 = vpop.f32.mrb[0].mxu0
        %v448 = vadd.f32 0.0, %v447
        %449 = vmatprep.mubr.bf16.mxu0 0
        %450 = vmatmul.mubr.bf16.gmra.mrb[0].mxu0 %v304
        %v451 = vpop.f32.mrb[0].mxu0
        %v452 = vadd.f32 0.0, %v451
        %v453 = vpop.f32.mrb[0].mxu0
        %v454 = vadd.f32 0.0, %v453
        %v455 = vpop.f32.mrb[0].mxu0
        %v456 = vadd.f32 0.0, %v455
        %v457 = vpop.f32.mrb[0].mxu0
        %v458 = vadd.f32 0.0, %v457
        %459 = vmatprep.mubr.bf16.mxu0 0
        %460 = vmatmul.mubr.bf16.gmra.mrb[0].mxu0 %v307
        %v461 = vpop.f32.mrb[0].mxu0
        %v462 = vadd.f32 0.0, %v461
        %v463 = vpop.f32.mrb[0].mxu0
        %v464 = vadd.f32 0.0, %v463
        %v465 = vpop.f32.mrb[0].mxu0
        %v466 = vadd.f32 0.0, %v465
        %v467 = vpop.f32.mrb[0].mxu0
        %v468 = vadd.f32 0.0, %v467
        %469 = vmatprep.mubr.bf16.mxu0 0
        %470 = vmatmul.mubr.bf16.gmra.mrb[0].mxu0 %v310
        %v471 = vpop.f32.mrb[0].mxu0
        %v472 = vadd.f32 0.0, %v471
        %v473 = vpop.f32.mrb[0].mxu0
        %v474 = vadd.f32 0.0, %v473
        %v475 = vpop.f32.mrb[0].mxu0
        %v476 = vadd.f32 0.0, %v475
        %v477 = vpop.f32.mrb[0].mxu0
        %v478 = vadd.f32 0.0, %v477
        %479 = vmatprep.mubr.bf16.mxu0 0
        %480 = vmatmul.mubr.bf16.gmra.mrb[0].mxu0 %v313
        %v481 = vpop.f32.mrb[0].mxu0
        %v482 = vadd.f32 0.0, %v481
        %v483 = vpop.f32.mrb[0].mxu0
        %v484 = vadd.f32 0.0, %v483
        %v485 = vpop.f32.mrb[0].mxu0
        %v486 = vadd.f32 0.0, %v485
        %v487 = vpop.f32.mrb[0].mxu0
        %v488 = vadd.f32 0.0, %v487
        %489 = vmatprep.mubr.bf16.mxu0 0
        %490 = vmatmul.mubr.bf16.gmra.mrb[0].mxu0 %v316
        %v491 = vpop.f32.mrb[0].mxu0
        %v492 = vadd.f32 0.0, %v491
        %v493 = vpop.f32.mrb[0].mxu0
        %v494 = vadd.f32 0.0, %v493
        %v495 = vpop.f32.mrb[0].mxu0
        %v496 = vadd.f32 0.0, %v495
        %v497 = vpop.f32.mrb[0].mxu0
        %v498 = vadd.f32 0.0, %v497
        %499 = vmatprep.mubr.bf16.mxu0 0
        %500 = vmatmul.mubr.bf16.gmra.mrb[0].mxu0 %v319
        %v501 = vpop.f32.mrb[0].mxu0
        %v502 = vadd.f32 0.0, %v501
        %v503 = vpop.f32.mrb[0].mxu0
        %v504 = vadd.f32 0.0, %v503
        %v505 = vpop.f32.mrb[0].mxu0
        %v506 = vadd.f32 0.0, %v505
        %v507 = vpop.f32.mrb[0].mxu0
        %v508 = vadd.f32 0.0, %v507
        %509 = vmatprep.mubr.bf16.mxu0 0
        %510 = vmatmul.mubr.bf16.gmra.mrb[0].mxu0 %v322
        %v511 = vpop.f32.mrb[0].mxu0
        %v512 = vadd.f32 0.0, %v511
        %v513 = vpop.f32.mrb[0].mxu0
        %v514 = vadd.f32 0.0, %v513
        %v515 = vpop.f32.mrb[0].mxu0
        %v516 = vadd.f32 0.0, %v515
        %v517 = vpop.f32.mrb[0].mxu0
        %v518 = vadd.f32 0.0, %v517
        %519 = vmatprep.mubr.bf16.mxu0 0
        %520 = vmatmul.mubr.bf16.gmra.mrb[0].mxu0 %v325
        %v521 = vpop.f32.mrb[0].mxu0
        %v522 = vadd.f32 0.0, %v521
        %v523 = vpop.f32.mrb[0].mxu0
        %v524 = vadd.f32 0.0, %v523
        %v525 = vpop.f32.mrb[0].mxu0
        %v526 = vadd.f32 0.0, %v525
        %v527 = vpop.f32.mrb[0].mxu0
        %v528 = vadd.f32 0.0, %v527
        %529 = vdwg.mxu0
        %530 = vmatprep.subr.bf16.mxu0 0
        %531 = vmatpush1.bf16.msra.mxu0 %v335
        %532 = vmatprep.subr.bf16.mxu0 0
        %533 = vmatpush1.bf16.msra.mxu0 0
        %534 = vmatprep.subr.bf16.mxu0 0
        %535 = vmatpush1.bf16.msra.mxu0 0
        %536 = vmatprep.subr.bf16.mxu0 0
        %537 = vmatpush1.bf16.msra.mxu0 0
        %538 = vmatprep.subr.bf16.mxu0 0
        %539 = vmatpush1.bf16.msra.mxu0 0
        %540 = vmatprep.subr.bf16.mxu0 0
        %541 = vmatpush1.bf16.msra.mxu0 0
        %542 = vmatprep.subr.bf16.mxu0 0
        %543 = vmatpush1.bf16.msra.mxu0 0
        %544 = vmatprep.subr.bf16.mxu0 0
        %545 = vmatpush1.bf16.msra.mxu0 0
        %546 = vmatprep.subr.bf16.mxu0 0
        %547 = vmatpush1.bf16.msra.mxu0 0
        %548 = vmatprep.subr.bf16.mxu0 0
        %549 = vmatpush1.bf16.msra.mxu0 0
        %550 = vmatprep.subr.bf16.mxu0 0
        %551 = vmatpush1.bf16.msra.mxu0 0
        %552 = vmatprep.subr.bf16.mxu0 0
        %553 = vmatpush1.bf16.msra.mxu0 0
        %554 = vmatprep.subr.bf16.mxu0 0
        %555 = vmatpush1.bf16.msra.mxu0 0
        %556 = vmatprep.subr.bf16.mxu0 0
        %557 = vmatpush1.bf16.msra.mxu0 0
        %558 = vmatprep.subr.bf16.mxu0 0
        %559 = vmatpush1.bf16.msra.mxu0 0
        %560 = vmatprep.subr.bf16.mxu0 0
        %561 = vmatpush1.bf16.msra.mxu0 0
        %562 = vmatprep.mubr.bf16.mxu0 0
        %563 = vmatmul.mubr.bf16.gmra.mrb[0].mxu0 %v280
        %v564 = vpop.f32.mrb[0].mxu0
        %v565 = vadd.f32 0.0, %v564
        %v566 = vpop.f32.mrb[0].mxu0
        %v567 = vpop.f32.mrb[0].mxu0
        %v568 = vadd.f32 0.0, %v567
        %v569 = vpop.f32.mrb[0].mxu0
        %570 = vmatprep.mubr.bf16.mxu0 0
        %571 = vmatmul.mubr.bf16.gmra.mrb[0].mxu0 %v283
        %v572 = vpop.f32.mrb[0].mxu0
        %v573 = vadd.f32 0.0, %v572
        %v574 = vpop.f32.mrb[0].mxu0
        %v575 = vpop.f32.mrb[0].mxu0
        %v576 = vadd.f32 0.0, %v575
        %v577 = vpop.f32.mrb[0].mxu0
        %578 = vmatprep.mubr.bf16.mxu0 0
        %579 = vmatmul.mubr.bf16.gmra.mrb[0].mxu0 %v286
        %v580 = vpop.f32.mrb[0].mxu0
        %v581 = vadd.f32 0.0, %v580
        %v582 = vpop.f32.mrb[0].mxu0
        %v583 = vpop.f32.mrb[0].mxu0
        %v584 = vadd.f32 0.0, %v583
        %v585 = vpop.f32.mrb[0].mxu0
        %586 = vmatprep.mubr.bf16.mxu0 0
        %587 = vmatmul.mubr.bf16.gmra.mrb[0].mxu0 %v289
        %v588 = vpop.f32.mrb[0].mxu0
        %v589 = vadd.f32 0.0, %v588
        %v590 = vpop.f32.mrb[0].mxu0
        %v591 = vpop.f32.mrb[0].mxu0
        %v592 = vadd.f32 0.0, %v591
        %v593 = vpop.f32.mrb[0].mxu0
        %594 = vmatprep.mubr.bf16.mxu0 0
        %595 = vmatmul.mubr.bf16.gmra.mrb[0].mxu0 %v292
        %v596 = vpop.f32.mrb[0].mxu0
        %v597 = vadd.f32 0.0, %v596
        %v598 = vpop.f32.mrb[0].mxu0
        %v599 = vpop.f32.mrb[0].mxu0
        %v600 = vadd.f32 0.0, %v599
        %v601 = vpop.f32.mrb[0].mxu0
        %602 = vmatprep.mubr.bf16.mxu0 0
        %603 = vmatmul.mubr.bf16.gmra.mrb[0].mxu0 %v295
        %v604 = vpop.f32.mrb[0].mxu0
        %v605 = vadd.f32 0.0, %v604
        %v606 = vpop.f32.mrb[0].mxu0
        %v607 = vpop.f32.mrb[0].mxu0
        %v608 = vadd.f32 0.0, %v607
        %v609 = vpop.f32.mrb[0].mxu0
        %610 = vmatprep.mubr.bf16.mxu0 0
        %611 = vmatmul.mubr.bf16.gmra.mrb[0].mxu0 %v298
        %v612 = vpop.f32.mrb[0].mxu0
        %v613 = vadd.f32 0.0, %v612
        %v614 = vpop.f32.mrb[0].mxu0
        %v615 = vpop.f32.mrb[0].mxu0
        %v616 = vadd.f32 0.0, %v615
        %v617 = vpop.f32.mrb[0].mxu0
        %618 = vmatprep.mubr.bf16.mxu0 0
        %619 = vmatmul.mubr.bf16.gmra.mrb[0].mxu0 %v301
        %v620 = vpop.f32.mrb[0].mxu0
        %v621 = vadd.f32 0.0, %v620
        %v622 = vpop.f32.mrb[0].mxu0
        %v623 = vpop.f32.mrb[0].mxu0
        %v624 = vadd.f32 0.0, %v623
        %v625 = vpop.f32.mrb[0].mxu0
        %626 = vmatprep.mubr.bf16.mxu0 0
        %627 = vmatmul.mubr.bf16.gmra.mrb[0].mxu0 %v304
        %v628 = vpop.f32.mrb[0].mxu0
        %v629 = vadd.f32 0.0, %v628
        %v630 = vpop.f32.mrb[0].mxu0
        %v631 = vpop.f32.mrb[0].mxu0
        %v632 = vadd.f32 0.0, %v631
        %v633 = vpop.f32.mrb[0].mxu0
        %634 = vmatprep.mubr.bf16.mxu0 0
        %635 = vmatmul.mubr.bf16.gmra.mrb[0].mxu0 %v307
        %v636 = vpop.f32.mrb[0].mxu0
        %v637 = vadd.f32 0.0, %v636
        %v638 = vpop.f32.mrb[0].mxu0
        %v639 = vpop.f32.mrb[0].mxu0
        %v640 = vadd.f32 0.0, %v639
        %v641 = vpop.f32.mrb[0].mxu0
        %642 = vmatprep.mubr.bf16.mxu0 0
        %643 = vmatmul.mubr.bf16.gmra.mrb[0].mxu0 %v310
        %v644 = vpop.f32.mrb[0].mxu0
        %v645 = vadd.f32 0.0, %v644
        %v646 = vpop.f32.mrb[0].mxu0
        %v647 = vpop.f32.mrb[0].mxu0
        %v648 = vadd.f32 0.0, %v647
        %v649 = vpop.f32.mrb[0].mxu0
        %650 = vmatprep.mubr.bf16.mxu0 0
        %651 = vmatmul.mubr.bf16.gmra.mrb[0].mxu0 %v313
        %v652 = vpop.f32.mrb[0].mxu0
        %v653 = vadd.f32 0.0, %v652
        %v654 = vpop.f32.mrb[0].mxu0
        %v655 = vpop.f32.mrb[0].mxu0
        %v656 = vadd.f32 0.0, %v655
        %v657 = vpop.f32.mrb[0].mxu0
        %658 = vmatprep.mubr.bf16.mxu0 0
        %659 = vmatmul.mubr.bf16.gmra.mrb[0].mxu0 %v316
        %v660 = vpop.f32.mrb[0].mxu0
        %v661 = vadd.f32 0.0, %v660
        %v662 = vpop.f32.mrb[0].mxu0
        %v663 = vpop.f32.mrb[0].mxu0
        %v664 = vadd.f32 0.0, %v663
        %v665 = vpop.f32.mrb[0].mxu0
        %666 = vmatprep.mubr.bf16.mxu0 0
        %667 = vmatmul.mubr.bf16.gmra.mrb[0].mxu0 %v319
        %v668 = vpop.f32.mrb[0].mxu0
        %v669 = vadd.f32 0.0, %v668
        %v670 = vpop.f32.mrb[0].mxu0
        %v671 = vpop.f32.mrb[0].mxu0
        %v672 = vadd.f32 0.0, %v671
        %v673 = vpop.f32.mrb[0].mxu0
        %674 = vmatprep.mubr.bf16.mxu0 0
        %675 = vmatmul.mubr.bf16.gmra.mrb[0].mxu0 %v322
        %v676 = vpop.f32.mrb[0].mxu0
        %v677 = vadd.f32 0.0, %v676
        %v678 = vpop.f32.mrb[0].mxu0
        %v679 = vpop.f32.mrb[0].mxu0
        %v680 = vadd.f32 0.0, %v679
        %v681 = vpop.f32.mrb[0].mxu0
        %682 = vmatprep.mubr.bf16.mxu0 0
        %683 = vmatmul.mubr.bf16.gmra.mrb[0].mxu0 %v325
        %v684 = vpop.f32.mrb[0].mxu0
        %v685 = vadd.f32 0.0, %v684
        %v686 = vpop.f32.mrb[0].mxu0
        %v687 = vpop.f32.mrb[0].mxu0
        %v688 = vadd.f32 0.0, %v687
        %v689 = vpop.f32.mrb[0].mxu0
        %690 = vdwg.mxu0
        %v691 = vmax.f32 %v372, 0.0
        %v692 = vmax.f32 %v374, 0.0
        %v693 = vmax.f32 %v565, 0.0
        %v694 = vmax.f32 %v376, 0.0
        %v695 = vmax.f32 %v378, 0.0
        %v696 = vmax.f32 %v568, 0.0
        %v697 = vmax.f32 %v382, 0.0
        %v698 = vmax.f32 %v384, 0.0
        %v699 = vmax.f32 %v573, 0.0
        %v700 = vmax.f32 %v386, 0.0
        %v701 = vmax.f32 %v388, 0.0
        %v702 = vmax.f32 %v576, 0.0
        %v703 = vmax.f32 %v392, 0.0
        %v704 = vmax.f32 %v394, 0.0
        %v705 = vmax.f32 %v581, 0.0
        %v706 = vmax.f32 %v396, 0.0
        %v707 = vmax.f32 %v398, 0.0
        %v708 = vmax.f32 %v584, 0.0
        %v709 = vmax.f32 %v402, 0.0
        %v710 = vmax.f32 %v404, 0.0
        %v711 = vmax.f32 %v589, 0.0
        %v712 = vmax.f32 %v406, 0.0
        %v713 = vmax.f32 %v408, 0.0
        %v714 = vmax.f32 %v592, 0.0
        %v715 = vmax.f32 %v412, 0.0
        %v716 = vmax.f32 %v414, 0.0
        %v717 = vmax.f32 %v597, 0.0
        %v718 = vmax.f32 %v416, 0.0
        %v719 = vmax.f32 %v418, 0.0
        %v720 = vmax.f32 %v600, 0.0
        %v721 = vmax.f32 %v422, 0.0
        %v722 = vmax.f32 %v424, 0.0
        %v723 = vmax.f32 %v605, 0.0
        %v724 = vmax.f32 %v426, 0.0
        %v725 = vmax.f32 %v428, 0.0
        %v726 = vmax.f32 %v608, 0.0
        %v727 = vmax.f32 %v432, 0.0
        %v728 = vmax.f32 %v434, 0.0
        %v729 = vmax.f32 %v613, 0.0
        %v730 = vmax.f32 %v436, 0.0
        %v731 = vmax.f32 %v438, 0.0
        %v732 = vmax.f32 %v616, 0.0
        %v733 = vmax.f32 %v442, 0.0
        %v734 = vmax.f32 %v444, 0.0
        %v735 = vmax.f32 %v621, 0.0
        %v736 = vmax.f32 %v446, 0.0
        %v737 = vmax.f32 %v448, 0.0
        %v738 = vmax.f32 %v624, 0.0
        %v739 = vmax.f32 %v452, 0.0
        %v740 = vmax.f32 %v454, 0.0
        %v741 = vmax.f32 %v629, 0.0
        %v742 = vmax.f32 %v456, 0.0
        %v743 = vmax.f32 %v458, 0.0
        %v744 = vmax.f32 %v632, 0.0
        %v745 = vmax.f32 %v462, 0.0
        %v746 = vmax.f32 %v464, 0.0
        %v747 = vmax.f32 %v637, 0.0
        %v748 = vmax.f32 %v466, 0.0
        %v749 = vmax.f32 %v468, 0.0
        %v750 = vmax.f32 %v640, 0.0
        %v751 = vmax.f32 %v472, 0.0
        %v752 = vmax.f32 %v474, 0.0
        %v753 = vmax.f32 %v645, 0.0
        %v754 = vmax.f32 %v476, 0.0
        %v755 = vmax.f32 %v478, 0.0
        %v756 = vmax.f32 %v648, 0.0
        %v757 = vmax.f32 %v482, 0.0
        %v758 = vmax.f32 %v484, 0.0
        %v759 = vmax.f32 %v653, 0.0
        %v760 = vmax.f32 %v486, 0.0
        %v761 = vmax.f32 %v488, 0.0
        %v762 = vmax.f32 %v656, 0.0
        %v763 = vmax.f32 %v492, 0.0
        %v764 = vmax.f32 %v494, 0.0
        %v765 = vmax.f32 %v661, 0.0
        %v766 = vmax.f32 %v496, 0.0
        %v767 = vmax.f32 %v498, 0.0
        %v768 = vmax.f32 %v664, 0.0
        %v769 = vmax.f32 %v502, 0.0
        %v770 = vmax.f32 %v504, 0.0
        %v771 = vmax.f32 %v669, 0.0
        %v772 = vmax.f32 %v506, 0.0
        %v773 = vmax.f32 %v508, 0.0
        %v774 = vmax.f32 %v672, 0.0
        %v775 = vmax.f32 %v512, 0.0
        %v776 = vmax.f32 %v514, 0.0
        %v777 = vmax.f32 %v677, 0.0
        %v778 = vmax.f32 %v516, 0.0
        %v779 = vmax.f32 %v518, 0.0
        %v780 = vmax.f32 %v680, 0.0
        %v781 = vmax.f32 %v522, 0.0
        %v782 = vmax.f32 %v524, 0.0
        %v783 = vmax.f32 %v685, 0.0
        %v784 = vmax.f32 %v526, 0.0
        %v785 = vmax.f32 %v528, 0.0
        %v786 = vmax.f32 %v688, 0.0
        %787 = vst [vmem:[%s205] sm:$0xff] %v692
        %788 = vst [vmem:[%s205 + $0x8] sm:$0xff] %v693
        %789 = vst [vmem:[%s205 + $0x10] sm:$0xff] %v695
        %790 = vst [vmem:[%s205 + $0x18] sm:$0xff] %v696
        %791 = vst [vmem:[%s205 + $0x20] sm:$0xff] %v698
        %792 = vst [vmem:[%s205 + $0x28] sm:$0xff] %v699
        %793 = vst [vmem:[%s205 + $0x30] sm:$0xff] %v701
        %794 = vst [vmem:[%s205 + $0x38] sm:$0xff] %v702
        %795 = vst [vmem:[%s205 + $0x40] sm:$0xff] %v704
        %796 = vst [vmem:[%s205 + $0x48] sm:$0xff] %v705
        %797 = vst [vmem:[%s205 + $0x50] sm:$0xff] %v707
        %798 = vst [vmem:[%s205 + $0x58] sm:$0xff] %v708
        %799 = vst [vmem:[%s205 + $0x60] sm:$0xff] %v710
        %800 = vst [vmem:[%s205 + $0x68] sm:$0xff] %v711
        %801 = vst [vmem:[%s205 + $0x70] sm:$0xff] %v713
        %802 = vst [vmem:[%s205 + $0x78] sm:$0xff] %v714
        %803 = vst [vmem:[%s205 + $0x80] sm:$0xff] %v716
        %804 = vst [vmem:[%s205 + $0x88] sm:$0xff] %v717
        %805 = vst [vmem:[%s205 + $0x90] sm:$0xff] %v719
        %806 = vst [vmem:[%s205 + $0x98] sm:$0xff] %v720
        %807 = vst [vmem:[%s205 + $0xa0] sm:$0xff] %v722
        %808 = vst [vmem:[%s205 + $0xa8] sm:$0xff] %v723
        %809 = vst [vmem:[%s205 + $0xb0] sm:$0xff] %v725
        %810 = vst [vmem:[%s205 + $0xb8] sm:$0xff] %v726
        %811 = vst [vmem:[%s205 + $0xc0] sm:$0xff] %v728
        %812 = vst [vmem:[%s205 + $0xc8] sm:$0xff] %v729
        %813 = vst [vmem:[%s205 + $0xd0] sm:$0xff] %v731
        %814 = vst [vmem:[%s205 + $0xd8] sm:$0xff] %v732
        %815 = vst [vmem:[%s205 + $0xe0] sm:$0xff] %v734
        %816 = vst [vmem:[%s205 + $0xe8] sm:$0xff] %v735
        %817 = vst [vmem:[%s205 + $0xf0] sm:$0xff] %v737
        %818 = vst [vmem:[%s205 + $0xf8] sm:$0xff] %v738
        %819 = vst [vmem:[%s205 + $0x100] sm:$0xff] %v740
        %820 = vst [vmem:[%s205 + $0x108] sm:$0xff] %v741
        %821 = vst [vmem:[%s205 + $0x110] sm:$0xff] %v743
        %822 = vst [vmem:[%s205 + $0x118] sm:$0xff] %v744
        %823 = vst [vmem:[%s205 + $0x120] sm:$0xff] %v746
        %824 = vst [vmem:[%s205 + $0x128] sm:$0xff] %v747
        %825 = vst [vmem:[%s205 + $0x130] sm:$0xff] %v749
        %826 = vst [vmem:[%s205 + $0x138] sm:$0xff] %v750
        %827 = vst [vmem:[%s205 + $0x140] sm:$0xff] %v752
        %828 = vst [vmem:[%s205 + $0x148] sm:$0xff] %v753
        %829 = vst [vmem:[%s205 + $0x150] sm:$0xff] %v755
        %830 = vst [vmem:[%s205 + $0x158] sm:$0xff] %v756
        %831 = vst [vmem:[%s205 + $0x160] sm:$0xff] %v758
        %832 = vst [vmem:[%s205 + $0x168] sm:$0xff] %v759
        %833 = vst [vmem:[%s205 + $0x170] sm:$0xff] %v761
        %834 = vst [vmem:[%s205 + $0x178] sm:$0xff] %v762
        %835 = vst [vmem:[%s205 + $0x180] sm:$0xff] %v764
        %836 = vst [vmem:[%s205 + $0x188] sm:$0xff] %v765
        %837 = vst [vmem:[%s205 + $0x190] sm:$0xff] %v767
        %838 = vst [vmem:[%s205 + $0x198] sm:$0xff] %v768
        %839 = vst [vmem:[%s205 + $0x1a0] sm:$0xff] %v770
        %840 = vst [vmem:[%s205 + $0x1a8] sm:$0xff] %v771
        %841 = vst [vmem:[%s205 + $0x1b0] sm:$0xff] %v773
        %842 = vst [vmem:[%s205 + $0x1b8] sm:$0xff] %v774
        %843 = vst [vmem:[%s205 + $0x1c0] sm:$0xff] %v776
        %844 = vst [vmem:[%s205 + $0x1c8] sm:$0xff] %v777
        %845 = vst [vmem:[%s205 + $0x1d0] sm:$0xff] %v779
        %846 = vst [vmem:[%s205 + $0x1d8] sm:$0xff] %v780
        %847 = vst [vmem:[%s205 + $0x1e0] sm:$0xff] %v782
        %848 = vst [vmem:[%s205 + $0x1e8] sm:$0xff] %v783
        %849 = vst [vmem:[%s205 + $0x1f0] sm:$0xff] %v785
        %850 = vst [vmem:[%s205 + $0x1f8] sm:$0xff] %v786
        %851 = vst [vmem:[#allocation2] sm:$0xf] 0
        %852 = vst [vmem:[#allocation2 + $0x4] sm:$0xf] 0
        %853 = vst [vmem:[#allocation2 + $0x8] sm:$0x1] 0
        %s854 = scalar_lea.vmem [#allocation2], 204
        %855 = vst [vmem:[%s854] sm:$0xf] 0
        %856 = vst [vmem:[%s854 + $0x4] sm:$0xf] 0
        %857 = vst [vmem:[%s854 + $0x8] sm:$0x1] 0
        %vm858 = vcmask 1040384
        %vm859 = vsmask.f32 256
        %vm860 = vmand %vm858, %vm859
        %v861 = vld [vmem:[#allocation2] sm:$0x1]
        %v862 = vsel %vm860, 0, %v861
        %863 = vst [vmem:[#allocation2] sm:$0x1] %v862
        %v864 = vld [vmem:[#allocation2 + $0xc] sm:$0x1]
        %v865 = vsel %vm860, 0, %v864
        %866 = vst [vmem:[#allocation2 + $0xc] sm:$0x1] %v865
        %v867 = vld [vmem:[#allocation2 + $0x18] sm:$0x1]
        %v868 = vsel %vm860, 0, %v867
        %869 = vst [vmem:[#allocation2 + $0x18] sm:$0x1] %v868
        %v870 = vld [vmem:[#allocation2 + $0x24] sm:$0x1]
        %v871 = vsel %vm860, 0, %v870
        %872 = vst [vmem:[#allocation2 + $0x24] sm:$0x1] %v871
        %v873 = vld [vmem:[#allocation2 + $0x30] sm:$0x1]
        %v874 = vsel %vm860, 0, %v873
        %875 = vst [vmem:[#allocation2 + $0x30] sm:$0x1] %v874
        %v876 = vld [vmem:[#allocation2 + $0x3c] sm:$0x1]
        %v877 = vsel %vm860, 0, %v876
        %878 = vst [vmem:[#allocation2 + $0x3c] sm:$0x1] %v877
        %v879 = vld [vmem:[#allocation2 + $0x48] sm:$0x1]
        %v880 = vsel %vm860, 0, %v879
        %881 = vst [vmem:[#allocation2 + $0x48] sm:$0x1] %v880
        %v882 = vld [vmem:[#allocation2 + $0x54] sm:$0x1]
        %v883 = vsel %vm860, 0, %v882
        %884 = vst [vmem:[#allocation2 + $0x54] sm:$0x1] %v883
        %v885 = vld [vmem:[#allocation2 + $0x60] sm:$0x1]
        %v886 = vsel %vm860, 0, %v885
        %887 = vst [vmem:[#allocation2 + $0x60] sm:$0x1] %v886
        %v888 = vld [vmem:[#allocation2 + $0x6c] sm:$0x1]
        %v889 = vsel %vm860, 0, %v888
        %890 = vst [vmem:[#allocation2 + $0x6c] sm:$0x1] %v889
        %v891 = vld [vmem:[#allocation2 + $0x78] sm:$0x1]
        %v892 = vsel %vm860, 0, %v891
        %893 = vst [vmem:[#allocation2 + $0x78] sm:$0x1] %v892
        %v894 = vld [vmem:[#allocation2 + $0x84] sm:$0x1]
        %v895 = vsel %vm860, 0, %v894
        %896 = vst [vmem:[#allocation2 + $0x84] sm:$0x1] %v895
        %v897 = vld [vmem:[#allocation2 + $0x90] sm:$0x1]
        %v898 = vsel %vm860, 0, %v897
        %899 = vst [vmem:[#allocation2 + $0x90] sm:$0x1] %v898
        %v900 = vld [vmem:[#allocation2 + $0x9c] sm:$0x1]
        %v901 = vsel %vm860, 0, %v900
        %902 = vst [vmem:[#allocation2 + $0x9c] sm:$0x1] %v901
        %v903 = vld [vmem:[#allocation2 + $0xa8] sm:$0x1]
        %v904 = vsel %vm860, 0, %v903
        %905 = vst [vmem:[#allocation2 + $0xa8] sm:$0x1] %v904
        %v906 = vld [vmem:[#allocation2 + $0xb4] sm:$0x1]
        %v907 = vsel %vm860, 0, %v906
        %908 = vst [vmem:[#allocation2 + $0xb4] sm:$0x1] %v907
        %v909 = vld [vmem:[#allocation2 + $0xc0] sm:$0x1]
        %v910 = vsel %vm860, 0, %v909
        %911 = vst [vmem:[#allocation2 + $0xc0] sm:$0x1] %v910
        %v912 = vld [vmem:[#allocation2 + $0xcc] sm:$0x1]
        %v913 = vsel %vm860, 0, %v912
        %914 = vst [vmem:[#allocation2 + $0xcc] sm:$0x1] %v913
        %vm915 = vsmask.f32 7938
        %vm916 = vmand %vm858, %vm915
        %v917 = vld [vmem:[#allocation2 + $0x8] sm:$0x1]
        %v918 = vsel %vm916, 0, %v917
        %919 = vst [vmem:[#allocation2 + $0x8] sm:$0x1] %v918
        %v920 = vld [vmem:[#allocation2 + $0x14] sm:$0x1]
        %v921 = vsel %vm916, 0, %v920
        %922 = vst [vmem:[#allocation2 + $0x14] sm:$0x1] %v921
        %v923 = vld [vmem:[#allocation2 + $0x20] sm:$0x1]
        %v924 = vsel %vm916, 0, %v923
        %925 = vst [vmem:[#allocation2 + $0x20] sm:$0x1] %v924
        %v926 = vld [vmem:[#allocation2 + $0x2c] sm:$0x1]
        %v927 = vsel %vm916, 0, %v926
        %928 = vst [vmem:[#allocation2 + $0x2c] sm:$0x1] %v927
        %v929 = vld [vmem:[#allocation2 + $0x38] sm:$0x1]
        %v930 = vsel %vm916, 0, %v929
        %931 = vst [vmem:[#allocation2 + $0x38] sm:$0x1] %v930
        %v932 = vld [vmem:[#allocation2 + $0x44] sm:$0x1]
        %v933 = vsel %vm916, 0, %v932
        %934 = vst [vmem:[#allocation2 + $0x44] sm:$0x1] %v933
        %v935 = vld [vmem:[#allocation2 + $0x50] sm:$0x1]
        %v936 = vsel %vm916, 0, %v935
        %937 = vst [vmem:[#allocation2 + $0x50] sm:$0x1] %v936
        %v938 = vld [vmem:[#allocation2 + $0x5c] sm:$0x1]
        %v939 = vsel %vm916, 0, %v938
        %940 = vst [vmem:[#allocation2 + $0x5c] sm:$0x1] %v939
        %v941 = vld [vmem:[#allocation2 + $0x68] sm:$0x1]
        %v942 = vsel %vm916, 0, %v941
        %943 = vst [vmem:[#allocation2 + $0x68] sm:$0x1] %v942
        %v944 = vld [vmem:[#allocation2 + $0x74] sm:$0x1]
        %v945 = vsel %vm916, 0, %v944
        %946 = vst [vmem:[#allocation2 + $0x74] sm:$0x1] %v945
        %v947 = vld [vmem:[#allocation2 + $0x80] sm:$0x1]
        %v948 = vsel %vm916, 0, %v947
        %949 = vst [vmem:[#allocation2 + $0x80] sm:$0x1] %v948
        %v950 = vld [vmem:[#allocation2 + $0x8c] sm:$0x1]
        %v951 = vsel %vm916, 0, %v950
        %952 = vst [vmem:[#allocation2 + $0x8c] sm:$0x1] %v951
        %v953 = vld [vmem:[#allocation2 + $0x98] sm:$0x1]
        %v954 = vsel %vm916, 0, %v953
        %955 = vst [vmem:[#allocation2 + $0x98] sm:$0x1] %v954
        %v956 = vld [vmem:[#allocation2 + $0xa4] sm:$0x1]
        %v957 = vsel %vm916, 0, %v956
        %958 = vst [vmem:[#allocation2 + $0xa4] sm:$0x1] %v957
        %v959 = vld [vmem:[#allocation2 + $0xb0] sm:$0x1]
        %v960 = vsel %vm916, 0, %v959
        %961 = vst [vmem:[#allocation2 + $0xb0] sm:$0x1] %v960
        %v962 = vld [vmem:[#allocation2 + $0xbc] sm:$0x1]
        %v963 = vsel %vm916, 0, %v962
        %964 = vst [vmem:[#allocation2 + $0xbc] sm:$0x1] %v963
        %v965 = vld [vmem:[#allocation2 + $0xc8] sm:$0x1]
        %v966 = vsel %vm916, 0, %v965
        %967 = vst [vmem:[#allocation2 + $0xc8] sm:$0x1] %v966
        %v968 = vld [vmem:[#allocation2 + $0xd4] sm:$0x1]
        %v969 = vsel %vm916, 0, %v968
        %970 = vst [vmem:[#allocation2 + $0xd4] sm:$0x1] %v969
        %v971 = vpack.c.bf16 %v694, %v691
        %v972 = vpack.c.bf16 %v700, %v697
        %v973 = vpack.c.bf16 %v706, %v703
        %v974 = vpack.c.bf16 %v712, %v709
        %v975 = vpack.c.bf16 %v718, %v715
        %v976 = vpack.c.bf16 %v724, %v721
        %v977 = vpack.c.bf16 %v730, %v727
        %v978 = vpack.c.bf16 %v736, %v733
        %v979 = vpack.c.bf16 %v742, %v739
        %v980 = vpack.c.bf16 %v748, %v745
        %v981 = vpack.c.bf16 %v754, %v751
        %v982 = vpack.c.bf16 %v760, %v757
        %v983 = vpack.c.bf16 %v766, %v763
        %v984 = vpack.c.bf16 %v772, %v769
        %v985 = vpack.c.bf16 %v778, %v775
        %v986 = vpack.c.bf16 %v784, %v781
        %v1003 = vunpack.c.l.b16 %v971
        %v1004 = vunpack.c.h.b16 %v971
        %v1005 = vunpack.c.l.b16 %v972
        %v1006 = vunpack.c.h.b16 %v972
        %v1007 = vunpack.c.l.b16 %v973
        %v1008 = vunpack.c.h.b16 %v973
        %v1009 = vunpack.c.l.b16 %v974
        %v1010 = vunpack.c.h.b16 %v974
        %v1011 = vunpack.c.l.b16 %v975
        %v1012 = vunpack.c.h.b16 %v975
        %v1013 = vunpack.c.l.b16 %v976
        %v1014 = vunpack.c.h.b16 %v976
        %v1015 = vunpack.c.l.b16 %v977
        %v1016 = vunpack.c.h.b16 %v977
        %v1017 = vunpack.c.l.b16 %v978
        %v1018 = vunpack.c.h.b16 %v978
        %v1019 = vunpack.c.l.b16 %v979
        %v1020 = vunpack.c.h.b16 %v979
        %v1021 = vunpack.c.l.b16 %v980
        %v1022 = vunpack.c.h.b16 %v980
        %v1023 = vunpack.c.l.b16 %v981
        %v1024 = vunpack.c.h.b16 %v981
        %v1025 = vunpack.c.l.b16 %v982
        %v1026 = vunpack.c.h.b16 %v982
        %v1027 = vunpack.c.l.b16 %v983
        %v1028 = vunpack.c.h.b16 %v983
        %v1029 = vunpack.c.l.b16 %v984
        %v1030 = vunpack.c.h.b16 %v984
        %v1031 = vunpack.c.l.b16 %v985
        %v1032 = vunpack.c.h.b16 %v985
        %v1033 = vunpack.c.l.b16 %v986
        %v1034 = vunpack.c.h.b16 %v986
        %v1035 = vpack.c.b16 %v1003, %v1003
        %v1036 = vpack.c.b16 %v1004, %v1004
        %v1037 = vpack.c.b16 %v1005, %v1005
        %v1038 = vpack.c.b16 %v1006, %v1006
        %v1039 = vpack.c.b16 %v1007, %v1007
        %v1040 = vpack.c.b16 %v1008, %v1008
        %v1041 = vpack.c.b16 %v1009, %v1009
        %v1042 = vpack.c.b16 %v1010, %v1010
        %v1043 = vpack.c.b16 %v1011, %v1011
        %v1044 = vpack.c.b16 %v1012, %v1012
        %v1045 = vpack.c.b16 %v1013, %v1013
        %v1046 = vpack.c.b16 %v1014, %v1014
        %v1047 = vpack.c.b16 %v1015, %v1015
        %v1048 = vpack.c.b16 %v1016, %v1016
        %v1049 = vpack.c.b16 %v1017, %v1017
        %v1050 = vpack.c.b16 %v1018, %v1018
        %v1051 = vpack.c.b16 %v1019, %v1019
        %v1052 = vpack.c.b16 %v1020, %v1020
        %v1053 = vpack.c.b16 %v1021, %v1021
        %v1054 = vpack.c.b16 %v1022, %v1022
        %v1055 = vpack.c.b16 %v1023, %v1023
        %v1056 = vpack.c.b16 %v1024, %v1024
        %v1057 = vpack.c.b16 %v1025, %v1025
        %v1058 = vpack.c.b16 %v1026, %v1026
        %v1059 = vpack.c.b16 %v1027, %v1027
        %v1060 = vpack.c.b16 %v1028, %v1028
        %v1061 = vpack.c.b16 %v1029, %v1029
        %v1062 = vpack.c.b16 %v1030, %v1030
        %v1063 = vpack.c.b16 %v1031, %v1031
        %v1064 = vpack.c.b16 %v1032, %v1032
        %v1065 = vpack.c.b16 %v1033, %v1033
        %v1066 = vpack.c.b16 %v1034, %v1034
        %vm1067 = vsmask.f32 4368
        %vm1068 = vmor %vm859, %vm1067
        %v1070 = vshrl.u32 %v1035, 16
        %v1072 = vrot.slane %v1070, 7
        %v1073 = vshll.u32 %v1035, 16
        %v1075 = vor.u32 %v1072, %v1073
        %v1076 = vrot.slane %v1072, 4
        %v1078 = vshrl.u32 %v1036, 16
        %v1080 = vrot.slane %v1078, 7
        %v1081 = vshll.u32 %v1036, 16
        %v1083 = vor.u32 %v1080, %v1081
        %v1084 = vsel %vm1068, %v1076, %v1083
        %v1085 = vrot.slane %v1080, 4
        %v1087 = vshrl.u32 %v1037, 16
        %v1089 = vrot.slane %v1087, 7
        %v1090 = vshll.u32 %v1037, 16
        %v1092 = vor.u32 %v1089, %v1090
        %v1093 = vrot.slane %v1089, 4
        %v1095 = vshrl.u32 %v1038, 16
        %v1097 = vrot.slane %v1095, 7
        %v1098 = vshll.u32 %v1038, 16
        %v1100 = vor.u32 %v1097, %v1098
        %v1101 = vsel %vm1068, %v1093, %v1100
        %v1102 = vrot.slane %v1097, 4
        %v1104 = vshrl.u32 %v1039, 16
        %v1106 = vrot.slane %v1104, 7
        %v1107 = vshll.u32 %v1039, 16
        %v1109 = vor.u32 %v1106, %v1107
        %v1110 = vrot.slane %v1106, 4
        %v1112 = vshrl.u32 %v1040, 16
        %v1114 = vrot.slane %v1112, 7
        %v1115 = vshll.u32 %v1040, 16
        %v1117 = vor.u32 %v1114, %v1115
        %v1118 = vsel %vm1068, %v1110, %v1117
        %v1119 = vrot.slane %v1114, 4
        %v1121 = vshrl.u32 %v1041, 16
        %v1123 = vrot.slane %v1121, 7
        %v1124 = vshll.u32 %v1041, 16
        %v1126 = vor.u32 %v1123, %v1124
        %v1127 = vrot.slane %v1123, 4
        %v1129 = vshrl.u32 %v1042, 16
        %v1131 = vrot.slane %v1129, 7
        %v1132 = vshll.u32 %v1042, 16
        %v1134 = vor.u32 %v1131, %v1132
        %v1135 = vsel %vm1068, %v1127, %v1134
        %v1136 = vrot.slane %v1131, 4
        %v1138 = vshrl.u32 %v1043, 16
        %v1140 = vrot.slane %v1138, 7
        %v1141 = vshll.u32 %v1043, 16
        %v1143 = vor.u32 %v1140, %v1141
        %v1144 = vrot.slane %v1140, 4
        %v1146 = vshrl.u32 %v1044, 16
        %v1148 = vrot.slane %v1146, 7
        %v1149 = vshll.u32 %v1044, 16
        %v1151 = vor.u32 %v1148, %v1149
        %v1152 = vsel %vm1068, %v1144, %v1151
        %v1153 = vrot.slane %v1148, 4
        %v1155 = vshrl.u32 %v1045, 16
        %v1157 = vrot.slane %v1155, 7
        %v1158 = vshll.u32 %v1045, 16
        %v1160 = vor.u32 %v1157, %v1158
        %v1161 = vrot.slane %v1157, 4
        %v1163 = vshrl.u32 %v1046, 16
        %v1165 = vrot.slane %v1163, 7
        %v1166 = vshll.u32 %v1046, 16
        %v1168 = vor.u32 %v1165, %v1166
        %v1169 = vsel %vm1068, %v1161, %v1168
        %v1170 = vrot.slane %v1165, 4
        %v1172 = vshrl.u32 %v1047, 16
        %v1174 = vrot.slane %v1172, 7
        %v1175 = vshll.u32 %v1047, 16
        %v1177 = vor.u32 %v1174, %v1175
        %v1178 = vrot.slane %v1174, 4
        %v1180 = vshrl.u32 %v1048, 16
        %v1182 = vrot.slane %v1180, 7
        %v1183 = vshll.u32 %v1048, 16
        %v1185 = vor.u32 %v1182, %v1183
        %v1186 = vsel %vm1068, %v1178, %v1185
        %v1187 = vrot.slane %v1182, 4
        %v1189 = vshrl.u32 %v1049, 16
        %v1191 = vrot.slane %v1189, 7
        %v1192 = vshll.u32 %v1049, 16
        %v1194 = vor.u32 %v1191, %v1192
        %v1195 = vrot.slane %v1191, 4
        %v1197 = vshrl.u32 %v1050, 16
        %v1199 = vrot.slane %v1197, 7
        %v1200 = vshll.u32 %v1050, 16
        %v1202 = vor.u32 %v1199, %v1200
        %v1203 = vsel %vm1068, %v1195, %v1202
        %v1204 = vrot.slane %v1199, 4
        %v1206 = vshrl.u32 %v1051, 16
        %v1208 = vrot.slane %v1206, 7
        %v1209 = vshll.u32 %v1051, 16
        %v1211 = vor.u32 %v1208, %v1209
        %v1212 = vrot.slane %v1208, 4
        %v1214 = vshrl.u32 %v1052, 16
        %v1216 = vrot.slane %v1214, 7
        %v1217 = vshll.u32 %v1052, 16
        %v1219 = vor.u32 %v1216, %v1217
        %v1220 = vsel %vm1068, %v1212, %v1219
        %v1221 = vrot.slane %v1216, 4
        %v1223 = vshrl.u32 %v1053, 16
        %v1225 = vrot.slane %v1223, 7
        %v1226 = vshll.u32 %v1053, 16
        %v1228 = vor.u32 %v1225, %v1226
        %v1229 = vrot.slane %v1225, 4
        %v1231 = vshrl.u32 %v1054, 16
        %v1233 = vrot.slane %v1231, 7
        %v1234 = vshll.u32 %v1054, 16
        %v1236 = vor.u32 %v1233, %v1234
        %v1237 = vsel %vm1068, %v1229, %v1236
        %v1238 = vrot.slane %v1233, 4
        %v1240 = vshrl.u32 %v1055, 16
        %v1242 = vrot.slane %v1240, 7
        %v1243 = vshll.u32 %v1055, 16
        %v1245 = vor.u32 %v1242, %v1243
        %v1246 = vrot.slane %v1242, 4
        %v1248 = vshrl.u32 %v1056, 16
        %v1250 = vrot.slane %v1248, 7
        %v1251 = vshll.u32 %v1056, 16
        %v1253 = vor.u32 %v1250, %v1251
        %v1254 = vsel %vm1068, %v1246, %v1253
        %v1255 = vrot.slane %v1250, 4
        %v1257 = vshrl.u32 %v1057, 16
        %v1259 = vrot.slane %v1257, 7
        %v1260 = vshll.u32 %v1057, 16
        %v1262 = vor.u32 %v1259, %v1260
        %v1263 = vrot.slane %v1259, 4
        %v1265 = vshrl.u32 %v1058, 16
        %v1267 = vrot.slane %v1265, 7
        %v1268 = vshll.u32 %v1058, 16
        %v1270 = vor.u32 %v1267, %v1268
        %v1271 = vsel %vm1068, %v1263, %v1270
        %v1272 = vrot.slane %v1267, 4
        %v1274 = vshrl.u32 %v1059, 16
        %v1276 = vrot.slane %v1274, 7
        %v1277 = vshll.u32 %v1059, 16
        %v1279 = vor.u32 %v1276, %v1277
        %v1280 = vrot.slane %v1276, 4
        %v1282 = vshrl.u32 %v1060, 16
        %v1284 = vrot.slane %v1282, 7
        %v1285 = vshll.u32 %v1060, 16
        %v1287 = vor.u32 %v1284, %v1285
        %v1288 = vsel %vm1068, %v1280, %v1287
        %v1289 = vrot.slane %v1284, 4
        %v1291 = vshrl.u32 %v1061, 16
        %v1293 = vrot.slane %v1291, 7
        %v1294 = vshll.u32 %v1061, 16
        %v1296 = vor.u32 %v1293, %v1294
        %v1297 = vrot.slane %v1293, 4
        %v1299 = vshrl.u32 %v1062, 16
        %v1301 = vrot.slane %v1299, 7
        %v1302 = vshll.u32 %v1062, 16
        %v1304 = vor.u32 %v1301, %v1302
        %v1305 = vsel %vm1068, %v1297, %v1304
        %v1306 = vrot.slane %v1301, 4
        %v1308 = vshrl.u32 %v1063, 16
        %v1310 = vrot.slane %v1308, 7
        %v1311 = vshll.u32 %v1063, 16
        %v1313 = vor.u32 %v1310, %v1311
        %v1314 = vrot.slane %v1310, 4
        %v1316 = vshrl.u32 %v1064, 16
        %v1318 = vrot.slane %v1316, 7
        %v1319 = vshll.u32 %v1064, 16
        %v1321 = vor.u32 %v1318, %v1319
        %v1322 = vsel %vm1068, %v1314, %v1321
        %v1323 = vrot.slane %v1318, 4
        %v1325 = vshrl.u32 %v1065, 16
        %v1327 = vrot.slane %v1325, 7
        %v1328 = vshll.u32 %v1065, 16
        %v1330 = vor.u32 %v1327, %v1328
        %v1331 = vrot.slane %v1327, 4
        %v1333 = vshrl.u32 %v1066, 16
        %v1335 = vrot.slane %v1333, 7
        %v1336 = vshll.u32 %v1066, 16
        %v1338 = vor.u32 %v1335, %v1336
        %v1339 = vsel %vm1068, %v1331, %v1338
        %v1340 = vrot.slane %v1335, 4
        %s1389 = scalar_lea.vmem [#allocation2], 12
        %vm1390 = vcmask 1043456
        %vm1391 = vmand %vm1390, %vm915
        %v1392 = vld [vmem:[%s1389] sm:$0xf]
        %v1393 = vsel %vm1391, %v1075, %v1392
        %1394 = vst [vmem:[%s1389] sm:$0xf] %v1393
        %1395 = vst [vmem:[%s1389 + $0x4] sm:$0xf] %v1084
        %v1396 = vld [vmem:[%s1389 + $0x8] sm:$0x1]
        %v1397 = vsel %vm860, %v1085, %v1396
        %1398 = vst [vmem:[%s1389 + $0x8] sm:$0x1] %v1397
        %v1399 = vld [vmem:[%s1389 + $0xc] sm:$0xf]
        %v1400 = vsel %vm1391, %v1092, %v1399
        %1401 = vst [vmem:[%s1389 + $0xc] sm:$0xf] %v1400
        %1402 = vst [vmem:[%s1389 + $0x10] sm:$0xf] %v1101
        %v1403 = vld [vmem:[%s1389 + $0x14] sm:$0x1]
        %v1404 = vsel %vm860, %v1102, %v1403
        %1405 = vst [vmem:[%s1389 + $0x14] sm:$0x1] %v1404
        %v1406 = vld [vmem:[%s1389 + $0x18] sm:$0xf]
        %v1407 = vsel %vm1391, %v1109, %v1406
        %1408 = vst [vmem:[%s1389 + $0x18] sm:$0xf] %v1407
        %1409 = vst [vmem:[%s1389 + $0x1c] sm:$0xf] %v1118
        %v1410 = vld [vmem:[%s1389 + $0x20] sm:$0x1]
        %v1411 = vsel %vm860, %v1119, %v1410
        %1412 = vst [vmem:[%s1389 + $0x20] sm:$0x1] %v1411
        %v1413 = vld [vmem:[%s1389 + $0x24] sm:$0xf]
        %v1414 = vsel %vm1391, %v1126, %v1413
        %1415 = vst [vmem:[%s1389 + $0x24] sm:$0xf] %v1414
        %1416 = vst [vmem:[%s1389 + $0x28] sm:$0xf] %v1135
        %v1417 = vld [vmem:[%s1389 + $0x2c] sm:$0x1]
        %v1418 = vsel %vm860, %v1136, %v1417
        %1419 = vst [vmem:[%s1389 + $0x2c] sm:$0x1] %v1418
        %v1420 = vld [vmem:[%s1389 + $0x30] sm:$0xf]
        %v1421 = vsel %vm1391, %v1143, %v1420
        %1422 = vst [vmem:[%s1389 + $0x30] sm:$0xf] %v1421
        %1423 = vst [vmem:[%s1389 + $0x34] sm:$0xf] %v1152
        %v1424 = vld [vmem:[%s1389 + $0x38] sm:$0x1]
        %v1425 = vsel %vm860, %v1153, %v1424
        %1426 = vst [vmem:[%s1389 + $0x38] sm:$0x1] %v1425
        %v1427 = vld [vmem:[%s1389 + $0x3c] sm:$0xf]
        %v1428 = vsel %vm1391, %v1160, %v1427
        %1429 = vst [vmem:[%s1389 + $0x3c] sm:$0xf] %v1428
        %1430 = vst [vmem:[%s1389 + $0x40] sm:$0xf] %v1169
        %v1431 = vld [vmem:[%s1389 + $0x44] sm:$0x1]
        %v1432 = vsel %vm860, %v1170, %v1431
        %1433 = vst [vmem:[%s1389 + $0x44] sm:$0x1] %v1432
        %v1434 = vld [vmem:[%s1389 + $0x48] sm:$0xf]
        %v1435 = vsel %vm1391, %v1177, %v1434
        %1436 = vst [vmem:[%s1389 + $0x48] sm:$0xf] %v1435
        %1437 = vst [vmem:[%s1389 + $0x4c] sm:$0xf] %v1186
        %v1438 = vld [vmem:[%s1389 + $0x50] sm:$0x1]
        %v1439 = vsel %vm860, %v1187, %v1438
        %1440 = vst [vmem:[%s1389 + $0x50] sm:$0x1] %v1439
        %v1441 = vld [vmem:[%s1389 + $0x54] sm:$0xf]
        %v1442 = vsel %vm1391, %v1194, %v1441
        %1443 = vst [vmem:[%s1389 + $0x54] sm:$0xf] %v1442
        %1444 = vst [vmem:[%s1389 + $0x58] sm:$0xf] %v1203
        %v1445 = vld [vmem:[%s1389 + $0x5c] sm:$0x1]
        %v1446 = vsel %vm860, %v1204, %v1445
        %1447 = vst [vmem:[%s1389 + $0x5c] sm:$0x1] %v1446
        %v1448 = vld [vmem:[%s1389 + $0x60] sm:$0xf]
        %v1449 = vsel %vm1391, %v1211, %v1448
        %1450 = vst [vmem:[%s1389 + $0x60] sm:$0xf] %v1449
        %1451 = vst [vmem:[%s1389 + $0x64] sm:$0xf] %v1220
        %v1452 = vld [vmem:[%s1389 + $0x68] sm:$0x1]
        %v1453 = vsel %vm860, %v1221, %v1452
        %1454 = vst [vmem:[%s1389 + $0x68] sm:$0x1] %v1453
        %v1455 = vld [vmem:[%s1389 + $0x6c] sm:$0xf]
        %v1456 = vsel %vm1391, %v1228, %v1455
        %1457 = vst [vmem:[%s1389 + $0x6c] sm:$0xf] %v1456
        %1458 = vst [vmem:[%s1389 + $0x70] sm:$0xf] %v1237
        %v1459 = vld [vmem:[%s1389 + $0x74] sm:$0x1]
        %v1460 = vsel %vm860, %v1238, %v1459
        %1461 = vst [vmem:[%s1389 + $0x74] sm:$0x1] %v1460
        %v1462 = vld [vmem:[%s1389 + $0x78] sm:$0xf]
        %v1463 = vsel %vm1391, %v1245, %v1462
        %1464 = vst [vmem:[%s1389 + $0x78] sm:$0xf] %v1463
        %1465 = vst [vmem:[%s1389 + $0x7c] sm:$0xf] %v1254
        %v1466 = vld [vmem:[%s1389 + $0x80] sm:$0x1]
        %v1467 = vsel %vm860, %v1255, %v1466
        %1468 = vst [vmem:[%s1389 + $0x80] sm:$0x1] %v1467
        %v1469 = vld [vmem:[%s1389 + $0x84] sm:$0xf]
        %v1470 = vsel %vm1391, %v1262, %v1469
        %1471 = vst [vmem:[%s1389 + $0x84] sm:$0xf] %v1470
        %1472 = vst [vmem:[%s1389 + $0x88] sm:$0xf] %v1271
        %v1473 = vld [vmem:[%s1389 + $0x8c] sm:$0x1]
        %v1474 = vsel %vm860, %v1272, %v1473
        %1475 = vst [vmem:[%s1389 + $0x8c] sm:$0x1] %v1474
        %v1476 = vld [vmem:[%s1389 + $0x90] sm:$0xf]
        %v1477 = vsel %vm1391, %v1279, %v1476
        %1478 = vst [vmem:[%s1389 + $0x90] sm:$0xf] %v1477
        %1479 = vst [vmem:[%s1389 + $0x94] sm:$0xf] %v1288
        %v1480 = vld [vmem:[%s1389 + $0x98] sm:$0x1]
        %v1481 = vsel %vm860, %v1289, %v1480
        %1482 = vst [vmem:[%s1389 + $0x98] sm:$0x1] %v1481
        %v1483 = vld [vmem:[%s1389 + $0x9c] sm:$0xf]
        %v1484 = vsel %vm1391, %v1296, %v1483
        %1485 = vst [vmem:[%s1389 + $0x9c] sm:$0xf] %v1484
        %1486 = vst [vmem:[%s1389 + $0xa0] sm:$0xf] %v1305
        %v1487 = vld [vmem:[%s1389 + $0xa4] sm:$0x1]
        %v1488 = vsel %vm860, %v1306, %v1487
        %1489 = vst [vmem:[%s1389 + $0xa4] sm:$0x1] %v1488
        %v1490 = vld [vmem:[%s1389 + $0xa8] sm:$0xf]
        %v1491 = vsel %vm1391, %v1313, %v1490
        %1492 = vst [vmem:[%s1389 + $0xa8] sm:$0xf] %v1491
        %1493 = vst [vmem:[%s1389 + $0xac] sm:$0xf] %v1322
        %v1494 = vld [vmem:[%s1389 + $0xb0] sm:$0x1]
        %v1495 = vsel %vm860, %v1323, %v1494
        %1496 = vst [vmem:[%s1389 + $0xb0] sm:$0x1] %v1495
        %v1497 = vld [vmem:[%s1389 + $0xb4] sm:$0xf]
        %v1498 = vsel %vm1391, %v1330, %v1497
        %1499 = vst [vmem:[%s1389 + $0xb4] sm:$0xf] %v1498
        %1500 = vst [vmem:[%s1389 + $0xb8] sm:$0xf] %v1339
        %v1501 = vld [vmem:[%s1389 + $0xbc] sm:$0x1]
        %v1502 = vsel %vm860, %v1340, %v1501
        %1503 = vst [vmem:[%s1389 + $0xbc] sm:$0x1] %v1502
        %v1504 = vld [vmem:[#allocation2] sm:$0xf]
        %v1505 = vld [vmem:[#allocation2 + $0x4] sm:$0xf]
        %v1506 = vld [vmem:[#allocation2 + $0xc] sm:$0xf]
        %v1507 = vld [vmem:[#allocation2 + $0x10] sm:$0xf]
        %v1508 = vld [vmem:[#allocation2 + $0x18] sm:$0xf]
        %v1509 = vld [vmem:[#allocation2 + $0x1c] sm:$0xf]
        %v1510 = vld [vmem:[#allocation2 + $0x24] sm:$0xf]
        %v1511 = vld [vmem:[#allocation2 + $0x28] sm:$0xf]
        %v1512 = vld [vmem:[#allocation2 + $0x30] sm:$0xf]
        %v1513 = vld [vmem:[#allocation2 + $0x34] sm:$0xf]
        %v1514 = vld [vmem:[#allocation2 + $0x3c] sm:$0xf]
        %v1515 = vld [vmem:[#allocation2 + $0x40] sm:$0xf]
        %v1516 = vld [vmem:[#allocation2 + $0x48] sm:$0xf]
        %v1517 = vld [vmem:[#allocation2 + $0x4c] sm:$0xf]
        %v1518 = vld [vmem:[#allocation2 + $0x54] sm:$0xf]
        %v1519 = vld [vmem:[#allocation2 + $0x58] sm:$0xf]
        %v1520 = vld [vmem:[#allocation2 + $0x60] sm:$0xf]
        %v1521 = vld [vmem:[#allocation2 + $0x64] sm:$0xf]
        %v1522 = vld [vmem:[#allocation2 + $0x6c] sm:$0xf]
        %v1523 = vld [vmem:[#allocation2 + $0x70] sm:$0xf]
        %v1524 = vld [vmem:[#allocation2 + $0x78] sm:$0xf]
        %v1525 = vld [vmem:[#allocation2 + $0x7c] sm:$0xf]
        %v1526 = vld [vmem:[#allocation2 + $0x84] sm:$0xf]
        %v1527 = vld [vmem:[#allocation2 + $0x88] sm:$0xf]
        %v1528 = vld [vmem:[#allocation2 + $0x90] sm:$0xf]
        %v1529 = vld [vmem:[#allocation2 + $0x94] sm:$0xf]
        %v1530 = vld [vmem:[#allocation2 + $0x9c] sm:$0xf]
        %v1531 = vld [vmem:[#allocation2 + $0xa0] sm:$0xf]
        %v1532 = vld [vmem:[#allocation2 + $0xa8] sm:$0xf]
        %v1533 = vld [vmem:[#allocation2 + $0xac] sm:$0xf]
        %v1534 = vld [vmem:[#allocation2 + $0xb4] sm:$0xf]
        %v1535 = vld [vmem:[#allocation2 + $0xb8] sm:$0xf]
        %v1536 = vld [vmem:[#allocation2 + $0xc0] sm:$0xf]
        %v1537 = vld [vmem:[#allocation2 + $0xc4] sm:$0xf]
        %v1538 = vld [vmem:[#allocation2 + $0xcc] sm:$0xf]
        %v1539 = vld [vmem:[#allocation2 + $0xd0] sm:$0xf]
        %v1572 = vunpack.c.l.b16 %v1504
        %v1573 = vunpack.c.l.b16 %v1505
        %v1574 = vunpack.c.l.b16 %v1506
        %v1575 = vunpack.c.l.b16 %v1507
        %v1576 = vunpack.c.l.b16 %v1508
        %v1577 = vunpack.c.l.b16 %v1509
        %v1578 = vunpack.c.l.b16 %v1510
        %v1579 = vunpack.c.l.b16 %v1511
        %v1580 = vunpack.c.l.b16 %v1512
        %v1581 = vunpack.c.l.b16 %v1513
        %v1582 = vunpack.c.l.b16 %v1514
        %v1583 = vunpack.c.l.b16 %v1515
        %v1584 = vunpack.c.l.b16 %v1516
        %v1585 = vunpack.c.l.b16 %v1517
        %v1586 = vunpack.c.l.b16 %v1518
        %v1587 = vunpack.c.l.b16 %v1519
        %v1588 = vunpack.c.l.b16 %v1520
        %v1589 = vunpack.c.l.b16 %v1521
        %v1590 = vunpack.c.l.b16 %v1522
        %v1591 = vunpack.c.l.b16 %v1523
        %v1592 = vunpack.c.l.b16 %v1524
        %v1593 = vunpack.c.l.b16 %v1525
        %v1594 = vunpack.c.l.b16 %v1526
        %v1595 = vunpack.c.l.b16 %v1527
        %v1596 = vunpack.c.l.b16 %v1528
        %v1597 = vunpack.c.l.b16 %v1529
        %v1598 = vunpack.c.l.b16 %v1530
        %v1599 = vunpack.c.l.b16 %v1531
        %v1600 = vunpack.c.l.b16 %v1532
        %v1601 = vunpack.c.l.b16 %v1533
        %v1602 = vunpack.c.l.b16 %v1534
        %v1603 = vunpack.c.l.b16 %v1535
        %v1604 = vpack.c.b16 %v1573, %v1572
        %v1605 = vpack.c.b16 %v1575, %v1574
        %v1606 = vpack.c.b16 %v1577, %v1576
        %v1607 = vpack.c.b16 %v1579, %v1578
        %v1608 = vpack.c.b16 %v1581, %v1580
        %v1609 = vpack.c.b16 %v1583, %v1582
        %v1610 = vpack.c.b16 %v1585, %v1584
        %v1611 = vpack.c.b16 %v1587, %v1586
        %v1612 = vpack.c.b16 %v1589, %v1588
        %v1613 = vpack.c.b16 %v1591, %v1590
        %v1614 = vpack.c.b16 %v1593, %v1592
        %v1615 = vpack.c.b16 %v1595, %v1594
        %v1616 = vpack.c.b16 %v1597, %v1596
        %v1617 = vpack.c.b16 %v1599, %v1598
        %v1618 = vpack.c.b16 %v1601, %v1600
        %v1619 = vpack.c.b16 %v1603, %v1602
        %1636 = vst [vmem:[#allocation3] sm:$0xff] %v1604
        %1637 = vst [vmem:[#allocation3 + $0x48] sm:$0xff] %v1605
        %1638 = vst [vmem:[#allocation3 + $0x90] sm:$0xff] %v1606
        %1639 = vst [vmem:[#allocation3 + $0xd8] sm:$0xff] %v1607
        %1640 = vst [vmem:[#allocation3 + $0x120] sm:$0xff] %v1608
        %1641 = vst [vmem:[#allocation3 + $0x168] sm:$0xff] %v1609
        %1642 = vst [vmem:[#allocation3 + $0x1b0] sm:$0xff] %v1610
        %1643 = vst [vmem:[#allocation3 + $0x1f8] sm:$0xff] %v1611
        %1644 = vst [vmem:[#allocation3 + $0x240] sm:$0xff] %v1612
        %1645 = vst [vmem:[#allocation3 + $0x288] sm:$0xff] %v1613
        %1646 = vst [vmem:[#allocation3 + $0x2d0] sm:$0xff] %v1614
        %1647 = vst [vmem:[#allocation3 + $0x318] sm:$0xff] %v1615
        %1648 = vst [vmem:[#allocation3 + $0x360] sm:$0xff] %v1616
        %1649 = vst [vmem:[#allocation3 + $0x3a8] sm:$0xff] %v1617
        %1650 = vst [vmem:[#allocation3 + $0x3f0] sm:$0xff] %v1618
        %1651 = vst [vmem:[#allocation3 + $0x438] sm:$0xff] %v1619
        %v1654 = vunpack.c.l.b16 %v1536
        %v1655 = vunpack.c.l.b16 %v1537
        %v1656 = vpack.c.b16 %v1655, %v1654
        %1658 = vst [vmem:[#allocation3 + $0x18] sm:$0xff] %v1605
        %1659 = vst [vmem:[#allocation3 + $0x60] sm:$0xff] %v1606
        %1660 = vst [vmem:[#allocation3 + $0xa8] sm:$0xff] %v1607
        %1661 = vst [vmem:[#allocation3 + $0xf0] sm:$0xff] %v1608
        %1662 = vst [vmem:[#allocation3 + $0x138] sm:$0xff] %v1609
        %1663 = vst [vmem:[#allocation3 + $0x180] sm:$0xff] %v1610
        %1664 = vst [vmem:[#allocation3 + $0x1c8] sm:$0xff] %v1611
        %1665 = vst [vmem:[#allocation3 + $0x210] sm:$0xff] %v1612
        %1666 = vst [vmem:[#allocation3 + $0x258] sm:$0xff] %v1613
        %1667 = vst [vmem:[#allocation3 + $0x2a0] sm:$0xff] %v1614
        %1668 = vst [vmem:[#allocation3 + $0x2e8] sm:$0xff] %v1615
        %1669 = vst [vmem:[#allocation3 + $0x330] sm:$0xff] %v1616
        %1670 = vst [vmem:[#allocation3 + $0x378] sm:$0xff] %v1617
        %1671 = vst [vmem:[#allocation3 + $0x3c0] sm:$0xff] %v1618
        %1672 = vst [vmem:[#allocation3 + $0x408] sm:$0xff] %v1619
        %1673 = vst [vmem:[#allocation3 + $0x450] sm:$0xff] %v1656
        %v1676 = vunpack.c.l.b16 %v1538
        %v1677 = vunpack.c.l.b16 %v1539
        %v1678 = vpack.c.b16 %v1677, %v1676
        %1680 = vst [vmem:[#allocation3 + $0x30] sm:$0xff] %v1606
        %1681 = vst [vmem:[#allocation3 + $0x78] sm:$0xff] %v1607
        %1682 = vst [vmem:[#allocation3 + $0xc0] sm:$0xff] %v1608
        %1683 = vst [vmem:[#allocation3 + $0x108] sm:$0xff] %v1609
        %1684 = vst [vmem:[#allocation3 + $0x150] sm:$0xff] %v1610
        %1685 = vst [vmem:[#allocation3 + $0x198] sm:$0xff] %v1611
        %1686 = vst [vmem:[#allocation3 + $0x1e0] sm:$0xff] %v1612
        %1687 = vst [vmem:[#allocation3 + $0x228] sm:$0xff] %v1613
        %1688 = vst [vmem:[#allocation3 + $0x270] sm:$0xff] %v1614
        %1689 = vst [vmem:[#allocation3 + $0x2b8] sm:$0xff] %v1615
        %1690 = vst [vmem:[#allocation3 + $0x300] sm:$0xff] %v1616
        %1691 = vst [vmem:[#allocation3 + $0x348] sm:$0xff] %v1617
        %1692 = vst [vmem:[#allocation3 + $0x390] sm:$0xff] %v1618
        %1693 = vst [vmem:[#allocation3 + $0x3d8] sm:$0xff] %v1619
        %1694 = vst [vmem:[#allocation3 + $0x420] sm:$0xff] %v1656
        %1695 = vst [vmem:[#allocation3 + $0x468] sm:$0xff] %v1678
        %v1696 = vld [vmem:[#allocation2] sm:$0xf]
        %v1697 = vld [vmem:[#allocation2 + $0x4] sm:$0xf]
        %v1698 = vld [vmem:[#allocation2 + $0x8] sm:$0x1]
        %v1699 = vld [vmem:[#allocation2 + $0xc] sm:$0xf]
        %v1700 = vld [vmem:[#allocation2 + $0x10] sm:$0xf]
        %v1701 = vld [vmem:[#allocation2 + $0x14] sm:$0x1]
        %v1702 = vld [vmem:[#allocation2 + $0x18] sm:$0xf]
        %v1703 = vld [vmem:[#allocation2 + $0x1c] sm:$0xf]
        %v1704 = vld [vmem:[#allocation2 + $0x20] sm:$0x1]
        %v1705 = vld [vmem:[#allocation2 + $0x24] sm:$0xf]
        %v1706 = vld [vmem:[#allocation2 + $0x28] sm:$0xf]
        %v1707 = vld [vmem:[#allocation2 + $0x2c] sm:$0x1]
        %v1708 = vld [vmem:[#allocation2 + $0x30] sm:$0xf]
        %v1709 = vld [vmem:[#allocation2 + $0x34] sm:$0xf]
        %v1710 = vld [vmem:[#allocation2 + $0x38] sm:$0x1]
        %v1711 = vld [vmem:[#allocation2 + $0x3c] sm:$0xf]
        %v1712 = vld [vmem:[#allocation2 + $0x40] sm:$0xf]
        %v1713 = vld [vmem:[#allocation2 + $0x44] sm:$0x1]
        %v1714 = vld [vmem:[#allocation2 + $0x48] sm:$0xf]
        %v1715 = vld [vmem:[#allocation2 + $0x4c] sm:$0xf]
        %v1716 = vld [vmem:[#allocation2 + $0x50] sm:$0x1]
        %v1717 = vld [vmem:[#allocation2 + $0x54] sm:$0xf]
        %v1718 = vld [vmem:[#allocation2 + $0x58] sm:$0xf]
        %v1719 = vld [vmem:[#allocation2 + $0x5c] sm:$0x1]
        %v1720 = vld [vmem:[#allocation2 + $0x60] sm:$0xf]
        %v1721 = vld [vmem:[#allocation2 + $0x64] sm:$0xf]
        %v1722 = vld [vmem:[#allocation2 + $0x68] sm:$0x1]
        %v1723 = vld [vmem:[#allocation2 + $0x6c] sm:$0xf]
        %v1724 = vld [vmem:[#allocation2 + $0x70] sm:$0xf]
        %v1725 = vld [vmem:[#allocation2 + $0x74] sm:$0x1]
        %v1726 = vld [vmem:[#allocation2 + $0x78] sm:$0xf]
        %v1727 = vld [vmem:[#allocation2 + $0x7c] sm:$0xf]
        %v1728 = vld [vmem:[#allocation2 + $0x80] sm:$0x1]
        %v1729 = vld [vmem:[#allocation2 + $0x84] sm:$0xf]
        %v1730 = vld [vmem:[#allocation2 + $0x88] sm:$0xf]
        %v1731 = vld [vmem:[#allocation2 + $0x8c] sm:$0x1]
        %v1732 = vld [vmem:[#allocation2 + $0x90] sm:$0xf]
        %v1733 = vld [vmem:[#allocation2 + $0x94] sm:$0xf]
        %v1734 = vld [vmem:[#allocation2 + $0x98] sm:$0x1]
        %v1735 = vld [vmem:[#allocation2 + $0x9c] sm:$0xf]
        %v1736 = vld [vmem:[#allocation2 + $0xa0] sm:$0xf]
        %v1737 = vld [vmem:[#allocation2 + $0xa4] sm:$0x1]
        %v1738 = vld [vmem:[#allocation2 + $0xa8] sm:$0xf]
        %v1739 = vld [vmem:[#allocation2 + $0xac] sm:$0xf]
        %v1740 = vld [vmem:[#allocation2 + $0xb0] sm:$0x1]
        %v1741 = vld [vmem:[#allocation2 + $0xb4] sm:$0xf]
        %v1742 = vld [vmem:[#allocation2 + $0xb8] sm:$0xf]
        %v1743 = vld [vmem:[#allocation2 + $0xbc] sm:$0x1]
        %v1744 = vld [vmem:[#allocation2 + $0xc0] sm:$0xf]
        %v1745 = vld [vmem:[#allocation2 + $0xc4] sm:$0xf]
        %v1746 = vld [vmem:[#allocation2 + $0xc8] sm:$0x1]
        %v1747 = vld [vmem:[#allocation2 + $0xcc] sm:$0xf]
        %v1748 = vld [vmem:[#allocation2 + $0xd0] sm:$0xf]
        %v1749 = vld [vmem:[#allocation2 + $0xd4] sm:$0x1]
        %vm1750 = vsmask.f32 3328
        %vm1751 = vsmask.f32 7440
        %vm1752 = vmor %vm1750, %vm1751
        %v1754 = vshrl.u32 %v1696, 16
        %v1756 = vrot.slane %v1754, 4
        %v1757 = vshll.u32 %v1696, 16
        %v1759 = vrot.slane %v1757, 5
        %v1760 = vor.u32 %v1756, %v1759
        %v1761 = vrot.slane %v1760, 4
        %v1763 = vshll.u32 %v1697, 16
        %v1765 = vrot.slane %v1763, 5
        %v1766 = vsel %vm1752, %v1761, %v1765
        %v1767 = vshrl.u32 %v1697, 16
        %v1769 = vrot.slane %v1767, 4
        %v1770 = vor.u32 %v1769, %v1765
        %v1771 = vrot.slane %v1770, 4
        %v1773 = vshll.u32 %v1698, 16
        %v1775 = vrot.slane %v1773, 5
        %v1776 = vsel %vm1752, %v1771, %v1775
        %v1778 = vshrl.u32 %v1699, 16
        %v1780 = vrot.slane %v1778, 4
        %v1781 = vshll.u32 %v1699, 16
        %v1783 = vrot.slane %v1781, 5
        %v1784 = vor.u32 %v1780, %v1783
        %v1785 = vrot.slane %v1784, 4
        %v1787 = vshll.u32 %v1700, 16
        %v1789 = vrot.slane %v1787, 5
        %v1790 = vsel %vm1752, %v1785, %v1789
        %v1791 = vshrl.u32 %v1700, 16
        %v1793 = vrot.slane %v1791, 4
        %v1794 = vor.u32 %v1793, %v1789
        %v1795 = vrot.slane %v1794, 4
        %v1797 = vshll.u32 %v1701, 16
        %v1799 = vrot.slane %v1797, 5
        %v1800 = vsel %vm1752, %v1795, %v1799
        %v1802 = vshrl.u32 %v1702, 16
        %v1804 = vrot.slane %v1802, 4
        %v1805 = vshll.u32 %v1702, 16
        %v1807 = vrot.slane %v1805, 5
        %v1808 = vor.u32 %v1804, %v1807
        %v1809 = vrot.slane %v1808, 4
        %v1811 = vshll.u32 %v1703, 16
        %v1813 = vrot.slane %v1811, 5
        %v1814 = vsel %vm1752, %v1809, %v1813
        %v1815 = vshrl.u32 %v1703, 16
        %v1817 = vrot.slane %v1815, 4
        %v1818 = vor.u32 %v1817, %v1813
        %v1819 = vrot.slane %v1818, 4
        %v1821 = vshll.u32 %v1704, 16
        %v1823 = vrot.slane %v1821, 5
        %v1824 = vsel %vm1752, %v1819, %v1823
        %v1826 = vshrl.u32 %v1705, 16
        %v1828 = vrot.slane %v1826, 4
        %v1829 = vshll.u32 %v1705, 16
        %v1831 = vrot.slane %v1829, 5
        %v1832 = vor.u32 %v1828, %v1831
        %v1833 = vrot.slane %v1832, 4
        %v1835 = vshll.u32 %v1706, 16
        %v1837 = vrot.slane %v1835, 5
        %v1838 = vsel %vm1752, %v1833, %v1837
        %v1839 = vshrl.u32 %v1706, 16
        %v1841 = vrot.slane %v1839, 4
        %v1842 = vor.u32 %v1841, %v1837
        %v1843 = vrot.slane %v1842, 4
        %v1845 = vshll.u32 %v1707, 16
        %v1847 = vrot.slane %v1845, 5
        %v1848 = vsel %vm1752, %v1843, %v1847
        %v1850 = vshrl.u32 %v1708, 16
        %v1852 = vrot.slane %v1850, 4
        %v1853 = vshll.u32 %v1708, 16
        %v1855 = vrot.slane %v1853, 5
        %v1856 = vor.u32 %v1852, %v1855
        %v1857 = vrot.slane %v1856, 4
        %v1859 = vshll.u32 %v1709, 16
        %v1861 = vrot.slane %v1859, 5
        %v1862 = vsel %vm1752, %v1857, %v1861
        %v1863 = vshrl.u32 %v1709, 16
        %v1865 = vrot.slane %v1863, 4
        %v1866 = vor.u32 %v1865, %v1861
        %v1867 = vrot.slane %v1866, 4
        %v1869 = vshll.u32 %v1710, 16
        %v1871 = vrot.slane %v1869, 5
        %v1872 = vsel %vm1752, %v1867, %v1871
        %v1874 = vshrl.u32 %v1711, 16
        %v1876 = vrot.slane %v1874, 4
        %v1877 = vshll.u32 %v1711, 16
        %v1879 = vrot.slane %v1877, 5
        %v1880 = vor.u32 %v1876, %v1879
        %v1881 = vrot.slane %v1880, 4
        %v1883 = vshll.u32 %v1712, 16
        %v1885 = vrot.slane %v1883, 5
        %v1886 = vsel %vm1752, %v1881, %v1885
        %v1887 = vshrl.u32 %v1712, 16
        %v1889 = vrot.slane %v1887, 4
        %v1890 = vor.u32 %v1889, %v1885
        %v1891 = vrot.slane %v1890, 4
        %v1893 = vshll.u32 %v1713, 16
        %v1895 = vrot.slane %v1893, 5
        %v1896 = vsel %vm1752, %v1891, %v1895
        %v1898 = vshrl.u32 %v1714, 16
        %v1900 = vrot.slane %v1898, 4
        %v1901 = vshll.u32 %v1714, 16
        %v1903 = vrot.slane %v1901, 5
        %v1904 = vor.u32 %v1900, %v1903
        %v1905 = vrot.slane %v1904, 4
        %v1907 = vshll.u32 %v1715, 16
        %v1909 = vrot.slane %v1907, 5
        %v1910 = vsel %vm1752, %v1905, %v1909
        %v1911 = vshrl.u32 %v1715, 16
        %v1913 = vrot.slane %v1911, 4
        %v1914 = vor.u32 %v1913, %v1909
        %v1915 = vrot.slane %v1914, 4
        %v1917 = vshll.u32 %v1716, 16
        %v1919 = vrot.slane %v1917, 5
        %v1920 = vsel %vm1752, %v1915, %v1919
        %v1922 = vshrl.u32 %v1717, 16
        %v1924 = vrot.slane %v1922, 4
        %v1925 = vshll.u32 %v1717, 16
        %v1927 = vrot.slane %v1925, 5
        %v1928 = vor.u32 %v1924, %v1927
        %v1929 = vrot.slane %v1928, 4
        %v1931 = vshll.u32 %v1718, 16
        %v1933 = vrot.slane %v1931, 5
        %v1934 = vsel %vm1752, %v1929, %v1933
        %v1935 = vshrl.u32 %v1718, 16
        %v1937 = vrot.slane %v1935, 4
        %v1938 = vor.u32 %v1937, %v1933
        %v1939 = vrot.slane %v1938, 4
        %v1941 = vshll.u32 %v1719, 16
        %v1943 = vrot.slane %v1941, 5
        %v1944 = vsel %vm1752, %v1939, %v1943
        %v1946 = vshrl.u32 %v1720, 16
        %v1948 = vrot.slane %v1946, 4
        %v1949 = vshll.u32 %v1720, 16
        %v1951 = vrot.slane %v1949, 5
        %v1952 = vor.u32 %v1948, %v1951
        %v1953 = vrot.slane %v1952, 4
        %v1955 = vshll.u32 %v1721, 16
        %v1957 = vrot.slane %v1955, 5
        %v1958 = vsel %vm1752, %v1953, %v1957
        %v1959 = vshrl.u32 %v1721, 16
        %v1961 = vrot.slane %v1959, 4
        %v1962 = vor.u32 %v1961, %v1957
        %v1963 = vrot.slane %v1962, 4
        %v1965 = vshll.u32 %v1722, 16
        %v1967 = vrot.slane %v1965, 5
        %v1968 = vsel %vm1752, %v1963, %v1967
        %v1970 = vshrl.u32 %v1723, 16
        %v1972 = vrot.slane %v1970, 4
        %v1973 = vshll.u32 %v1723, 16
        %v1975 = vrot.slane %v1973, 5
        %v1976 = vor.u32 %v1972, %v1975
        %v1977 = vrot.slane %v1976, 4
        %v1979 = vshll.u32 %v1724, 16
        %v1981 = vrot.slane %v1979, 5
        %v1982 = vsel %vm1752, %v1977, %v1981
        %v1983 = vshrl.u32 %v1724, 16
        %v1985 = vrot.slane %v1983, 4
        %v1986 = vor.u32 %v1985, %v1981
        %v1987 = vrot.slane %v1986, 4
        %v1989 = vshll.u32 %v1725, 16
        %v1991 = vrot.slane %v1989, 5
        %v1992 = vsel %vm1752, %v1987, %v1991
        %v1994 = vshrl.u32 %v1726, 16
        %v1996 = vrot.slane %v1994, 4
        %v1997 = vshll.u32 %v1726, 16
        %v1999 = vrot.slane %v1997, 5
        %v2000 = vor.u32 %v1996, %v1999
        %v2001 = vrot.slane %v2000, 4
        %v2003 = vshll.u32 %v1727, 16
        %v2005 = vrot.slane %v2003, 5
        %v2006 = vsel %vm1752, %v2001, %v2005
        %v2007 = vshrl.u32 %v1727, 16
        %v2009 = vrot.slane %v2007, 4
        %v2010 = vor.u32 %v2009, %v2005
        %v2011 = vrot.slane %v2010, 4
        %v2013 = vshll.u32 %v1728, 16
        %v2015 = vrot.slane %v2013, 5
        %v2016 = vsel %vm1752, %v2011, %v2015
        %v2018 = vshrl.u32 %v1729, 16
        %v2020 = vrot.slane %v2018, 4
        %v2021 = vshll.u32 %v1729, 16
        %v2023 = vrot.slane %v2021, 5
        %v2024 = vor.u32 %v2020, %v2023
        %v2025 = vrot.slane %v2024, 4
        %v2027 = vshll.u32 %v1730, 16
        %v2029 = vrot.slane %v2027, 5
        %v2030 = vsel %vm1752, %v2025, %v2029
        %v2031 = vshrl.u32 %v1730, 16
        %v2033 = vrot.slane %v2031, 4
        %v2034 = vor.u32 %v2033, %v2029
        %v2035 = vrot.slane %v2034, 4
        %v2037 = vshll.u32 %v1731, 16
        %v2039 = vrot.slane %v2037, 5
        %v2040 = vsel %vm1752, %v2035, %v2039
        %v2042 = vshrl.u32 %v1732, 16
        %v2044 = vrot.slane %v2042, 4
        %v2045 = vshll.u32 %v1732, 16
        %v2047 = vrot.slane %v2045, 5
        %v2048 = vor.u32 %v2044, %v2047
        %v2049 = vrot.slane %v2048, 4
        %v2051 = vshll.u32 %v1733, 16
        %v2053 = vrot.slane %v2051, 5
        %v2054 = vsel %vm1752, %v2049, %v2053
        %v2055 = vshrl.u32 %v1733, 16
        %v2057 = vrot.slane %v2055, 4
        %v2058 = vor.u32 %v2057, %v2053
        %v2059 = vrot.slane %v2058, 4
        %v2061 = vshll.u32 %v1734, 16
        %v2063 = vrot.slane %v2061, 5
        %v2064 = vsel %vm1752, %v2059, %v2063
        %v2066 = vshrl.u32 %v1735, 16
        %v2068 = vrot.slane %v2066, 4
        %v2069 = vshll.u32 %v1735, 16
        %v2071 = vrot.slane %v2069, 5
        %v2072 = vor.u32 %v2068, %v2071
        %v2073 = vrot.slane %v2072, 4
        %v2075 = vshll.u32 %v1736, 16
        %v2077 = vrot.slane %v2075, 5
        %v2078 = vsel %vm1752, %v2073, %v2077
        %v2079 = vshrl.u32 %v1736, 16
        %v2081 = vrot.slane %v2079, 4
        %v2082 = vor.u32 %v2081, %v2077
        %v2083 = vrot.slane %v2082, 4
        %v2085 = vshll.u32 %v1737, 16
        %v2087 = vrot.slane %v2085, 5
        %v2088 = vsel %vm1752, %v2083, %v2087
        %v2090 = vshrl.u32 %v1738, 16
        %v2092 = vrot.slane %v2090, 4
        %v2093 = vshll.u32 %v1738, 16
        %v2095 = vrot.slane %v2093, 5
        %v2096 = vor.u32 %v2092, %v2095
        %v2097 = vrot.slane %v2096, 4
        %v2099 = vshll.u32 %v1739, 16
        %v2101 = vrot.slane %v2099, 5
        %v2102 = vsel %vm1752, %v2097, %v2101
        %v2103 = vshrl.u32 %v1739, 16
        %v2105 = vrot.slane %v2103, 4
        %v2106 = vor.u32 %v2105, %v2101
        %v2107 = vrot.slane %v2106, 4
        %v2109 = vshll.u32 %v1740, 16
        %v2111 = vrot.slane %v2109, 5
        %v2112 = vsel %vm1752, %v2107, %v2111
        %v2114 = vshrl.u32 %v1741, 16
        %v2116 = vrot.slane %v2114, 4
        %v2117 = vshll.u32 %v1741, 16
        %v2119 = vrot.slane %v2117, 5
        %v2120 = vor.u32 %v2116, %v2119
        %v2121 = vrot.slane %v2120, 4
        %v2123 = vshll.u32 %v1742, 16
        %v2125 = vrot.slane %v2123, 5
        %v2126 = vsel %vm1752, %v2121, %v2125
        %v2127 = vshrl.u32 %v1742, 16
        %v2129 = vrot.slane %v2127, 4
        %v2130 = vor.u32 %v2129, %v2125
        %v2131 = vrot.slane %v2130, 4
        %v2133 = vshll.u32 %v1743, 16
        %v2135 = vrot.slane %v2133, 5
        %v2136 = vsel %vm1752, %v2131, %v2135
        %v2137 = vunpack.c.l.b16 %v1766
        %v2138 = vunpack.c.l.b16 %v1776
        %v2139 = vunpack.c.l.b16 %v1790
        %v2140 = vunpack.c.l.b16 %v1800
        %v2141 = vunpack.c.l.b16 %v1814
        %v2142 = vunpack.c.l.b16 %v1824
        %v2143 = vunpack.c.l.b16 %v1838
        %v2144 = vunpack.c.l.b16 %v1848
        %v2145 = vunpack.c.l.b16 %v1862
        %v2146 = vunpack.c.l.b16 %v1872
        %v2147 = vunpack.c.l.b16 %v1886
        %v2148 = vunpack.c.l.b16 %v1896
        %v2149 = vunpack.c.l.b16 %v1910
        %v2150 = vunpack.c.l.b16 %v1920
        %v2151 = vunpack.c.l.b16 %v1934
        %v2152 = vunpack.c.l.b16 %v1944
        %v2153 = vunpack.c.l.b16 %v1958
        %v2154 = vunpack.c.l.b16 %v1968
        %v2155 = vunpack.c.l.b16 %v1982
        %v2156 = vunpack.c.l.b16 %v1992
        %v2157 = vunpack.c.l.b16 %v2006
        %v2158 = vunpack.c.l.b16 %v2016
        %v2159 = vunpack.c.l.b16 %v2030
        %v2160 = vunpack.c.l.b16 %v2040
        %v2161 = vunpack.c.l.b16 %v2054
        %v2162 = vunpack.c.l.b16 %v2064
        %v2163 = vunpack.c.l.b16 %v2078
        %v2164 = vunpack.c.l.b16 %v2088
        %v2165 = vunpack.c.l.b16 %v2102
        %v2166 = vunpack.c.l.b16 %v2112
        %v2167 = vunpack.c.l.b16 %v2126
        %v2168 = vunpack.c.l.b16 %v2136
        %v2169 = vpack.c.b16 %v2138, %v2137
        %v2170 = vpack.c.b16 %v2140, %v2139
        %v2171 = vpack.c.b16 %v2142, %v2141
        %v2172 = vpack.c.b16 %v2144, %v2143
        %v2173 = vpack.c.b16 %v2146, %v2145
        %v2174 = vpack.c.b16 %v2148, %v2147
        %v2175 = vpack.c.b16 %v2150, %v2149
        %v2176 = vpack.c.b16 %v2152, %v2151
        %v2177 = vpack.c.b16 %v2154, %v2153
        %v2178 = vpack.c.b16 %v2156, %v2155
        %v2179 = vpack.c.b16 %v2158, %v2157
        %v2180 = vpack.c.b16 %v2160, %v2159
        %v2181 = vpack.c.b16 %v2162, %v2161
        %v2182 = vpack.c.b16 %v2164, %v2163
        %v2183 = vpack.c.b16 %v2166, %v2165
        %v2184 = vpack.c.b16 %v2168, %v2167
        %2201 = vst [vmem:[#allocation3 + $0x8] sm:$0xff] %v2169
        %2202 = vst [vmem:[#allocation3 + $0x50] sm:$0xff] %v2170
        %2203 = vst [vmem:[#allocation3 + $0x98] sm:$0xff] %v2171
        %2204 = vst [vmem:[#allocation3 + $0xe0] sm:$0xff] %v2172
        %2205 = vst [vmem:[#allocation3 + $0x128] sm:$0xff] %v2173
        %2206 = vst [vmem:[#allocation3 + $0x170] sm:$0xff] %v2174
        %2207 = vst [vmem:[#allocation3 + $0x1b8] sm:$0xff] %v2175
        %2208 = vst [vmem:[#allocation3 + $0x200] sm:$0xff] %v2176
        %2209 = vst [vmem:[#allocation3 + $0x248] sm:$0xff] %v2177
        %2210 = vst [vmem:[#allocation3 + $0x290] sm:$0xff] %v2178
        %2211 = vst [vmem:[#allocation3 + $0x2d8] sm:$0xff] %v2179
        %2212 = vst [vmem:[#allocation3 + $0x320] sm:$0xff] %v2180
        %2213 = vst [vmem:[#allocation3 + $0x368] sm:$0xff] %v2181
        %2214 = vst [vmem:[#allocation3 + $0x3b0] sm:$0xff] %v2182
        %2215 = vst [vmem:[#allocation3 + $0x3f8] sm:$0xff] %v2183
        %2216 = vst [vmem:[#allocation3 + $0x440] sm:$0xff] %v2184
        %v2218 = vshrl.u32 %v1744, 16
        %v2220 = vrot.slane %v2218, 4
        %v2221 = vshll.u32 %v1744, 16
        %v2223 = vrot.slane %v2221, 5
        %v2224 = vor.u32 %v2220, %v2223
        %v2225 = vrot.slane %v2224, 4
        %v2227 = vshll.u32 %v1745, 16
        %v2229 = vrot.slane %v2227, 5
        %v2230 = vsel %vm1752, %v2225, %v2229
        %v2231 = vshrl.u32 %v1745, 16
        %v2233 = vrot.slane %v2231, 4
        %v2234 = vor.u32 %v2233, %v2229
        %v2235 = vrot.slane %v2234, 4
        %v2237 = vshll.u32 %v1746, 16
        %v2239 = vrot.slane %v2237, 5
        %v2240 = vsel %vm1752, %v2235, %v2239
        %v2241 = vunpack.c.l.b16 %v2230
        %v2242 = vunpack.c.l.b16 %v2240
        %v2243 = vpack.c.b16 %v2242, %v2241
        %2245 = vst [vmem:[#allocation3 + $0x20] sm:$0xff] %v2170
        %2246 = vst [vmem:[#allocation3 + $0x68] sm:$0xff] %v2171
        %2247 = vst [vmem:[#allocation3 + $0xb0] sm:$0xff] %v2172
        %2248 = vst [vmem:[#allocation3 + $0xf8] sm:$0xff] %v2173
        %2249 = vst [vmem:[#allocation3 + $0x140] sm:$0xff] %v2174
        %2250 = vst [vmem:[#allocation3 + $0x188] sm:$0xff] %v2175
        %2251 = vst [vmem:[#allocation3 + $0x1d0] sm:$0xff] %v2176
        %2252 = vst [vmem:[#allocation3 + $0x218] sm:$0xff] %v2177
        %2253 = vst [vmem:[#allocation3 + $0x260] sm:$0xff] %v2178
        %2254 = vst [vmem:[#allocation3 + $0x2a8] sm:$0xff] %v2179
        %2255 = vst [vmem:[#allocation3 + $0x2f0] sm:$0xff] %v2180
        %2256 = vst [vmem:[#allocation3 + $0x338] sm:$0xff] %v2181
        %2257 = vst [vmem:[#allocation3 + $0x380] sm:$0xff] %v2182
        %2258 = vst [vmem:[#allocation3 + $0x3c8] sm:$0xff] %v2183
        %2259 = vst [vmem:[#allocation3 + $0x410] sm:$0xff] %v2184
        %2260 = vst [vmem:[#allocation3 + $0x458] sm:$0xff] %v2243
        %v2262 = vshrl.u32 %v1747, 16
        %v2264 = vrot.slane %v2262, 4
        %v2265 = vshll.u32 %v1747, 16
        %v2267 = vrot.slane %v2265, 5
        %v2268 = vor.u32 %v2264, %v2267
        %v2269 = vrot.slane %v2268, 4
        %v2271 = vshll.u32 %v1748, 16
        %v2273 = vrot.slane %v2271, 5
        %v2274 = vsel %vm1752, %v2269, %v2273
        %v2275 = vshrl.u32 %v1748, 16
        %v2277 = vrot.slane %v2275, 4
        %v2278 = vor.u32 %v2277, %v2273
        %v2279 = vrot.slane %v2278, 4
        %v2281 = vshll.u32 %v1749, 16
        %v2283 = vrot.slane %v2281, 5
        %v2284 = vsel %vm1752, %v2279, %v2283
        %v2285 = vunpack.c.l.b16 %v2274
        %v2286 = vunpack.c.l.b16 %v2284
        %v2287 = vpack.c.b16 %v2286, %v2285
        %2289 = vst [vmem:[#allocation3 + $0x38] sm:$0xff] %v2171
        %2290 = vst [vmem:[#allocation3 + $0x80] sm:$0xff] %v2172
        %2291 = vst [vmem:[#allocation3 + $0xc8] sm:$0xff] %v2173
        %2292 = vst [vmem:[#allocation3 + $0x110] sm:$0xff] %v2174
        %2293 = vst [vmem:[#allocation3 + $0x158] sm:$0xff] %v2175
        %2294 = vst [vmem:[#allocation3 + $0x1a0] sm:$0xff] %v2176
        %2295 = vst [vmem:[#allocation3 + $0x1e8] sm:$0xff] %v2177
        %2296 = vst [vmem:[#allocation3 + $0x230] sm:$0xff] %v2178
        %2297 = vst [vmem:[#allocation3 + $0x278] sm:$0xff] %v2179
        %2298 = vst [vmem:[#allocation3 + $0x2c0] sm:$0xff] %v2180
        %2299 = vst [vmem:[#allocation3 + $0x308] sm:$0xff] %v2181
        %2300 = vst [vmem:[#allocation3 + $0x350] sm:$0xff] %v2182
        %2301 = vst [vmem:[#allocation3 + $0x398] sm:$0xff] %v2183
        %2302 = vst [vmem:[#allocation3 + $0x3e0] sm:$0xff] %v2184
        %2303 = vst [vmem:[#allocation3 + $0x428] sm:$0xff] %v2243
        %2304 = vst [vmem:[#allocation3 + $0x470] sm:$0xff] %v2287
        %v2305 = vld [vmem:[#allocation2] sm:$0xe]
        %v2306 = vld [vmem:[#allocation2 + $0x4] sm:$0xf]
        %v2307 = vld [vmem:[#allocation2 + $0x8] sm:$0x1]
        %v2308 = vld [vmem:[#allocation2 + $0xc] sm:$0xe]
        %v2309 = vld [vmem:[#allocation2 + $0x10] sm:$0xf]
        %v2310 = vld [vmem:[#allocation2 + $0x14] sm:$0x1]
        %v2311 = vld [vmem:[#allocation2 + $0x18] sm:$0xe]
        %v2312 = vld [vmem:[#allocation2 + $0x1c] sm:$0xf]
        %v2313 = vld [vmem:[#allocation2 + $0x20] sm:$0x1]
        %v2314 = vld [vmem:[#allocation2 + $0x24] sm:$0xe]
        %v2315 = vld [vmem:[#allocation2 + $0x28] sm:$0xf]
        %v2316 = vld [vmem:[#allocation2 + $0x2c] sm:$0x1]
        %v2317 = vld [vmem:[#allocation2 + $0x30] sm:$0xe]
        %v2318 = vld [vmem:[#allocation2 + $0x34] sm:$0xf]
        %v2319 = vld [vmem:[#allocation2 + $0x38] sm:$0x1]
        %v2320 = vld [vmem:[#allocation2 + $0x3c] sm:$0xe]
        %v2321 = vld [vmem:[#allocation2 + $0x40] sm:$0xf]
        %v2322 = vld [vmem:[#allocation2 + $0x44] sm:$0x1]
        %v2323 = vld [vmem:[#allocation2 + $0x48] sm:$0xe]
        %v2324 = vld [vmem:[#allocation2 + $0x4c] sm:$0xf]
        %v2325 = vld [vmem:[#allocation2 + $0x50] sm:$0x1]
        %v2326 = vld [vmem:[#allocation2 + $0x54] sm:$0xe]
        %v2327 = vld [vmem:[#allocation2 + $0x58] sm:$0xf]
        %v2328 = vld [vmem:[#allocation2 + $0x5c] sm:$0x1]
        %v2329 = vld [vmem:[#allocation2 + $0x60] sm:$0xe]
        %v2330 = vld [vmem:[#allocation2 + $0x64] sm:$0xf]
        %v2331 = vld [vmem:[#allocation2 + $0x68] sm:$0x1]
        %v2332 = vld [vmem:[#allocation2 + $0x6c] sm:$0xe]
        %v2333 = vld [vmem:[#allocation2 + $0x70] sm:$0xf]
        %v2334 = vld [vmem:[#allocation2 + $0x74] sm:$0x1]
        %v2335 = vld [vmem:[#allocation2 + $0x78] sm:$0xe]
        %v2336 = vld [vmem:[#allocation2 + $0x7c] sm:$0xf]
        %v2337 = vld [vmem:[#allocation2 + $0x80] sm:$0x1]
        %v2338 = vld [vmem:[#allocation2 + $0x84] sm:$0xe]
        %v2339 = vld [vmem:[#allocation2 + $0x88] sm:$0xf]
        %v2340 = vld [vmem:[#allocation2 + $0x8c] sm:$0x1]
        %v2341 = vld [vmem:[#allocation2 + $0x90] sm:$0xe]
        %v2342 = vld [vmem:[#allocation2 + $0x94] sm:$0xf]
        %v2343 = vld [vmem:[#allocation2 + $0x98] sm:$0x1]
        %v2344 = vld [vmem:[#allocation2 + $0x9c] sm:$0xe]
        %v2345 = vld [vmem:[#allocation2 + $0xa0] sm:$0xf]
        %v2346 = vld [vmem:[#allocation2 + $0xa4] sm:$0x1]
        %v2347 = vld [vmem:[#allocation2 + $0xa8] sm:$0xe]
        %v2348 = vld [vmem:[#allocation2 + $0xac] sm:$0xf]
        %v2349 = vld [vmem:[#allocation2 + $0xb0] sm:$0x1]
        %v2350 = vld [vmem:[#allocation2 + $0xb4] sm:$0xe]
        %v2351 = vld [vmem:[#allocation2 + $0xb8] sm:$0xf]
        %v2352 = vld [vmem:[#allocation2 + $0xbc] sm:$0x1]
        %v2353 = vld [vmem:[#allocation2 + $0xc0] sm:$0xe]
        %v2354 = vld [vmem:[#allocation2 + $0xc4] sm:$0xf]
        %v2355 = vld [vmem:[#allocation2 + $0xc8] sm:$0x1]
        %v2356 = vld [vmem:[#allocation2 + $0xcc] sm:$0xe]
        %v2357 = vld [vmem:[#allocation2 + $0xd0] sm:$0xf]
        %v2358 = vld [vmem:[#allocation2 + $0xd4] sm:$0x1]
        %vm2407 = vcmask 1042432
        %vm2408 = vcmask 1046532
        %vm2409 = vmor %vm2407, %vm2408
        %v2410 = vrot.slane %v2305, 5
        %v2411 = vrot.slane %v2410, 4
        %v2412 = vrot.slane %v2306, 5
        %v2413 = vsel %vm2409, %v2411, %v2412
        %v2414 = vrot.slane %v2412, 4
        %v2415 = vrot.slane %v2307, 5
        %v2416 = vsel %vm2409, %v2414, %v2415
        %v2417 = vrot.slane %v2308, 5
        %v2418 = vrot.slane %v2417, 4
        %v2419 = vrot.slane %v2309, 5
        %v2420 = vsel %vm2409, %v2418, %v2419
        %v2421 = vrot.slane %v2419, 4
        %v2422 = vrot.slane %v2310, 5
        %v2423 = vsel %vm2409, %v2421, %v2422
        %v2424 = vrot.slane %v2311, 5
        %v2425 = vrot.slane %v2424, 4
        %v2426 = vrot.slane %v2312, 5
        %v2427 = vsel %vm2409, %v2425, %v2426
        %v2428 = vrot.slane %v2426, 4
        %v2429 = vrot.slane %v2313, 5
        %v2430 = vsel %vm2409, %v2428, %v2429
        %v2431 = vrot.slane %v2314, 5
        %v2432 = vrot.slane %v2431, 4
        %v2433 = vrot.slane %v2315, 5
        %v2434 = vsel %vm2409, %v2432, %v2433
        %v2435 = vrot.slane %v2433, 4
        %v2436 = vrot.slane %v2316, 5
        %v2437 = vsel %vm2409, %v2435, %v2436
        %v2438 = vrot.slane %v2317, 5
        %v2439 = vrot.slane %v2438, 4
        %v2440 = vrot.slane %v2318, 5
        %v2441 = vsel %vm2409, %v2439, %v2440
        %v2442 = vrot.slane %v2440, 4
        %v2443 = vrot.slane %v2319, 5
        %v2444 = vsel %vm2409, %v2442, %v2443
        %v2445 = vrot.slane %v2320, 5
        %v2446 = vrot.slane %v2445, 4
        %v2447 = vrot.slane %v2321, 5
        %v2448 = vsel %vm2409, %v2446, %v2447
        %v2449 = vrot.slane %v2447, 4
        %v2450 = vrot.slane %v2322, 5
        %v2451 = vsel %vm2409, %v2449, %v2450
        %v2452 = vrot.slane %v2323, 5
        %v2453 = vrot.slane %v2452, 4
        %v2454 = vrot.slane %v2324, 5
        %v2455 = vsel %vm2409, %v2453, %v2454
        %v2456 = vrot.slane %v2454, 4
        %v2457 = vrot.slane %v2325, 5
        %v2458 = vsel %vm2409, %v2456, %v2457
        %v2459 = vrot.slane %v2326, 5
        %v2460 = vrot.slane %v2459, 4
        %v2461 = vrot.slane %v2327, 5
        %v2462 = vsel %vm2409, %v2460, %v2461
        %v2463 = vrot.slane %v2461, 4
        %v2464 = vrot.slane %v2328, 5
        %v2465 = vsel %vm2409, %v2463, %v2464
        %v2466 = vrot.slane %v2329, 5
        %v2467 = vrot.slane %v2466, 4
        %v2468 = vrot.slane %v2330, 5
        %v2469 = vsel %vm2409, %v2467, %v2468
        %v2470 = vrot.slane %v2468, 4
        %v2471 = vrot.slane %v2331, 5
        %v2472 = vsel %vm2409, %v2470, %v2471
        %v2473 = vrot.slane %v2332, 5
        %v2474 = vrot.slane %v2473, 4
        %v2475 = vrot.slane %v2333, 5
        %v2476 = vsel %vm2409, %v2474, %v2475
        %v2477 = vrot.slane %v2475, 4
        %v2478 = vrot.slane %v2334, 5
        %v2479 = vsel %vm2409, %v2477, %v2478
        %v2480 = vrot.slane %v2335, 5
        %v2481 = vrot.slane %v2480, 4
        %v2482 = vrot.slane %v2336, 5
        %v2483 = vsel %vm2409, %v2481, %v2482
        %v2484 = vrot.slane %v2482, 4
        %v2485 = vrot.slane %v2337, 5
        %v2486 = vsel %vm2409, %v2484, %v2485
        %v2487 = vrot.slane %v2338, 5
        %v2488 = vrot.slane %v2487, 4
        %v2489 = vrot.slane %v2339, 5
        %v2490 = vsel %vm2409, %v2488, %v2489
        %v2491 = vrot.slane %v2489, 4
        %v2492 = vrot.slane %v2340, 5
        %v2493 = vsel %vm2409, %v2491, %v2492
        %v2494 = vrot.slane %v2341, 5
        %v2495 = vrot.slane %v2494, 4
        %v2496 = vrot.slane %v2342, 5
        %v2497 = vsel %vm2409, %v2495, %v2496
        %v2498 = vrot.slane %v2496, 4
        %v2499 = vrot.slane %v2343, 5
        %v2500 = vsel %vm2409, %v2498, %v2499
        %v2501 = vrot.slane %v2344, 5
        %v2502 = vrot.slane %v2501, 4
        %v2503 = vrot.slane %v2345, 5
        %v2504 = vsel %vm2409, %v2502, %v2503
        %v2505 = vrot.slane %v2503, 4
        %v2506 = vrot.slane %v2346, 5
        %v2507 = vsel %vm2409, %v2505, %v2506
        %v2508 = vrot.slane %v2347, 5
        %v2509 = vrot.slane %v2508, 4
        %v2510 = vrot.slane %v2348, 5
        %v2511 = vsel %vm2409, %v2509, %v2510
        %v2512 = vrot.slane %v2510, 4
        %v2513 = vrot.slane %v2349, 5
        %v2514 = vsel %vm2409, %v2512, %v2513
        %v2515 = vrot.slane %v2350, 5
        %v2516 = vrot.slane %v2515, 4
        %v2517 = vrot.slane %v2351, 5
        %v2518 = vsel %vm2409, %v2516, %v2517
        %v2519 = vrot.slane %v2517, 4
        %v2520 = vrot.slane %v2352, 5
        %v2521 = vsel %vm2409, %v2519, %v2520
        %v2522 = vunpack.c.l.b16 %v2413
        %v2523 = vunpack.c.l.b16 %v2416
        %v2524 = vunpack.c.l.b16 %v2420
        %v2525 = vunpack.c.l.b16 %v2423
        %v2526 = vunpack.c.l.b16 %v2427
        %v2527 = vunpack.c.l.b16 %v2430
        %v2528 = vunpack.c.l.b16 %v2434
        %v2529 = vunpack.c.l.b16 %v2437
        %v2530 = vunpack.c.l.b16 %v2441
        %v2531 = vunpack.c.l.b16 %v2444
        %v2532 = vunpack.c.l.b16 %v2448
        %v2533 = vunpack.c.l.b16 %v2451
        %v2534 = vunpack.c.l.b16 %v2455
        %v2535 = vunpack.c.l.b16 %v2458
        %v2536 = vunpack.c.l.b16 %v2462
        %v2537 = vunpack.c.l.b16 %v2465
        %v2538 = vunpack.c.l.b16 %v2469
        %v2539 = vunpack.c.l.b16 %v2472
        %v2540 = vunpack.c.l.b16 %v2476
        %v2541 = vunpack.c.l.b16 %v2479
        %v2542 = vunpack.c.l.b16 %v2483
        %v2543 = vunpack.c.l.b16 %v2486
        %v2544 = vunpack.c.l.b16 %v2490
        %v2545 = vunpack.c.l.b16 %v2493
        %v2546 = vunpack.c.l.b16 %v2497
        %v2547 = vunpack.c.l.b16 %v2500
        %v2548 = vunpack.c.l.b16 %v2504
        %v2549 = vunpack.c.l.b16 %v2507
        %v2550 = vunpack.c.l.b16 %v2511
        %v2551 = vunpack.c.l.b16 %v2514
        %v2552 = vunpack.c.l.b16 %v2518
        %v2553 = vunpack.c.l.b16 %v2521
        %v2554 = vpack.c.b16 %v2523, %v2522
        %v2555 = vpack.c.b16 %v2525, %v2524
        %v2556 = vpack.c.b16 %v2527, %v2526
        %v2557 = vpack.c.b16 %v2529, %v2528
        %v2558 = vpack.c.b16 %v2531, %v2530
        %v2559 = vpack.c.b16 %v2533, %v2532
        %v2560 = vpack.c.b16 %v2535, %v2534
        %v2561 = vpack.c.b16 %v2537, %v2536
        %v2562 = vpack.c.b16 %v2539, %v2538
        %v2563 = vpack.c.b16 %v2541, %v2540
        %v2564 = vpack.c.b16 %v2543, %v2542
        %v2565 = vpack.c.b16 %v2545, %v2544
        %v2566 = vpack.c.b16 %v2547, %v2546
        %v2567 = vpack.c.b16 %v2549, %v2548
        %v2568 = vpack.c.b16 %v2551, %v2550
        %v2569 = vpack.c.b16 %v2553, %v2552
        %2586 = vst [vmem:[#allocation3 + $0x10] sm:$0xff] %v2554
        %2587 = vst [vmem:[#allocation3 + $0x58] sm:$0xff] %v2555
        %2588 = vst [vmem:[#allocation3 + $0xa0] sm:$0xff] %v2556
        %2589 = vst [vmem:[#allocation3 + $0xe8] sm:$0xff] %v2557
        %2590 = vst [vmem:[#allocation3 + $0x130] sm:$0xff] %v2558
        %2591 = vst [vmem:[#allocation3 + $0x178] sm:$0xff] %v2559
        %2592 = vst [vmem:[#allocation3 + $0x1c0] sm:$0xff] %v2560
        %2593 = vst [vmem:[#allocation3 + $0x208] sm:$0xff] %v2561
        %2594 = vst [vmem:[#allocation3 + $0x250] sm:$0xff] %v2562
        %2595 = vst [vmem:[#allocation3 + $0x298] sm:$0xff] %v2563
        %2596 = vst [vmem:[#allocation3 + $0x2e0] sm:$0xff] %v2564
        %2597 = vst [vmem:[#allocation3 + $0x328] sm:$0xff] %v2565
        %2598 = vst [vmem:[#allocation3 + $0x370] sm:$0xff] %v2566
        %2599 = vst [vmem:[#allocation3 + $0x3b8] sm:$0xff] %v2567
        %2600 = vst [vmem:[#allocation3 + $0x400] sm:$0xff] %v2568
        %2601 = vst [vmem:[#allocation3 + $0x448] sm:$0xff] %v2569
        %v2605 = vrot.slane %v2353, 5
        %v2606 = vrot.slane %v2605, 4
        %v2607 = vrot.slane %v2354, 5
        %v2608 = vsel %vm2409, %v2606, %v2607
        %v2609 = vrot.slane %v2607, 4
        %v2610 = vrot.slane %v2355, 5
        %v2611 = vsel %vm2409, %v2609, %v2610
        %v2612 = vunpack.c.l.b16 %v2608
        %v2613 = vunpack.c.l.b16 %v2611
        %v2614 = vpack.c.b16 %v2613, %v2612
        %2616 = vst [vmem:[#allocation3 + $0x28] sm:$0xff] %v2555
        %2617 = vst [vmem:[#allocation3 + $0x70] sm:$0xff] %v2556
        %2618 = vst [vmem:[#allocation3 + $0xb8] sm:$0xff] %v2557
        %2619 = vst [vmem:[#allocation3 + $0x100] sm:$0xff] %v2558
        %2620 = vst [vmem:[#allocation3 + $0x148] sm:$0xff] %v2559
        %2621 = vst [vmem:[#allocation3 + $0x190] sm:$0xff] %v2560
        %2622 = vst [vmem:[#allocation3 + $0x1d8] sm:$0xff] %v2561
        %2623 = vst [vmem:[#allocation3 + $0x220] sm:$0xff] %v2562
        %2624 = vst [vmem:[#allocation3 + $0x268] sm:$0xff] %v2563
        %2625 = vst [vmem:[#allocation3 + $0x2b0] sm:$0xff] %v2564
        %2626 = vst [vmem:[#allocation3 + $0x2f8] sm:$0xff] %v2565
        %2627 = vst [vmem:[#allocation3 + $0x340] sm:$0xff] %v2566
        %2628 = vst [vmem:[#allocation3 + $0x388] sm:$0xff] %v2567
        %2629 = vst [vmem:[#allocation3 + $0x3d0] sm:$0xff] %v2568
        %2630 = vst [vmem:[#allocation3 + $0x418] sm:$0xff] %v2569
        %2631 = vst [vmem:[#allocation3 + $0x460] sm:$0xff] %v2614
        %v2635 = vrot.slane %v2356, 5
        %v2636 = vrot.slane %v2635, 4
        %v2637 = vrot.slane %v2357, 5
        %v2638 = vsel %vm2409, %v2636, %v2637
        %v2639 = vrot.slane %v2637, 4
        %v2640 = vrot.slane %v2358, 5
        %v2641 = vsel %vm2409, %v2639, %v2640
        %v2642 = vunpack.c.l.b16 %v2638
        %v2643 = vunpack.c.l.b16 %v2641
        %v2644 = vpack.c.b16 %v2643, %v2642
        %2646 = vst [vmem:[#allocation3 + $0x40] sm:$0xff] %v2556
        %2647 = vst [vmem:[#allocation3 + $0x88] sm:$0xff] %v2557
        %2648 = vst [vmem:[#allocation3 + $0xd0] sm:$0xff] %v2558
        %2649 = vst [vmem:[#allocation3 + $0x118] sm:$0xff] %v2559
        %2650 = vst [vmem:[#allocation3 + $0x160] sm:$0xff] %v2560
        %2651 = vst [vmem:[#allocation3 + $0x1a8] sm:$0xff] %v2561
        %2652 = vst [vmem:[#allocation3 + $0x1f0] sm:$0xff] %v2562
        %2653 = vst [vmem:[#allocation3 + $0x238] sm:$0xff] %v2563
        %2654 = vst [vmem:[#allocation3 + $0x280] sm:$0xff] %v2564
        %2655 = vst [vmem:[#allocation3 + $0x2c8] sm:$0xff] %v2565
        %2656 = vst [vmem:[#allocation3 + $0x310] sm:$0xff] %v2566
        %2657 = vst [vmem:[#allocation3 + $0x358] sm:$0xff] %v2567
        %2658 = vst [vmem:[#allocation3 + $0x3a0] sm:$0xff] %v2568
        %2659 = vst [vmem:[#allocation3 + $0x3e8] sm:$0xff] %v2569
        %2660 = vst [vmem:[#allocation3 + $0x430] sm:$0xff] %v2614
        %2661 = vst [vmem:[#allocation3 + $0x478] sm:$0xff] %v2644
        %v2662 = vld [vmem:[#allocation3] sm:$0xff]
        %v2663 = vld [vmem:[#allocation3 + $0x8] sm:$0xff]
        %v2664 = vld [vmem:[#allocation3 + $0x10] sm:$0xff]
        %v2665 = vld [vmem:[#allocation3 + $0x18] sm:$0xff]
        %v2666 = vld [vmem:[#allocation3 + $0x20] sm:$0xff]
        %v2667 = vld [vmem:[#allocation3 + $0x28] sm:$0xff]
        %v2668 = vld [vmem:[#allocation3 + $0x30] sm:$0xff]
        %v2669 = vld [vmem:[#allocation3 + $0x38] sm:$0xff]
        %v2670 = vld [vmem:[#allocation3 + $0x40] sm:$0xff]
        %v2671 = vld [vmem:[#allocation3 + $0x48] sm:$0xff]
        %v2672 = vld [vmem:[#allocation3 + $0x50] sm:$0xff]
        %v2673 = vld [vmem:[#allocation3 + $0x58] sm:$0xff]
        %v2674 = vld [vmem:[#allocation3 + $0x60] sm:$0xff]
        %v2675 = vld [vmem:[#allocation3 + $0x68] sm:$0xff]
        %v2676 = vld [vmem:[#allocation3 + $0x70] sm:$0xff]
        %v2677 = vld [vmem:[#allocation3 + $0x78] sm:$0xff]
        %v2678 = vld [vmem:[#allocation3 + $0x80] sm:$0xff]
        %v2679 = vld [vmem:[#allocation3 + $0x88] sm:$0xff]
        %v2680 = vld [vmem:[#allocation3 + $0x90] sm:$0xff]
        %v2681 = vld [vmem:[#allocation3 + $0x98] sm:$0xff]
        %v2682 = vld [vmem:[#allocation3 + $0xa0] sm:$0xff]
        %v2683 = vld [vmem:[#allocation3 + $0xa8] sm:$0xff]
        %v2684 = vld [vmem:[#allocation3 + $0xb0] sm:$0xff]
        %v2685 = vld [vmem:[#allocation3 + $0xb8] sm:$0xff]
        %v2686 = vld [vmem:[#allocation3 + $0xc0] sm:$0xff]
        %v2687 = vld [vmem:[#allocation3 + $0xc8] sm:$0xff]
        %v2688 = vld [vmem:[#allocation3 + $0xd0] sm:$0xff]
        %v2689 = vld [vmem:[#allocation3 + $0xd8] sm:$0xff]
        %v2690 = vld [vmem:[#allocation3 + $0xe0] sm:$0xff]
        %v2691 = vld [vmem:[#allocation3 + $0xe8] sm:$0xff]
        %v2692 = vld [vmem:[#allocation3 + $0xf0] sm:$0xff]
        %v2693 = vld [vmem:[#allocation3 + $0xf8] sm:$0xff]
        %v2694 = vld [vmem:[#allocation3 + $0x100] sm:$0xff]
        %v2695 = vld [vmem:[#allocation3 + $0x108] sm:$0xff]
        %v2696 = vld [vmem:[#allocation3 + $0x110] sm:$0xff]
        %v2697 = vld [vmem:[#allocation3 + $0x118] sm:$0xff]
        %v2698 = vld [vmem:[#allocation3 + $0x120] sm:$0xff]
        %v2699 = vld [vmem:[#allocation3 + $0x128] sm:$0xff]
        %v2700 = vld [vmem:[#allocation3 + $0x130] sm:$0xff]
        %v2701 = vld [vmem:[#allocation3 + $0x138] sm:$0xff]
        %v2702 = vld [vmem:[#allocation3 + $0x140] sm:$0xff]
        %v2703 = vld [vmem:[#allocation3 + $0x148] sm:$0xff]
        %v2704 = vld [vmem:[#allocation3 + $0x150] sm:$0xff]
        %v2705 = vld [vmem:[#allocation3 + $0x158] sm:$0xff]
        %v2706 = vld [vmem:[#allocation3 + $0x160] sm:$0xff]
        %v2707 = vld [vmem:[#allocation3 + $0x168] sm:$0xff]
        %v2708 = vld [vmem:[#allocation3 + $0x170] sm:$0xff]
        %v2709 = vld [vmem:[#allocation3 + $0x178] sm:$0xff]
        %v2710 = vld [vmem:[#allocation3 + $0x180] sm:$0xff]
        %v2711 = vld [vmem:[#allocation3 + $0x188] sm:$0xff]
        %v2712 = vld [vmem:[#allocation3 + $0x190] sm:$0xff]
        %v2713 = vld [vmem:[#allocation3 + $0x198] sm:$0xff]
        %v2714 = vld [vmem:[#allocation3 + $0x1a0] sm:$0xff]
        %v2715 = vld [vmem:[#allocation3 + $0x1a8] sm:$0xff]
        %v2716 = vld [vmem:[#allocation3 + $0x1b0] sm:$0xff]
        %v2717 = vld [vmem:[#allocation3 + $0x1b8] sm:$0xff]
        %v2718 = vld [vmem:[#allocation3 + $0x1c0] sm:$0xff]
        %v2719 = vld [vmem:[#allocation3 + $0x1c8] sm:$0xff]
        %v2720 = vld [vmem:[#allocation3 + $0x1d0] sm:$0xff]
        %v2721 = vld [vmem:[#allocation3 + $0x1d8] sm:$0xff]
        %v2722 = vld [vmem:[#allocation3 + $0x1e0] sm:$0xff]
        %v2723 = vld [vmem:[#allocation3 + $0x1e8] sm:$0xff]
        %v2724 = vld [vmem:[#allocation3 + $0x1f0] sm:$0xff]
        %v2725 = vld [vmem:[#allocation3 + $0x1f8] sm:$0xff]
        %v2726 = vld [vmem:[#allocation3 + $0x200] sm:$0xff]
        %v2727 = vld [vmem:[#allocation3 + $0x208] sm:$0xff]
        %v2728 = vld [vmem:[#allocation3 + $0x210] sm:$0xff]
        %v2729 = vld [vmem:[#allocation3 + $0x218] sm:$0xff]
        %v2730 = vld [vmem:[#allocation3 + $0x220] sm:$0xff]
        %v2731 = vld [vmem:[#allocation3 + $0x228] sm:$0xff]
        %v2732 = vld [vmem:[#allocation3 + $0x230] sm:$0xff]
        %v2733 = vld [vmem:[#allocation3 + $0x238] sm:$0xff]
        %v2734 = vld [vmem:[#allocation3 + $0x240] sm:$0xff]
        %v2735 = vld [vmem:[#allocation3 + $0x248] sm:$0xff]
        %v2736 = vld [vmem:[#allocation3 + $0x250] sm:$0xff]
        %v2737 = vld [vmem:[#allocation3 + $0x258] sm:$0xff]
        %v2738 = vld [vmem:[#allocation3 + $0x260] sm:$0xff]
        %v2739 = vld [vmem:[#allocation3 + $0x268] sm:$0xff]
        %v2740 = vld [vmem:[#allocation3 + $0x270] sm:$0xff]
        %v2741 = vld [vmem:[#allocation3 + $0x278] sm:$0xff]
        %v2742 = vld [vmem:[#allocation3 + $0x280] sm:$0xff]
        %v2743 = vld [vmem:[#allocation3 + $0x288] sm:$0xff]
        %v2744 = vld [vmem:[#allocation3 + $0x290] sm:$0xff]
        %v2745 = vld [vmem:[#allocation3 + $0x298] sm:$0xff]
        %v2746 = vld [vmem:[#allocation3 + $0x2a0] sm:$0xff]
        %v2747 = vld [vmem:[#allocation3 + $0x2a8] sm:$0xff]
        %v2748 = vld [vmem:[#allocation3 + $0x2b0] sm:$0xff]
        %v2749 = vld [vmem:[#allocation3 + $0x2b8] sm:$0xff]
        %v2750 = vld [vmem:[#allocation3 + $0x2c0] sm:$0xff]
        %v2751 = vld [vmem:[#allocation3 + $0x2c8] sm:$0xff]
        %v2752 = vld [vmem:[#allocation3 + $0x2d0] sm:$0xff]
        %v2753 = vld [vmem:[#allocation3 + $0x2d8] sm:$0xff]
        %v2754 = vld [vmem:[#allocation3 + $0x2e0] sm:$0xff]
        %v2755 = vld [vmem:[#allocation3 + $0x2e8] sm:$0xff]
        %v2756 = vld [vmem:[#allocation3 + $0x2f0] sm:$0xff]
        %v2757 = vld [vmem:[#allocation3 + $0x2f8] sm:$0xff]
        %v2758 = vld [vmem:[#allocation3 + $0x300] sm:$0xff]
        %v2759 = vld [vmem:[#allocation3 + $0x308] sm:$0xff]
        %v2760 = vld [vmem:[#allocation3 + $0x310] sm:$0xff]
        %v2761 = vld [vmem:[#allocation3 + $0x318] sm:$0xff]
        %v2762 = vld [vmem:[#allocation3 + $0x320] sm:$0xff]
        %v2763 = vld [vmem:[#allocation3 + $0x328] sm:$0xff]
        %v2764 = vld [vmem:[#allocation3 + $0x330] sm:$0xff]
        %v2765 = vld [vmem:[#allocation3 + $0x338] sm:$0xff]
        %v2766 = vld [vmem:[#allocation3 + $0x340] sm:$0xff]
        %v2767 = vld [vmem:[#allocation3 + $0x348] sm:$0xff]
        %v2768 = vld [vmem:[#allocation3 + $0x350] sm:$0xff]
        %v2769 = vld [vmem:[#allocation3 + $0x358] sm:$0xff]
        %v2770 = vld [vmem:[#allocation3 + $0x360] sm:$0xff]
        %v2771 = vld [vmem:[#allocation3 + $0x368] sm:$0xff]
        %v2772 = vld [vmem:[#allocation3 + $0x370] sm:$0xff]
        %v2773 = vld [vmem:[#allocation3 + $0x378] sm:$0xff]
        %v2774 = vld [vmem:[#allocation3 + $0x380] sm:$0xff]
        %v2775 = vld [vmem:[#allocation3 + $0x388] sm:$0xff]
        %v2776 = vld [vmem:[#allocation3 + $0x390] sm:$0xff]
        %v2777 = vld [vmem:[#allocation3 + $0x398] sm:$0xff]
        %v2778 = vld [vmem:[#allocation3 + $0x3a0] sm:$0xff]
        %v2779 = vld [vmem:[#allocation3 + $0x3a8] sm:$0xff]
        %v2780 = vld [vmem:[#allocation3 + $0x3b0] sm:$0xff]
        %v2781 = vld [vmem:[#allocation3 + $0x3b8] sm:$0xff]
        %v2782 = vld [vmem:[#allocation3 + $0x3c0] sm:$0xff]
        %v2783 = vld [vmem:[#allocation3 + $0x3c8] sm:$0xff]
        %v2784 = vld [vmem:[#allocation3 + $0x3d0] sm:$0xff]
        %v2785 = vld [vmem:[#allocation3 + $0x3d8] sm:$0xff]
        %v2786 = vld [vmem:[#allocation3 + $0x3e0] sm:$0xff]
        %v2787 = vld [vmem:[#allocation3 + $0x3e8] sm:$0xff]
        %v2788 = vld [vmem:[#allocation3 + $0x3f0] sm:$0xff]
        %v2789 = vld [vmem:[#allocation3 + $0x3f8] sm:$0xff]
        %v2790 = vld [vmem:[#allocation3 + $0x400] sm:$0xff]
        %v2791 = vld [vmem:[#allocation3 + $0x408] sm:$0xff]
        %v2792 = vld [vmem:[#allocation3 + $0x410] sm:$0xff]
        %v2793 = vld [vmem:[#allocation3 + $0x418] sm:$0xff]
        %v2794 = vld [vmem:[#allocation3 + $0x420] sm:$0xff]
        %v2795 = vld [vmem:[#allocation3 + $0x428] sm:$0xff]
        %v2796 = vld [vmem:[#allocation3 + $0x430] sm:$0xff]
        %v2797 = vld [vmem:[#allocation3 + $0x438] sm:$0xff]
        %v2798 = vld [vmem:[#allocation3 + $0x440] sm:$0xff]
        %v2799 = vld [vmem:[#allocation3 + $0x448] sm:$0xff]
        %v2800 = vld [vmem:[#allocation3 + $0x450] sm:$0xff]
        %v2801 = vld [vmem:[#allocation3 + $0x458] sm:$0xff]
        %v2802 = vld [vmem:[#allocation3 + $0x460] sm:$0xff]
        %v2803 = vld [vmem:[#allocation3 + $0x468] sm:$0xff]
        %v2804 = vld [vmem:[#allocation3 + $0x470] sm:$0xff]
        %v2805 = vld [vmem:[#allocation3 + $0x478] sm:$0xff]
        %v2806 = vld [vmem:[#allocation4] sm:$0xf]
        %v2807 = vld [vmem:[#allocation4 + $0x4] sm:$0xf]
        %v2808 = vld [vmem:[#allocation4 + $0x8] sm:$0xf]
        %v2809 = vld [vmem:[#allocation4 + $0xc] sm:$0xf]
        %v2810 = vld [vmem:[#allocation4 + $0x10] sm:$0xf]
        %v2811 = vld [vmem:[#allocation4 + $0x14] sm:$0xf]
        %v2812 = vld [vmem:[#allocation4 + $0x18] sm:$0xf]
        %v2813 = vld [vmem:[#allocation4 + $0x1c] sm:$0xf]
        %v2814 = vld [vmem:[#allocation4 + $0x20] sm:$0xf]
        %v2815 = vld [vmem:[#allocation4 + $0x24] sm:$0xf]
        %v2816 = vld [vmem:[#allocation4 + $0x28] sm:$0xf]
        %v2817 = vld [vmem:[#allocation4 + $0x2c] sm:$0xf]
        %v2818 = vld [vmem:[#allocation4 + $0x30] sm:$0xf]
        %v2819 = vld [vmem:[#allocation4 + $0x34] sm:$0xf]
        %v2820 = vld [vmem:[#allocation4 + $0x38] sm:$0xf]
        %v2821 = vld [vmem:[#allocation4 + $0x3c] sm:$0xf]
        %v2822 = vld [vmem:[#allocation4 + $0x40] sm:$0xf]
        %v2823 = vld [vmem:[#allocation4 + $0x44] sm:$0xf]
        %v2824 = vld [vmem:[#allocation4 + $0x48] sm:$0xf]
        %v2825 = vld [vmem:[#allocation4 + $0x4c] sm:$0xf]
        %v2826 = vld [vmem:[#allocation4 + $0x50] sm:$0xf]
        %v2827 = vld [vmem:[#allocation4 + $0x54] sm:$0xf]
        %v2828 = vld [vmem:[#allocation4 + $0x58] sm:$0xf]
        %v2829 = vld [vmem:[#allocation4 + $0x5c] sm:$0xf]
        %v2830 = vld [vmem:[#allocation4 + $0x60] sm:$0xf]
        %v2831 = vld [vmem:[#allocation4 + $0x64] sm:$0xf]
        %v2832 = vld [vmem:[#allocation4 + $0x68] sm:$0xf]
        %v2833 = vld [vmem:[#allocation4 + $0x6c] sm:$0xf]
        %v2834 = vld [vmem:[#allocation4 + $0x70] sm:$0xf]
        %v2835 = vld [vmem:[#allocation4 + $0x74] sm:$0xf]
        %v2836 = vld [vmem:[#allocation4 + $0x78] sm:$0xf]
        %v2837 = vld [vmem:[#allocation4 + $0x7c] sm:$0xf]
        %v2838 = vld [vmem:[#allocation4 + $0x80] sm:$0xf]
        %v2839 = vld [vmem:[#allocation4 + $0x84] sm:$0xf]
        %v2840 = vld [vmem:[#allocation4 + $0x88] sm:$0xf]
        %v2841 = vld [vmem:[#allocation4 + $0x8c] sm:$0xf]
        %v2842 = vld [vmem:[#allocation4 + $0x90] sm:$0xf]
        %v2843 = vld [vmem:[#allocation4 + $0x94] sm:$0xf]
        %v2844 = vld [vmem:[#allocation4 + $0x98] sm:$0xf]
        %v2845 = vld [vmem:[#allocation4 + $0x9c] sm:$0xf]
        %v2846 = vld [vmem:[#allocation4 + $0xa0] sm:$0xf]
        %v2847 = vld [vmem:[#allocation4 + $0xa4] sm:$0xf]
        %v2848 = vld [vmem:[#allocation4 + $0xa8] sm:$0xf]
        %v2849 = vld [vmem:[#allocation4 + $0xac] sm:$0xf]
        %v2850 = vld [vmem:[#allocation4 + $0xb0] sm:$0xf]
        %v2851 = vld [vmem:[#allocation4 + $0xb4] sm:$0xf]
        %v2852 = vld [vmem:[#allocation4 + $0xb8] sm:$0xf]
        %v2853 = vld [vmem:[#allocation4 + $0xbc] sm:$0xf]
        %v2854 = vld [vmem:[#allocation4 + $0xc0] sm:$0xf]
        %v2855 = vld [vmem:[#allocation4 + $0xc4] sm:$0xf]
        %v2856 = vld [vmem:[#allocation4 + $0xc8] sm:$0xf]
        %v2857 = vld [vmem:[#allocation4 + $0xcc] sm:$0xf]
        %v2858 = vld [vmem:[#allocation4 + $0xd0] sm:$0xf]
        %v2859 = vld [vmem:[#allocation4 + $0xd4] sm:$0xf]
        %v2860 = vld [vmem:[#allocation4 + $0xd8] sm:$0xf]
        %v2861 = vld [vmem:[#allocation4 + $0xdc] sm:$0xf]
        %v2862 = vld [vmem:[#allocation4 + $0xe0] sm:$0xf]
        %v2863 = vld [vmem:[#allocation4 + $0xe4] sm:$0xf]
        %v2864 = vld [vmem:[#allocation4 + $0xe8] sm:$0xf]
        %v2865 = vld [vmem:[#allocation4 + $0xec] sm:$0xf]
        %v2866 = vld [vmem:[#allocation4 + $0xf0] sm:$0xf]
        %v2867 = vld [vmem:[#allocation4 + $0xf4] sm:$0xf]
        %v2868 = vld [vmem:[#allocation4 + $0xf8] sm:$0xf]
        %v2869 = vld [vmem:[#allocation4 + $0xfc] sm:$0xf]
        %v2870 = vld [vmem:[#allocation4 + $0x100] sm:$0xf]
        %v2871 = vld [vmem:[#allocation4 + $0x104] sm:$0xf]
        %v2872 = vld [vmem:[#allocation4 + $0x108] sm:$0xf]
        %v2873 = vld [vmem:[#allocation4 + $0x10c] sm:$0xf]
        %v2874 = vld [vmem:[#allocation4 + $0x110] sm:$0xf]
        %v2875 = vld [vmem:[#allocation4 + $0x114] sm:$0xf]
        %v2876 = vld [vmem:[#allocation4 + $0x118] sm:$0xf]
        %v2877 = vld [vmem:[#allocation4 + $0x11c] sm:$0xf]
        %v2878 = vld [vmem:[#allocation4 + $0x120] sm:$0xf]
        %v2879 = vld [vmem:[#allocation4 + $0x124] sm:$0xf]
        %v2880 = vld [vmem:[#allocation4 + $0x128] sm:$0xf]
        %v2881 = vld [vmem:[#allocation4 + $0x12c] sm:$0xf]
        %v2882 = vld [vmem:[#allocation4 + $0x130] sm:$0xf]
        %v2883 = vld [vmem:[#allocation4 + $0x134] sm:$0xf]
        %v2884 = vld [vmem:[#allocation4 + $0x138] sm:$0xf]
        %v2885 = vld [vmem:[#allocation4 + $0x13c] sm:$0xf]
        %v2886 = vld [vmem:[#allocation4 + $0x140] sm:$0xf]
        %v2887 = vld [vmem:[#allocation4 + $0x144] sm:$0xf]
        %v2888 = vld [vmem:[#allocation4 + $0x148] sm:$0xf]
        %v2889 = vld [vmem:[#allocation4 + $0x14c] sm:$0xf]
        %v2890 = vld [vmem:[#allocation4 + $0x150] sm:$0xf]
        %v2891 = vld [vmem:[#allocation4 + $0x154] sm:$0xf]
        %v2892 = vld [vmem:[#allocation4 + $0x158] sm:$0xf]
        %v2893 = vld [vmem:[#allocation4 + $0x15c] sm:$0xf]
        %v2894 = vld [vmem:[#allocation4 + $0x160] sm:$0xf]
        %v2895 = vld [vmem:[#allocation4 + $0x164] sm:$0xf]
        %v2896 = vld [vmem:[#allocation4 + $0x168] sm:$0xf]
        %v2897 = vld [vmem:[#allocation4 + $0x16c] sm:$0xf]
        %v2898 = vld [vmem:[#allocation4 + $0x170] sm:$0xf]
        %v2899 = vld [vmem:[#allocation4 + $0x174] sm:$0xf]
        %v2900 = vld [vmem:[#allocation4 + $0x178] sm:$0xf]
        %v2901 = vld [vmem:[#allocation4 + $0x17c] sm:$0xf]
        %v2902 = vld [vmem:[#allocation4 + $0x180] sm:$0xf]
        %v2903 = vld [vmem:[#allocation4 + $0x184] sm:$0xf]
        %v2904 = vld [vmem:[#allocation4 + $0x188] sm:$0xf]
        %v2905 = vld [vmem:[#allocation4 + $0x18c] sm:$0xf]
        %v2906 = vld [vmem:[#allocation4 + $0x190] sm:$0xf]
        %v2907 = vld [vmem:[#allocation4 + $0x194] sm:$0xf]
        %v2908 = vld [vmem:[#allocation4 + $0x198] sm:$0xf]
        %v2909 = vld [vmem:[#allocation4 + $0x19c] sm:$0xf]
        %v2910 = vld [vmem:[#allocation4 + $0x1a0] sm:$0xf]
        %v2911 = vld [vmem:[#allocation4 + $0x1a4] sm:$0xf]
        %v2912 = vld [vmem:[#allocation4 + $0x1a8] sm:$0xf]
        %v2913 = vld [vmem:[#allocation4 + $0x1ac] sm:$0xf]
        %v2914 = vld [vmem:[#allocation4 + $0x1b0] sm:$0xf]
        %v2915 = vld [vmem:[#allocation4 + $0x1b4] sm:$0xf]
        %v2916 = vld [vmem:[#allocation4 + $0x1b8] sm:$0xf]
        %v2917 = vld [vmem:[#allocation4 + $0x1bc] sm:$0xf]
        %v2918 = vld [vmem:[#allocation4 + $0x1c0] sm:$0xf]
        %v2919 = vld [vmem:[#allocation4 + $0x1c4] sm:$0xf]
        %v2920 = vld [vmem:[#allocation4 + $0x1c8] sm:$0xf]
        %v2921 = vld [vmem:[#allocation4 + $0x1cc] sm:$0xf]
        %v2922 = vld [vmem:[#allocation4 + $0x1d0] sm:$0xf]
        %v2923 = vld [vmem:[#allocation4 + $0x1d4] sm:$0xf]
        %v2924 = vld [vmem:[#allocation4 + $0x1d8] sm:$0xf]
        %v2925 = vld [vmem:[#allocation4 + $0x1dc] sm:$0xf]
        %v2926 = vld [vmem:[#allocation4 + $0x1e0] sm:$0xf]
        %v2927 = vld [vmem:[#allocation4 + $0x1e4] sm:$0xf]
        %v2928 = vld [vmem:[#allocation4 + $0x1e8] sm:$0xf]
        %v2929 = vld [vmem:[#allocation4 + $0x1ec] sm:$0xf]
        %v2930 = vld [vmem:[#allocation4 + $0x1f0] sm:$0xf]
        %v2931 = vld [vmem:[#allocation4 + $0x1f4] sm:$0xf]
        %v2932 = vld [vmem:[#allocation4 + $0x1f8] sm:$0xf]
        %v2933 = vld [vmem:[#allocation4 + $0x1fc] sm:$0xf]
        %v2934 = vld [vmem:[#allocation4 + $0x200] sm:$0xf]
        %v2935 = vld [vmem:[#allocation4 + $0x204] sm:$0xf]
        %v2936 = vld [vmem:[#allocation4 + $0x208] sm:$0xf]
        %v2937 = vld [vmem:[#allocation4 + $0x20c] sm:$0xf]
        %v2938 = vld [vmem:[#allocation4 + $0x210] sm:$0xf]
        %v2939 = vld [vmem:[#allocation4 + $0x214] sm:$0xf]
        %v2940 = vld [vmem:[#allocation4 + $0x218] sm:$0xf]
        %v2941 = vld [vmem:[#allocation4 + $0x21c] sm:$0xf]
        %v2942 = vld [vmem:[#allocation4 + $0x220] sm:$0xf]
        %v2943 = vld [vmem:[#allocation4 + $0x224] sm:$0xf]
        %v2944 = vld [vmem:[#allocation4 + $0x228] sm:$0xf]
        %v2945 = vld [vmem:[#allocation4 + $0x22c] sm:$0xf]
        %v2946 = vld [vmem:[#allocation4 + $0x230] sm:$0xf]
        %v2947 = vld [vmem:[#allocation4 + $0x234] sm:$0xf]
        %v2948 = vld [vmem:[#allocation4 + $0x238] sm:$0xf]
        %v2949 = vld [vmem:[#allocation4 + $0x23c] sm:$0xf]
        %v3094 = vunpack.c.l.b16 %v2806
        %v3095 = vunpack.c.l.b16 %v2807
        %v3096 = vunpack.c.l.b16 %v2808
        %v3097 = vunpack.c.l.b16 %v2809
        %v3098 = vunpack.c.l.b16 %v2810
        %v3099 = vunpack.c.l.b16 %v2811
        %v3100 = vunpack.c.l.b16 %v2812
        %v3101 = vunpack.c.l.b16 %v2813
        %v3102 = vunpack.c.l.b16 %v2814
        %v3103 = vunpack.c.l.b16 %v2815
        %v3104 = vunpack.c.l.b16 %v2816
        %v3105 = vunpack.c.l.b16 %v2817
        %v3106 = vunpack.c.l.b16 %v2818
        %v3107 = vunpack.c.l.b16 %v2819
        %v3108 = vunpack.c.l.b16 %v2820
        %v3109 = vunpack.c.l.b16 %v2821
        %v3110 = vunpack.c.l.b16 %v2822
        %v3111 = vunpack.c.l.b16 %v2823
        %v3112 = vunpack.c.l.b16 %v2824
        %v3113 = vunpack.c.l.b16 %v2825
        %v3114 = vunpack.c.l.b16 %v2826
        %v3115 = vunpack.c.l.b16 %v2827
        %v3116 = vunpack.c.l.b16 %v2828
        %v3117 = vunpack.c.l.b16 %v2829
        %v3118 = vunpack.c.l.b16 %v2830
        %v3119 = vunpack.c.l.b16 %v2831
        %v3120 = vunpack.c.l.b16 %v2832
        %v3121 = vunpack.c.l.b16 %v2833
        %v3122 = vunpack.c.l.b16 %v2834
        %v3123 = vunpack.c.l.b16 %v2835
        %v3124 = vunpack.c.l.b16 %v2836
        %v3125 = vunpack.c.l.b16 %v2837
        %v3126 = vunpack.c.l.b16 %v2838
        %v3127 = vunpack.c.l.b16 %v2839
        %v3128 = vunpack.c.l.b16 %v2840
        %v3129 = vunpack.c.l.b16 %v2841
        %v3130 = vunpack.c.l.b16 %v2842
        %v3131 = vunpack.c.l.b16 %v2843
        %v3132 = vunpack.c.l.b16 %v2844
        %v3133 = vunpack.c.l.b16 %v2845
        %v3134 = vunpack.c.l.b16 %v2846
        %v3135 = vunpack.c.l.b16 %v2847
        %v3136 = vunpack.c.l.b16 %v2848
        %v3137 = vunpack.c.l.b16 %v2849
        %v3138 = vunpack.c.l.b16 %v2850
        %v3139 = vunpack.c.l.b16 %v2851
        %v3140 = vunpack.c.l.b16 %v2852
        %v3141 = vunpack.c.l.b16 %v2853
        %v3142 = vunpack.c.l.b16 %v2854
        %v3143 = vunpack.c.l.b16 %v2855
        %v3144 = vunpack.c.l.b16 %v2856
        %v3145 = vunpack.c.l.b16 %v2857
        %v3146 = vunpack.c.l.b16 %v2858
        %v3147 = vunpack.c.l.b16 %v2859
        %v3148 = vunpack.c.l.b16 %v2860
        %v3149 = vunpack.c.l.b16 %v2861
        %v3150 = vunpack.c.l.b16 %v2862
        %v3151 = vunpack.c.l.b16 %v2863
        %v3152 = vunpack.c.l.b16 %v2864
        %v3153 = vunpack.c.l.b16 %v2865
        %v3154 = vunpack.c.l.b16 %v2866
        %v3155 = vunpack.c.l.b16 %v2867
        %v3156 = vunpack.c.l.b16 %v2868
        %v3157 = vunpack.c.l.b16 %v2869
        %v3158 = vunpack.c.l.b16 %v2870
        %v3159 = vunpack.c.l.b16 %v2871
        %v3160 = vunpack.c.l.b16 %v2872
        %v3161 = vunpack.c.l.b16 %v2873
        %v3162 = vunpack.c.l.b16 %v2874
        %v3163 = vunpack.c.l.b16 %v2875
        %v3164 = vunpack.c.l.b16 %v2876
        %v3165 = vunpack.c.l.b16 %v2877
        %v3166 = vunpack.c.l.b16 %v2878
        %v3167 = vunpack.c.l.b16 %v2879
        %v3168 = vunpack.c.l.b16 %v2880
        %v3169 = vunpack.c.l.b16 %v2881
        %v3170 = vunpack.c.l.b16 %v2882
        %v3171 = vunpack.c.l.b16 %v2883
        %v3172 = vunpack.c.l.b16 %v2884
        %v3173 = vunpack.c.l.b16 %v2885
        %v3174 = vunpack.c.l.b16 %v2886
        %v3175 = vunpack.c.l.b16 %v2887
        %v3176 = vunpack.c.l.b16 %v2888
        %v3177 = vunpack.c.l.b16 %v2889
        %v3178 = vunpack.c.l.b16 %v2890
        %v3179 = vunpack.c.l.b16 %v2891
        %v3180 = vunpack.c.l.b16 %v2892
        %v3181 = vunpack.c.l.b16 %v2893
        %v3182 = vunpack.c.l.b16 %v2894
        %v3183 = vunpack.c.l.b16 %v2895
        %v3184 = vunpack.c.l.b16 %v2896
        %v3185 = vunpack.c.l.b16 %v2897
        %v3186 = vunpack.c.l.b16 %v2898
        %v3187 = vunpack.c.l.b16 %v2899
        %v3188 = vunpack.c.l.b16 %v2900
        %v3189 = vunpack.c.l.b16 %v2901
        %v3190 = vunpack.c.l.b16 %v2902
        %v3191 = vunpack.c.l.b16 %v2903
        %v3192 = vunpack.c.l.b16 %v2904
        %v3193 = vunpack.c.l.b16 %v2905
        %v3194 = vunpack.c.l.b16 %v2906
        %v3195 = vunpack.c.l.b16 %v2907
        %v3196 = vunpack.c.l.b16 %v2908
        %v3197 = vunpack.c.l.b16 %v2909
        %v3198 = vunpack.c.l.b16 %v2910
        %v3199 = vunpack.c.l.b16 %v2911
        %v3200 = vunpack.c.l.b16 %v2912
        %v3201 = vunpack.c.l.b16 %v2913
        %v3202 = vunpack.c.l.b16 %v2914
        %v3203 = vunpack.c.l.b16 %v2915
        %v3204 = vunpack.c.l.b16 %v2916
        %v3205 = vunpack.c.l.b16 %v2917
        %v3206 = vunpack.c.l.b16 %v2918
        %v3207 = vunpack.c.l.b16 %v2919
        %v3208 = vunpack.c.l.b16 %v2920
        %v3209 = vunpack.c.l.b16 %v2921
        %v3210 = vunpack.c.l.b16 %v2922
        %v3211 = vunpack.c.l.b16 %v2923
        %v3212 = vunpack.c.l.b16 %v2924
        %v3213 = vunpack.c.l.b16 %v2925
        %v3214 = vunpack.c.l.b16 %v2926
        %v3215 = vunpack.c.l.b16 %v2927
        %v3216 = vunpack.c.l.b16 %v2928
        %v3217 = vunpack.c.l.b16 %v2929
        %v3218 = vunpack.c.l.b16 %v2930
        %v3219 = vunpack.c.l.b16 %v2931
        %v3220 = vunpack.c.l.b16 %v2932
        %v3221 = vunpack.c.l.b16 %v2933
        %v3222 = vunpack.c.l.b16 %v2934
        %v3223 = vunpack.c.l.b16 %v2935
        %v3224 = vunpack.c.l.b16 %v2936
        %v3225 = vunpack.c.l.b16 %v2937
        %v3226 = vunpack.c.l.b16 %v2938
        %v3227 = vunpack.c.l.b16 %v2939
        %v3228 = vunpack.c.l.b16 %v2940
        %v3229 = vunpack.c.l.b16 %v2941
        %v3230 = vunpack.c.l.b16 %v2942
        %v3231 = vunpack.c.l.b16 %v2943
        %v3232 = vunpack.c.l.b16 %v2944
        %v3233 = vunpack.c.l.b16 %v2945
        %v3234 = vunpack.c.l.b16 %v2946
        %v3235 = vunpack.c.l.b16 %v2947
        %v3236 = vunpack.c.l.b16 %v2948
        %v3237 = vunpack.c.l.b16 %v2949
        %v3238 = vpack.c.b16 %v3095, %v3094
        %v3239 = vpack.c.b16 %v3097, %v3096
        %v3240 = vpack.c.b16 %v3099, %v3098
        %v3241 = vpack.c.b16 %v3101, %v3100
        %v3242 = vpack.c.b16 %v3103, %v3102
        %v3243 = vpack.c.b16 %v3105, %v3104
        %v3244 = vpack.c.b16 %v3107, %v3106
        %v3245 = vpack.c.b16 %v3109, %v3108
        %v3246 = vpack.c.b16 %v3111, %v3110
        %v3247 = vpack.c.b16 %v3113, %v3112
        %v3248 = vpack.c.b16 %v3115, %v3114
        %v3249 = vpack.c.b16 %v3117, %v3116
        %v3250 = vpack.c.b16 %v3119, %v3118
        %v3251 = vpack.c.b16 %v3121, %v3120
        %v3252 = vpack.c.b16 %v3123, %v3122
        %v3253 = vpack.c.b16 %v3125, %v3124
        %v3254 = vpack.c.b16 %v3127, %v3126
        %v3255 = vpack.c.b16 %v3129, %v3128
        %v3256 = vpack.c.b16 %v3131, %v3130
        %v3257 = vpack.c.b16 %v3133, %v3132
        %v3258 = vpack.c.b16 %v3135, %v3134
        %v3259 = vpack.c.b16 %v3137, %v3136
        %v3260 = vpack.c.b16 %v3139, %v3138
        %v3261 = vpack.c.b16 %v3141, %v3140
        %v3262 = vpack.c.b16 %v3143, %v3142
        %v3263 = vpack.c.b16 %v3145, %v3144
        %v3264 = vpack.c.b16 %v3147, %v3146
        %v3265 = vpack.c.b16 %v3149, %v3148
        %v3266 = vpack.c.b16 %v3151, %v3150
        %v3267 = vpack.c.b16 %v3153, %v3152
        %v3268 = vpack.c.b16 %v3155, %v3154
        %v3269 = vpack.c.b16 %v3157, %v3156
        %v3270 = vpack.c.b16 %v3159, %v3158
        %v3271 = vpack.c.b16 %v3161, %v3160
        %v3272 = vpack.c.b16 %v3163, %v3162
        %v3273 = vpack.c.b16 %v3165, %v3164
        %v3274 = vpack.c.b16 %v3167, %v3166
        %v3275 = vpack.c.b16 %v3169, %v3168
        %v3276 = vpack.c.b16 %v3171, %v3170
        %v3277 = vpack.c.b16 %v3173, %v3172
        %v3278 = vpack.c.b16 %v3175, %v3174
        %v3279 = vpack.c.b16 %v3177, %v3176
        %v3280 = vpack.c.b16 %v3179, %v3178
        %v3281 = vpack.c.b16 %v3181, %v3180
        %v3282 = vpack.c.b16 %v3183, %v3182
        %v3283 = vpack.c.b16 %v3185, %v3184
        %v3284 = vpack.c.b16 %v3187, %v3186
        %v3285 = vpack.c.b16 %v3189, %v3188
        %v3286 = vpack.c.b16 %v3191, %v3190
        %v3287 = vpack.c.b16 %v3193, %v3192
        %v3288 = vpack.c.b16 %v3195, %v3194
        %v3289 = vpack.c.b16 %v3197, %v3196
        %v3290 = vpack.c.b16 %v3199, %v3198
        %v3291 = vpack.c.b16 %v3201, %v3200
        %v3292 = vpack.c.b16 %v3203, %v3202
        %v3293 = vpack.c.b16 %v3205, %v3204
        %v3294 = vpack.c.b16 %v3207, %v3206
        %v3295 = vpack.c.b16 %v3209, %v3208
        %v3296 = vpack.c.b16 %v3211, %v3210
        %v3297 = vpack.c.b16 %v3213, %v3212
        %v3298 = vpack.c.b16 %v3215, %v3214
        %v3299 = vpack.c.b16 %v3217, %v3216
        %v3300 = vpack.c.b16 %v3219, %v3218
        %v3301 = vpack.c.b16 %v3221, %v3220
        %v3302 = vpack.c.b16 %v3223, %v3222
        %v3303 = vpack.c.b16 %v3225, %v3224
        %v3304 = vpack.c.b16 %v3227, %v3226
        %v3305 = vpack.c.b16 %v3229, %v3228
        %v3306 = vpack.c.b16 %v3231, %v3230
        %v3307 = vpack.c.b16 %v3233, %v3232
        %v3308 = vpack.c.b16 %v3235, %v3234
        %v3309 = vpack.c.b16 %v3237, %v3236
        %3382 = vmatprep.subr.bf16.mxu0 0
        %3383 = vmatpush1.bf16.msra.mxu0 %v3238
        %3384 = vmatprep.subr.bf16.mxu0 0
        %3385 = vmatpush1.bf16.msra.mxu0 %v3239
        %3386 = vmatprep.subr.bf16.mxu0 0
        %3387 = vmatpush1.bf16.msra.mxu0 %v3240
        %3388 = vmatprep.subr.bf16.mxu0 0
        %3389 = vmatpush1.bf16.msra.mxu0 %v3241
        %3390 = vmatprep.subr.bf16.mxu0 0
        %3391 = vmatpush1.bf16.msra.mxu0 %v3242
        %3392 = vmatprep.subr.bf16.mxu0 0
        %3393 = vmatpush1.bf16.msra.mxu0 %v3243
        %3394 = vmatprep.subr.bf16.mxu0 0
        %3395 = vmatpush1.bf16.msra.mxu0 %v3244
        %3396 = vmatprep.subr.bf16.mxu0 0
        %3397 = vmatpush1.bf16.msra.mxu0 %v3245
        %3398 = vmatprep.subr.bf16.mxu0 0
        %3399 = vmatpush1.bf16.msra.mxu0 %v3246
        %3400 = vmatprep.subr.bf16.mxu0 0
        %3401 = vmatpush1.bf16.msra.mxu0 %v3247
        %3402 = vmatprep.subr.bf16.mxu0 0
        %3403 = vmatpush1.bf16.msra.mxu0 %v3248
        %3404 = vmatprep.subr.bf16.mxu0 0
        %3405 = vmatpush1.bf16.msra.mxu0 %v3249
        %3406 = vmatprep.subr.bf16.mxu0 0
        %3407 = vmatpush1.bf16.msra.mxu0 %v3250
        %3408 = vmatprep.subr.bf16.mxu0 0
        %3409 = vmatpush1.bf16.msra.mxu0 %v3251
        %3410 = vmatprep.subr.bf16.mxu0 0
        %3411 = vmatpush1.bf16.msra.mxu0 %v3252
        %3412 = vmatprep.subr.bf16.mxu0 0
        %3413 = vmatpush1.bf16.msra.mxu0 %v3253
        %3414 = vmatprep.mubr.bf16.mxu0 %v2663
        %3415 = vmatmul.mubr.bf16.gmra.mrb[0].mxu0 %v2662
        %v3416 = vpop.f32.mrb[0].mxu0
        %v3417 = vadd.f32 0.0, %v3416
        %v3418 = vpop.f32.mrb[0].mxu0
        %v3419 = vpop.f32.mrb[0].mxu0
        %v3420 = vadd.f32 0.0, %v3419
        %v3421 = vpop.f32.mrb[0].mxu0
        %3422 = vmatprep.mubr.bf16.mxu0 %v2672
        %3423 = vmatmul.mubr.bf16.gmra.mrb[0].mxu0 %v2671
        %v3424 = vpop.f32.mrb[0].mxu0
        %v3425 = vadd.f32 0.0, %v3424
        %v3426 = vpop.f32.mrb[0].mxu0
        %v3427 = vpop.f32.mrb[0].mxu0
        %v3428 = vadd.f32 0.0, %v3427
        %v3429 = vpop.f32.mrb[0].mxu0
        %3430 = vmatprep.mubr.bf16.mxu0 %v2681
        %3431 = vmatmul.mubr.bf16.gmra.mrb[0].mxu0 %v2680
        %v3432 = vpop.f32.mrb[0].mxu0
        %v3433 = vadd.f32 0.0, %v3432
        %v3434 = vpop.f32.mrb[0].mxu0
        %v3435 = vpop.f32.mrb[0].mxu0
        %v3436 = vadd.f32 0.0, %v3435
        %v3437 = vpop.f32.mrb[0].mxu0
        %3438 = vmatprep.mubr.bf16.mxu0 %v2690
        %3439 = vmatmul.mubr.bf16.gmra.mrb[0].mxu0 %v2689
        %v3440 = vpop.f32.mrb[0].mxu0
        %v3441 = vadd.f32 0.0, %v3440
        %v3442 = vpop.f32.mrb[0].mxu0
        %v3443 = vpop.f32.mrb[0].mxu0
        %v3444 = vadd.f32 0.0, %v3443
        %v3445 = vpop.f32.mrb[0].mxu0
        %3446 = vmatprep.mubr.bf16.mxu0 %v2699
        %3447 = vmatmul.mubr.bf16.gmra.mrb[0].mxu0 %v2698
        %v3448 = vpop.f32.mrb[0].mxu0
        %v3449 = vadd.f32 0.0, %v3448
        %v3450 = vpop.f32.mrb[0].mxu0
        %v3451 = vpop.f32.mrb[0].mxu0
        %v3452 = vadd.f32 0.0, %v3451
        %v3453 = vpop.f32.mrb[0].mxu0
        %3454 = vmatprep.mubr.bf16.mxu0 %v2708
        %3455 = vmatmul.mubr.bf16.gmra.mrb[0].mxu0 %v2707
        %v3456 = vpop.f32.mrb[0].mxu0
        %v3457 = vadd.f32 0.0, %v3456
        %v3458 = vpop.f32.mrb[0].mxu0
        %v3459 = vpop.f32.mrb[0].mxu0
        %v3460 = vadd.f32 0.0, %v3459
        %v3461 = vpop.f32.mrb[0].mxu0
        %3462 = vmatprep.mubr.bf16.mxu0 %v2717
        %3463 = vmatmul.mubr.bf16.gmra.mrb[0].mxu0 %v2716
        %v3464 = vpop.f32.mrb[0].mxu0
        %v3465 = vadd.f32 0.0, %v3464
        %v3466 = vpop.f32.mrb[0].mxu0
        %v3467 = vpop.f32.mrb[0].mxu0
        %v3468 = vadd.f32 0.0, %v3467
        %v3469 = vpop.f32.mrb[0].mxu0
        %3470 = vmatprep.mubr.bf16.mxu0 %v2726
        %3471 = vmatmul.mubr.bf16.gmra.mrb[0].mxu0 %v2725
        %v3472 = vpop.f32.mrb[0].mxu0
        %v3473 = vadd.f32 0.0, %v3472
        %v3474 = vpop.f32.mrb[0].mxu0
        %v3475 = vpop.f32.mrb[0].mxu0
        %v3476 = vadd.f32 0.0, %v3475
        %v3477 = vpop.f32.mrb[0].mxu0
        %3478 = vmatprep.mubr.bf16.mxu0 %v2735
        %3479 = vmatmul.mubr.bf16.gmra.mrb[0].mxu0 %v2734
        %v3480 = vpop.f32.mrb[0].mxu0
        %v3481 = vadd.f32 0.0, %v3480
        %v3482 = vpop.f32.mrb[0].mxu0
        %v3483 = vpop.f32.mrb[0].mxu0
        %v3484 = vadd.f32 0.0, %v3483
        %v3485 = vpop.f32.mrb[0].mxu0
        %3486 = vmatprep.mubr.bf16.mxu0 %v2744
        %3487 = vmatmul.mubr.bf16.gmra.mrb[0].mxu0 %v2743
        %v3488 = vpop.f32.mrb[0].mxu0
        %v3489 = vadd.f32 0.0, %v3488
        %v3490 = vpop.f32.mrb[0].mxu0
        %v3491 = vpop.f32.mrb[0].mxu0
        %v3492 = vadd.f32 0.0, %v3491
        %v3493 = vpop.f32.mrb[0].mxu0
        %3494 = vmatprep.mubr.bf16.mxu0 %v2753
        %3495 = vmatmul.mubr.bf16.gmra.mrb[0].mxu0 %v2752
        %v3496 = vpop.f32.mrb[0].mxu0
        %v3497 = vadd.f32 0.0, %v3496
        %v3498 = vpop.f32.mrb[0].mxu0
        %v3499 = vpop.f32.mrb[0].mxu0
        %v3500 = vadd.f32 0.0, %v3499
        %v3501 = vpop.f32.mrb[0].mxu0
        %3502 = vmatprep.mubr.bf16.mxu0 %v2762
        %3503 = vmatmul.mubr.bf16.gmra.mrb[0].mxu0 %v2761
        %v3504 = vpop.f32.mrb[0].mxu0
        %v3505 = vadd.f32 0.0, %v3504
        %v3506 = vpop.f32.mrb[0].mxu0
        %v3507 = vpop.f32.mrb[0].mxu0
        %v3508 = vadd.f32 0.0, %v3507
        %v3509 = vpop.f32.mrb[0].mxu0
        %3510 = vmatprep.mubr.bf16.mxu0 %v2771
        %3511 = vmatmul.mubr.bf16.gmra.mrb[0].mxu0 %v2770
        %v3512 = vpop.f32.mrb[0].mxu0
        %v3513 = vadd.f32 0.0, %v3512
        %v3514 = vpop.f32.mrb[0].mxu0
        %v3515 = vpop.f32.mrb[0].mxu0
        %v3516 = vadd.f32 0.0, %v3515
        %v3517 = vpop.f32.mrb[0].mxu0
        %3518 = vmatprep.mubr.bf16.mxu0 %v2780
        %3519 = vmatmul.mubr.bf16.gmra.mrb[0].mxu0 %v2779
        %v3520 = vpop.f32.mrb[0].mxu0
        %v3521 = vadd.f32 0.0, %v3520
        %v3522 = vpop.f32.mrb[0].mxu0
        %v3523 = vpop.f32.mrb[0].mxu0
        %v3524 = vadd.f32 0.0, %v3523
        %v3525 = vpop.f32.mrb[0].mxu0
        %3526 = vmatprep.mubr.bf16.mxu0 %v2789
        %3527 = vmatmul.mubr.bf16.gmra.mrb[0].mxu0 %v2788
        %v3528 = vpop.f32.mrb[0].mxu0
        %v3529 = vadd.f32 0.0, %v3528
        %v3530 = vpop.f32.mrb[0].mxu0
        %v3531 = vpop.f32.mrb[0].mxu0
        %v3532 = vadd.f32 0.0, %v3531
        %v3533 = vpop.f32.mrb[0].mxu0
        %3534 = vmatprep.mubr.bf16.mxu0 %v2798
        %3535 = vmatmul.mubr.bf16.gmra.mrb[0].mxu0 %v2797
        %v3536 = vpop.f32.mrb[0].mxu0
        %v3537 = vadd.f32 0.0, %v3536
        %v3538 = vpop.f32.mrb[0].mxu0
        %v3539 = vpop.f32.mrb[0].mxu0
        %v3540 = vadd.f32 0.0, %v3539
        %v3541 = vpop.f32.mrb[0].mxu0
        %3542 = vdwg.mxu0
        %3543 = vmatprep.subr.bf16.mxu0 0
        %3544 = vmatpush1.bf16.msra.mxu0 %v3254
        %3545 = vmatprep.subr.bf16.mxu0 0
        %3546 = vmatpush1.bf16.msra.mxu0 %v3255
        %3547 = vmatprep.subr.bf16.mxu0 0
        %3548 = vmatpush1.bf16.msra.mxu0 %v3256
        %3549 = vmatprep.subr.bf16.mxu0 0
        %3550 = vmatpush1.bf16.msra.mxu0 %v3257
        %3551 = vmatprep.subr.bf16.mxu0 0
        %3552 = vmatpush1.bf16.msra.mxu0 %v3258
        %3553 = vmatprep.subr.bf16.mxu0 0
        %3554 = vmatpush1.bf16.msra.mxu0 %v3259
        %3555 = vmatprep.subr.bf16.mxu0 0
        %3556 = vmatpush1.bf16.msra.mxu0 %v3260
        %3557 = vmatprep.subr.bf16.mxu0 0
        %3558 = vmatpush1.bf16.msra.mxu0 %v3261
        %3559 = vmatprep.subr.bf16.mxu0 0
        %3560 = vmatpush1.bf16.msra.mxu0 %v3262
        %3561 = vmatprep.subr.bf16.mxu0 0
        %3562 = vmatpush1.bf16.msra.mxu0 %v3263
        %3563 = vmatprep.subr.bf16.mxu0 0
        %3564 = vmatpush1.bf16.msra.mxu0 %v3264
        %3565 = vmatprep.subr.bf16.mxu0 0
        %3566 = vmatpush1.bf16.msra.mxu0 %v3265
        %3567 = vmatprep.subr.bf16.mxu0 0
        %3568 = vmatpush1.bf16.msra.mxu0 %v3266
        %3569 = vmatprep.subr.bf16.mxu0 0
        %3570 = vmatpush1.bf16.msra.mxu0 %v3267
        %3571 = vmatprep.subr.bf16.mxu0 0
        %3572 = vmatpush1.bf16.msra.mxu0 %v3268
        %3573 = vmatprep.subr.bf16.mxu0 0
        %3574 = vmatpush1.bf16.msra.mxu0 %v3269
        %3575 = vmatprep.mubr.bf16.mxu0 %v2665
        %3576 = vmatmul.mubr.bf16.gmra.mrb[0].mxu0 %v2664
        %v3577 = vpop.f32.mrb[0].mxu0
        %v3578 = vadd.f32 %v3417, %v3577
        %v3579 = vpop.f32.mrb[0].mxu0
        %v3580 = vpop.f32.mrb[0].mxu0
        %v3581 = vadd.f32 %v3420, %v3580
        %v3582 = vpop.f32.mrb[0].mxu0
        %3583 = vmatprep.mubr.bf16.mxu0 %v2674
        %3584 = vmatmul.mubr.bf16.gmra.mrb[0].mxu0 %v2673
        %v3585 = vpop.f32.mrb[0].mxu0
        %v3586 = vadd.f32 %v3425, %v3585
        %v3587 = vpop.f32.mrb[0].mxu0
        %v3588 = vpop.f32.mrb[0].mxu0
        %v3589 = vadd.f32 %v3428, %v3588
        %v3590 = vpop.f32.mrb[0].mxu0
        %3591 = vmatprep.mubr.bf16.mxu0 %v2683
        %3592 = vmatmul.mubr.bf16.gmra.mrb[0].mxu0 %v2682
        %v3593 = vpop.f32.mrb[0].mxu0
        %v3594 = vadd.f32 %v3433, %v3593
        %v3595 = vpop.f32.mrb[0].mxu0
        %v3596 = vpop.f32.mrb[0].mxu0
        %v3597 = vadd.f32 %v3436, %v3596
        %v3598 = vpop.f32.mrb[0].mxu0
        %3599 = vmatprep.mubr.bf16.mxu0 %v2692
        %3600 = vmatmul.mubr.bf16.gmra.mrb[0].mxu0 %v2691
        %v3601 = vpop.f32.mrb[0].mxu0
        %v3602 = vadd.f32 %v3441, %v3601
        %v3603 = vpop.f32.mrb[0].mxu0
        %v3604 = vpop.f32.mrb[0].mxu0
        %v3605 = vadd.f32 %v3444, %v3604
        %v3606 = vpop.f32.mrb[0].mxu0
        %3607 = vmatprep.mubr.bf16.mxu0 %v2701
        %3608 = vmatmul.mubr.bf16.gmra.mrb[0].mxu0 %v2700
        %v3609 = vpop.f32.mrb[0].mxu0
        %v3610 = vadd.f32 %v3449, %v3609
        %v3611 = vpop.f32.mrb[0].mxu0
        %v3612 = vpop.f32.mrb[0].mxu0
        %v3613 = vadd.f32 %v3452, %v3612
        %v3614 = vpop.f32.mrb[0].mxu0
        %3615 = vmatprep.mubr.bf16.mxu0 %v2710
        %3616 = vmatmul.mubr.bf16.gmra.mrb[0].mxu0 %v2709
        %v3617 = vpop.f32.mrb[0].mxu0
        %v3618 = vadd.f32 %v3457, %v3617
        %v3619 = vpop.f32.mrb[0].mxu0
        %v3620 = vpop.f32.mrb[0].mxu0
        %v3621 = vadd.f32 %v3460, %v3620
        %v3622 = vpop.f32.mrb[0].mxu0
        %3623 = vmatprep.mubr.bf16.mxu0 %v2719
        %3624 = vmatmul.mubr.bf16.gmra.mrb[0].mxu0 %v2718
        %v3625 = vpop.f32.mrb[0].mxu0
        %v3626 = vadd.f32 %v3465, %v3625
        %v3627 = vpop.f32.mrb[0].mxu0
        %v3628 = vpop.f32.mrb[0].mxu0
        %v3629 = vadd.f32 %v3468, %v3628
        %v3630 = vpop.f32.mrb[0].mxu0
        %3631 = vmatprep.mubr.bf16.mxu0 %v2728
        %3632 = vmatmul.mubr.bf16.gmra.mrb[0].mxu0 %v2727
        %v3633 = vpop.f32.mrb[0].mxu0
        %v3634 = vadd.f32 %v3473, %v3633
        %v3635 = vpop.f32.mrb[0].mxu0
        %v3636 = vpop.f32.mrb[0].mxu0
        %v3637 = vadd.f32 %v3476, %v3636
        %v3638 = vpop.f32.mrb[0].mxu0
        %3639 = vmatprep.mubr.bf16.mxu0 %v2737
        %3640 = vmatmul.mubr.bf16.gmra.mrb[0].mxu0 %v2736
        %v3641 = vpop.f32.mrb[0].mxu0
        %v3642 = vadd.f32 %v3481, %v3641
        %v3643 = vpop.f32.mrb[0].mxu0
        %v3644 = vpop.f32.mrb[0].mxu0
        %v3645 = vadd.f32 %v3484, %v3644
        %v3646 = vpop.f32.mrb[0].mxu0
        %3647 = vmatprep.mubr.bf16.mxu0 %v2746
        %3648 = vmatmul.mubr.bf16.gmra.mrb[0].mxu0 %v2745
        %v3649 = vpop.f32.mrb[0].mxu0
        %v3650 = vadd.f32 %v3489, %v3649
        %v3651 = vpop.f32.mrb[0].mxu0
        %v3652 = vpop.f32.mrb[0].mxu0
        %v3653 = vadd.f32 %v3492, %v3652
        %v3654 = vpop.f32.mrb[0].mxu0
        %3655 = vmatprep.mubr.bf16.mxu0 %v2755
        %3656 = vmatmul.mubr.bf16.gmra.mrb[0].mxu0 %v2754
        %v3657 = vpop.f32.mrb[0].mxu0
        %v3658 = vadd.f32 %v3497, %v3657
        %v3659 = vpop.f32.mrb[0].mxu0
        %v3660 = vpop.f32.mrb[0].mxu0
        %v3661 = vadd.f32 %v3500, %v3660
        %v3662 = vpop.f32.mrb[0].mxu0
        %3663 = vmatprep.mubr.bf16.mxu0 %v2764
        %3664 = vmatmul.mubr.bf16.gmra.mrb[0].mxu0 %v2763
        %v3665 = vpop.f32.mrb[0].mxu0
        %v3666 = vadd.f32 %v3505, %v3665
        %v3667 = vpop.f32.mrb[0].mxu0
        %v3668 = vpop.f32.mrb[0].mxu0
        %v3669 = vadd.f32 %v3508, %v3668
        %v3670 = vpop.f32.mrb[0].mxu0
        %3671 = vmatprep.mubr.bf16.mxu0 %v2773
        %3672 = vmatmul.mubr.bf16.gmra.mrb[0].mxu0 %v2772
        %v3673 = vpop.f32.mrb[0].mxu0
        %v3674 = vadd.f32 %v3513, %v3673
        %v3675 = vpop.f32.mrb[0].mxu0
        %v3676 = vpop.f32.mrb[0].mxu0
        %v3677 = vadd.f32 %v3516, %v3676
        %v3678 = vpop.f32.mrb[0].mxu0
        %3679 = vmatprep.mubr.bf16.mxu0 %v2782
        %3680 = vmatmul.mubr.bf16.gmra.mrb[0].mxu0 %v2781
        %v3681 = vpop.f32.mrb[0].mxu0
        %v3682 = vadd.f32 %v3521, %v3681
        %v3683 = vpop.f32.mrb[0].mxu0
        %v3684 = vpop.f32.mrb[0].mxu0
        %v3685 = vadd.f32 %v3524, %v3684
        %v3686 = vpop.f32.mrb[0].mxu0
        %3687 = vmatprep.mubr.bf16.mxu0 %v2791
        %3688 = vmatmul.mubr.bf16.gmra.mrb[0].mxu0 %v2790
        %v3689 = vpop.f32.mrb[0].mxu0
        %v3690 = vadd.f32 %v3529, %v3689
        %v3691 = vpop.f32.mrb[0].mxu0
        %v3692 = vpop.f32.mrb[0].mxu0
        %v3693 = vadd.f32 %v3532, %v3692
        %v3694 = vpop.f32.mrb[0].mxu0
        %3695 = vmatprep.mubr.bf16.mxu0 %v2800
        %3696 = vmatmul.mubr.bf16.gmra.mrb[0].mxu0 %v2799
        %v3697 = vpop.f32.mrb[0].mxu0
        %v3698 = vadd.f32 %v3537, %v3697
        %v3699 = vpop.f32.mrb[0].mxu0
        %v3700 = vpop.f32.mrb[0].mxu0
        %v3701 = vadd.f32 %v3540, %v3700
        %v3702 = vpop.f32.mrb[0].mxu0
        %3703 = vdwg.mxu0
        %3704 = vmatprep.subr.bf16.mxu0 0
        %3705 = vmatpush1.bf16.msra.mxu0 %v3270
        %3706 = vmatprep.subr.bf16.mxu0 0
        %3707 = vmatpush1.bf16.msra.mxu0 %v3271
        %3708 = vmatprep.subr.bf16.mxu0 0
        %3709 = vmatpush1.bf16.msra.mxu0 %v3272
        %3710 = vmatprep.subr.bf16.mxu0 0
        %3711 = vmatpush1.bf16.msra.mxu0 %v3273
        %3712 = vmatprep.subr.bf16.mxu0 0
        %3713 = vmatpush1.bf16.msra.mxu0 %v3274
        %3714 = vmatprep.subr.bf16.mxu0 0
        %3715 = vmatpush1.bf16.msra.mxu0 %v3275
        %3716 = vmatprep.subr.bf16.mxu0 0
        %3717 = vmatpush1.bf16.msra.mxu0 %v3276
        %3718 = vmatprep.subr.bf16.mxu0 0
        %3719 = vmatpush1.bf16.msra.mxu0 %v3277
        %3720 = vmatprep.subr.bf16.mxu0 0
        %3721 = vmatpush1.bf16.msra.mxu0 %v3278
        %3722 = vmatprep.subr.bf16.mxu0 0
        %3723 = vmatpush1.bf16.msra.mxu0 %v3279
        %3724 = vmatprep.subr.bf16.mxu0 0
        %3725 = vmatpush1.bf16.msra.mxu0 %v3280
        %3726 = vmatprep.subr.bf16.mxu0 0
        %3727 = vmatpush1.bf16.msra.mxu0 %v3281
        %3728 = vmatprep.subr.bf16.mxu0 0
        %3729 = vmatpush1.bf16.msra.mxu0 %v3282
        %3730 = vmatprep.subr.bf16.mxu0 0
        %3731 = vmatpush1.bf16.msra.mxu0 %v3283
        %3732 = vmatprep.subr.bf16.mxu0 0
        %3733 = vmatpush1.bf16.msra.mxu0 %v3284
        %3734 = vmatprep.subr.bf16.mxu0 0
        %3735 = vmatpush1.bf16.msra.mxu0 %v3285
        %3736 = vmatprep.mubr.bf16.mxu0 %v2667
        %3737 = vmatmul.mubr.bf16.gmra.mrb[0].mxu0 %v2666
        %v3738 = vpop.f32.mrb[0].mxu0
        %v3739 = vadd.f32 %v3578, %v3738
        %v3740 = vpop.f32.mrb[0].mxu0
        %v3741 = vpop.f32.mrb[0].mxu0
        %v3742 = vadd.f32 %v3581, %v3741
        %v3743 = vpop.f32.mrb[0].mxu0
        %3744 = vmatprep.mubr.bf16.mxu0 %v2676
        %3745 = vmatmul.mubr.bf16.gmra.mrb[0].mxu0 %v2675
        %v3746 = vpop.f32.mrb[0].mxu0
        %v3747 = vadd.f32 %v3586, %v3746
        %v3748 = vpop.f32.mrb[0].mxu0
        %v3749 = vpop.f32.mrb[0].mxu0
        %v3750 = vadd.f32 %v3589, %v3749
        %v3751 = vpop.f32.mrb[0].mxu0
        %3752 = vmatprep.mubr.bf16.mxu0 %v2685
        %3753 = vmatmul.mubr.bf16.gmra.mrb[0].mxu0 %v2684
        %v3754 = vpop.f32.mrb[0].mxu0
        %v3755 = vadd.f32 %v3594, %v3754
        %v3756 = vpop.f32.mrb[0].mxu0
        %v3757 = vpop.f32.mrb[0].mxu0
        %v3758 = vadd.f32 %v3597, %v3757
        %v3759 = vpop.f32.mrb[0].mxu0
        %3760 = vmatprep.mubr.bf16.mxu0 %v2694
        %3761 = vmatmul.mubr.bf16.gmra.mrb[0].mxu0 %v2693
        %v3762 = vpop.f32.mrb[0].mxu0
        %v3763 = vadd.f32 %v3602, %v3762
        %v3764 = vpop.f32.mrb[0].mxu0
        %v3765 = vpop.f32.mrb[0].mxu0
        %v3766 = vadd.f32 %v3605, %v3765
        %v3767 = vpop.f32.mrb[0].mxu0
        %3768 = vmatprep.mubr.bf16.mxu0 %v2703
        %3769 = vmatmul.mubr.bf16.gmra.mrb[0].mxu0 %v2702
        %v3770 = vpop.f32.mrb[0].mxu0
        %v3771 = vadd.f32 %v3610, %v3770
        %v3772 = vpop.f32.mrb[0].mxu0
        %v3773 = vpop.f32.mrb[0].mxu0
        %v3774 = vadd.f32 %v3613, %v3773
        %v3775 = vpop.f32.mrb[0].mxu0
        %3776 = vmatprep.mubr.bf16.mxu0 %v2712
        %3777 = vmatmul.mubr.bf16.gmra.mrb[0].mxu0 %v2711
        %v3778 = vpop.f32.mrb[0].mxu0
        %v3779 = vadd.f32 %v3618, %v3778
        %v3780 = vpop.f32.mrb[0].mxu0
        %v3781 = vpop.f32.mrb[0].mxu0
        %v3782 = vadd.f32 %v3621, %v3781
        %v3783 = vpop.f32.mrb[0].mxu0
        %3784 = vmatprep.mubr.bf16.mxu0 %v2721
        %3785 = vmatmul.mubr.bf16.gmra.mrb[0].mxu0 %v2720
        %v3786 = vpop.f32.mrb[0].mxu0
        %v3787 = vadd.f32 %v3626, %v3786
        %v3788 = vpop.f32.mrb[0].mxu0
        %v3789 = vpop.f32.mrb[0].mxu0
        %v3790 = vadd.f32 %v3629, %v3789
        %v3791 = vpop.f32.mrb[0].mxu0
        %3792 = vmatprep.mubr.bf16.mxu0 %v2730
        %3793 = vmatmul.mubr.bf16.gmra.mrb[0].mxu0 %v2729
        %v3794 = vpop.f32.mrb[0].mxu0
        %v3795 = vadd.f32 %v3634, %v3794
        %v3796 = vpop.f32.mrb[0].mxu0
        %v3797 = vpop.f32.mrb[0].mxu0
        %v3798 = vadd.f32 %v3637, %v3797
        %v3799 = vpop.f32.mrb[0].mxu0
        %3800 = vmatprep.mubr.bf16.mxu0 %v2739
        %3801 = vmatmul.mubr.bf16.gmra.mrb[0].mxu0 %v2738
        %v3802 = vpop.f32.mrb[0].mxu0
        %v3803 = vadd.f32 %v3642, %v3802
        %v3804 = vpop.f32.mrb[0].mxu0
        %v3805 = vpop.f32.mrb[0].mxu0
        %v3806 = vadd.f32 %v3645, %v3805
        %v3807 = vpop.f32.mrb[0].mxu0
        %3808 = vmatprep.mubr.bf16.mxu0 %v2748
        %3809 = vmatmul.mubr.bf16.gmra.mrb[0].mxu0 %v2747
        %v3810 = vpop.f32.mrb[0].mxu0
        %v3811 = vadd.f32 %v3650, %v3810
        %v3812 = vpop.f32.mrb[0].mxu0
        %v3813 = vpop.f32.mrb[0].mxu0
        %v3814 = vadd.f32 %v3653, %v3813
        %v3815 = vpop.f32.mrb[0].mxu0
        %3816 = vmatprep.mubr.bf16.mxu0 %v2757
        %3817 = vmatmul.mubr.bf16.gmra.mrb[0].mxu0 %v2756
        %v3818 = vpop.f32.mrb[0].mxu0
        %v3819 = vadd.f32 %v3658, %v3818
        %v3820 = vpop.f32.mrb[0].mxu0
        %v3821 = vpop.f32.mrb[0].mxu0
        %v3822 = vadd.f32 %v3661, %v3821
        %v3823 = vpop.f32.mrb[0].mxu0
        %3824 = vmatprep.mubr.bf16.mxu0 %v2766
        %3825 = vmatmul.mubr.bf16.gmra.mrb[0].mxu0 %v2765
        %v3826 = vpop.f32.mrb[0].mxu0
        %v3827 = vadd.f32 %v3666, %v3826
        %v3828 = vpop.f32.mrb[0].mxu0
        %v3829 = vpop.f32.mrb[0].mxu0
        %v3830 = vadd.f32 %v3669, %v3829
        %v3831 = vpop.f32.mrb[0].mxu0
        %3832 = vmatprep.mubr.bf16.mxu0 %v2775
        %3833 = vmatmul.mubr.bf16.gmra.mrb[0].mxu0 %v2774
        %v3834 = vpop.f32.mrb[0].mxu0
        %v3835 = vadd.f32 %v3674, %v3834
        %v3836 = vpop.f32.mrb[0].mxu0
        %v3837 = vpop.f32.mrb[0].mxu0
        %v3838 = vadd.f32 %v3677, %v3837
        %v3839 = vpop.f32.mrb[0].mxu0
        %3840 = vmatprep.mubr.bf16.mxu0 %v2784
        %3841 = vmatmul.mubr.bf16.gmra.mrb[0].mxu0 %v2783
        %v3842 = vpop.f32.mrb[0].mxu0
        %v3843 = vadd.f32 %v3682, %v3842
        %v3844 = vpop.f32.mrb[0].mxu0
        %v3845 = vpop.f32.mrb[0].mxu0
        %v3846 = vadd.f32 %v3685, %v3845
        %v3847 = vpop.f32.mrb[0].mxu0
        %3848 = vmatprep.mubr.bf16.mxu0 %v2793
        %3849 = vmatmul.mubr.bf16.gmra.mrb[0].mxu0 %v2792
        %v3850 = vpop.f32.mrb[0].mxu0
        %v3851 = vadd.f32 %v3690, %v3850
        %v3852 = vpop.f32.mrb[0].mxu0
        %v3853 = vpop.f32.mrb[0].mxu0
        %v3854 = vadd.f32 %v3693, %v3853
        %v3855 = vpop.f32.mrb[0].mxu0
        %3856 = vmatprep.mubr.bf16.mxu0 %v2802
        %3857 = vmatmul.mubr.bf16.gmra.mrb[0].mxu0 %v2801
        %v3858 = vpop.f32.mrb[0].mxu0
        %v3859 = vadd.f32 %v3698, %v3858
        %v3860 = vpop.f32.mrb[0].mxu0
        %v3861 = vpop.f32.mrb[0].mxu0
        %v3862 = vadd.f32 %v3701, %v3861
        %v3863 = vpop.f32.mrb[0].mxu0
        %3864 = vdwg.mxu0
        %3865 = vmatprep.subr.bf16.mxu0 0
        %3866 = vmatpush1.bf16.msra.mxu0 %v3286
        %3867 = vmatprep.subr.bf16.mxu0 0
        %3868 = vmatpush1.bf16.msra.mxu0 %v3287
        %3869 = vmatprep.subr.bf16.mxu0 0
        %3870 = vmatpush1.bf16.msra.mxu0 %v3288
        %3871 = vmatprep.subr.bf16.mxu0 0
        %3872 = vmatpush1.bf16.msra.mxu0 %v3289
        %3873 = vmatprep.subr.bf16.mxu0 0
        %3874 = vmatpush1.bf16.msra.mxu0 %v3290
        %3875 = vmatprep.subr.bf16.mxu0 0
        %3876 = vmatpush1.bf16.msra.mxu0 %v3291
        %3877 = vmatprep.subr.bf16.mxu0 0
        %3878 = vmatpush1.bf16.msra.mxu0 %v3292
        %3879 = vmatprep.subr.bf16.mxu0 0
        %3880 = vmatpush1.bf16.msra.mxu0 %v3293
        %3881 = vmatprep.subr.bf16.mxu0 0
        %3882 = vmatpush1.bf16.msra.mxu0 %v3294
        %3883 = vmatprep.subr.bf16.mxu0 0
        %3884 = vmatpush1.bf16.msra.mxu0 %v3295
        %3885 = vmatprep.subr.bf16.mxu0 0
        %3886 = vmatpush1.bf16.msra.mxu0 %v3296
        %3887 = vmatprep.subr.bf16.mxu0 0
        %3888 = vmatpush1.bf16.msra.mxu0 %v3297
        %3889 = vmatprep.subr.bf16.mxu0 0
        %3890 = vmatpush1.bf16.msra.mxu0 %v3298
        %3891 = vmatprep.subr.bf16.mxu0 0
        %3892 = vmatpush1.bf16.msra.mxu0 %v3299
        %3893 = vmatprep.subr.bf16.mxu0 0
        %3894 = vmatpush1.bf16.msra.mxu0 %v3300
        %3895 = vmatprep.subr.bf16.mxu0 0
        %3896 = vmatpush1.bf16.msra.mxu0 %v3301
        %3897 = vmatprep.mubr.bf16.mxu0 %v2669
        %3898 = vmatmul.mubr.bf16.gmra.mrb[0].mxu0 %v2668
        %v3899 = vpop.f32.mrb[0].mxu0
        %v3900 = vadd.f32 %v3739, %v3899
        %v3901 = vpop.f32.mrb[0].mxu0
        %v3902 = vpop.f32.mrb[0].mxu0
        %v3903 = vadd.f32 %v3742, %v3902
        %v3904 = vpop.f32.mrb[0].mxu0
        %3905 = vmatprep.mubr.bf16.mxu0 %v2678
        %3906 = vmatmul.mubr.bf16.gmra.mrb[0].mxu0 %v2677
        %v3907 = vpop.f32.mrb[0].mxu0
        %v3908 = vadd.f32 %v3747, %v3907
        %v3909 = vpop.f32.mrb[0].mxu0
        %v3910 = vpop.f32.mrb[0].mxu0
        %v3911 = vadd.f32 %v3750, %v3910
        %v3912 = vpop.f32.mrb[0].mxu0
        %3913 = vmatprep.mubr.bf16.mxu0 %v2687
        %3914 = vmatmul.mubr.bf16.gmra.mrb[0].mxu0 %v2686
        %v3915 = vpop.f32.mrb[0].mxu0
        %v3916 = vadd.f32 %v3755, %v3915
        %v3917 = vpop.f32.mrb[0].mxu0
        %v3918 = vpop.f32.mrb[0].mxu0
        %v3919 = vadd.f32 %v3758, %v3918
        %v3920 = vpop.f32.mrb[0].mxu0
        %3921 = vmatprep.mubr.bf16.mxu0 %v2696
        %3922 = vmatmul.mubr.bf16.gmra.mrb[0].mxu0 %v2695
        %v3923 = vpop.f32.mrb[0].mxu0
        %v3924 = vadd.f32 %v3763, %v3923
        %v3925 = vpop.f32.mrb[0].mxu0
        %v3926 = vpop.f32.mrb[0].mxu0
        %v3927 = vadd.f32 %v3766, %v3926
        %v3928 = vpop.f32.mrb[0].mxu0
        %3929 = vmatprep.mubr.bf16.mxu0 %v2705
        %3930 = vmatmul.mubr.bf16.gmra.mrb[0].mxu0 %v2704
        %v3931 = vpop.f32.mrb[0].mxu0
        %v3932 = vadd.f32 %v3771, %v3931
        %v3933 = vpop.f32.mrb[0].mxu0
        %v3934 = vpop.f32.mrb[0].mxu0
        %v3935 = vadd.f32 %v3774, %v3934
        %v3936 = vpop.f32.mrb[0].mxu0
        %3937 = vmatprep.mubr.bf16.mxu0 %v2714
        %3938 = vmatmul.mubr.bf16.gmra.mrb[0].mxu0 %v2713
        %v3939 = vpop.f32.mrb[0].mxu0
        %v3940 = vadd.f32 %v3779, %v3939
        %v3941 = vpop.f32.mrb[0].mxu0
        %v3942 = vpop.f32.mrb[0].mxu0
        %v3943 = vadd.f32 %v3782, %v3942
        %v3944 = vpop.f32.mrb[0].mxu0
        %3945 = vmatprep.mubr.bf16.mxu0 %v2723
        %3946 = vmatmul.mubr.bf16.gmra.mrb[0].mxu0 %v2722
        %v3947 = vpop.f32.mrb[0].mxu0
        %v3948 = vadd.f32 %v3787, %v3947
        %v3949 = vpop.f32.mrb[0].mxu0
        %v3950 = vpop.f32.mrb[0].mxu0
        %v3951 = vadd.f32 %v3790, %v3950
        %v3952 = vpop.f32.mrb[0].mxu0
        %3953 = vmatprep.mubr.bf16.mxu0 %v2732
        %3954 = vmatmul.mubr.bf16.gmra.mrb[0].mxu0 %v2731
        %v3955 = vpop.f32.mrb[0].mxu0
        %v3956 = vadd.f32 %v3795, %v3955
        %v3957 = vpop.f32.mrb[0].mxu0
        %v3958 = vpop.f32.mrb[0].mxu0
        %v3959 = vadd.f32 %v3798, %v3958
        %v3960 = vpop.f32.mrb[0].mxu0
        %3961 = vmatprep.mubr.bf16.mxu0 %v2741
        %3962 = vmatmul.mubr.bf16.gmra.mrb[0].mxu0 %v2740
        %v3963 = vpop.f32.mrb[0].mxu0
        %v3964 = vadd.f32 %v3803, %v3963
        %v3965 = vpop.f32.mrb[0].mxu0
        %v3966 = vpop.f32.mrb[0].mxu0
        %v3967 = vadd.f32 %v3806, %v3966
        %v3968 = vpop.f32.mrb[0].mxu0
        %3969 = vmatprep.mubr.bf16.mxu0 %v2750
        %3970 = vmatmul.mubr.bf16.gmra.mrb[0].mxu0 %v2749
        %v3971 = vpop.f32.mrb[0].mxu0
        %v3972 = vadd.f32 %v3811, %v3971
        %v3973 = vpop.f32.mrb[0].mxu0
        %v3974 = vpop.f32.mrb[0].mxu0
        %v3975 = vadd.f32 %v3814, %v3974
        %v3976 = vpop.f32.mrb[0].mxu0
        %3977 = vmatprep.mubr.bf16.mxu0 %v2759
        %3978 = vmatmul.mubr.bf16.gmra.mrb[0].mxu0 %v2758
        %v3979 = vpop.f32.mrb[0].mxu0
        %v3980 = vadd.f32 %v3819, %v3979
        %v3981 = vpop.f32.mrb[0].mxu0
        %v3982 = vpop.f32.mrb[0].mxu0
        %v3983 = vadd.f32 %v3822, %v3982
        %v3984 = vpop.f32.mrb[0].mxu0
        %3985 = vmatprep.mubr.bf16.mxu0 %v2768
        %3986 = vmatmul.mubr.bf16.gmra.mrb[0].mxu0 %v2767
        %v3987 = vpop.f32.mrb[0].mxu0
        %v3988 = vadd.f32 %v3827, %v3987
        %v3989 = vpop.f32.mrb[0].mxu0
        %v3990 = vpop.f32.mrb[0].mxu0
        %v3991 = vadd.f32 %v3830, %v3990
        %v3992 = vpop.f32.mrb[0].mxu0
        %3993 = vmatprep.mubr.bf16.mxu0 %v2777
        %3994 = vmatmul.mubr.bf16.gmra.mrb[0].mxu0 %v2776
        %v3995 = vpop.f32.mrb[0].mxu0
        %v3996 = vadd.f32 %v3835, %v3995
        %v3997 = vpop.f32.mrb[0].mxu0
        %v3998 = vpop.f32.mrb[0].mxu0
        %v3999 = vadd.f32 %v3838, %v3998
        %v4000 = vpop.f32.mrb[0].mxu0
        %4001 = vmatprep.mubr.bf16.mxu0 %v2786
        %4002 = vmatmul.mubr.bf16.gmra.mrb[0].mxu0 %v2785
        %v4003 = vpop.f32.mrb[0].mxu0
        %v4004 = vadd.f32 %v3843, %v4003
        %v4005 = vpop.f32.mrb[0].mxu0
        %v4006 = vpop.f32.mrb[0].mxu0
        %v4007 = vadd.f32 %v3846, %v4006
        %v4008 = vpop.f32.mrb[0].mxu0
        %4009 = vmatprep.mubr.bf16.mxu0 %v2795
        %4010 = vmatmul.mubr.bf16.gmra.mrb[0].mxu0 %v2794
        %v4011 = vpop.f32.mrb[0].mxu0
        %v4012 = vadd.f32 %v3851, %v4011
        %v4013 = vpop.f32.mrb[0].mxu0
        %v4014 = vpop.f32.mrb[0].mxu0
        %v4015 = vadd.f32 %v3854, %v4014
        %v4016 = vpop.f32.mrb[0].mxu0
        %4017 = vmatprep.mubr.bf16.mxu0 %v2804
        %4018 = vmatmul.mubr.bf16.gmra.mrb[0].mxu0 %v2803
        %v4019 = vpop.f32.mrb[0].mxu0
        %v4020 = vadd.f32 %v3859, %v4019
        %v4021 = vpop.f32.mrb[0].mxu0
        %v4022 = vpop.f32.mrb[0].mxu0
        %v4023 = vadd.f32 %v3862, %v4022
        %v4024 = vpop.f32.mrb[0].mxu0
        %4025 = vdwg.mxu0
        %4026 = vmatprep.subr.bf16.mxu0 0
        %4027 = vmatpush1.bf16.msra.mxu0 %v3302
        %4028 = vmatprep.subr.bf16.mxu0 0
        %4029 = vmatpush1.bf16.msra.mxu0 %v3303
        %4030 = vmatprep.subr.bf16.mxu0 0
        %4031 = vmatpush1.bf16.msra.mxu0 %v3304
        %4032 = vmatprep.subr.bf16.mxu0 0
        %4033 = vmatpush1.bf16.msra.mxu0 %v3305
        %4034 = vmatprep.subr.bf16.mxu0 0
        %4035 = vmatpush1.bf16.msra.mxu0 %v3306
        %4036 = vmatprep.subr.bf16.mxu0 0
        %4037 = vmatpush1.bf16.msra.mxu0 %v3307
        %4038 = vmatprep.subr.bf16.mxu0 0
        %4039 = vmatpush1.bf16.msra.mxu0 %v3308
        %4040 = vmatprep.subr.bf16.mxu0 0
        %4041 = vmatpush1.bf16.msra.mxu0 %v3309
        %4042 = vmatprep.subr.bf16.mxu0 0
        %4043 = vmatpush1.bf16.msra.mxu0 0
        %4044 = vmatprep.subr.bf16.mxu0 0
        %4045 = vmatpush1.bf16.msra.mxu0 0
        %4046 = vmatprep.subr.bf16.mxu0 0
        %4047 = vmatpush1.bf16.msra.mxu0 0
        %4048 = vmatprep.subr.bf16.mxu0 0
        %4049 = vmatpush1.bf16.msra.mxu0 0
        %4050 = vmatprep.subr.bf16.mxu0 0
        %4051 = vmatpush1.bf16.msra.mxu0 0
        %4052 = vmatprep.subr.bf16.mxu0 0
        %4053 = vmatpush1.bf16.msra.mxu0 0
        %4054 = vmatprep.subr.bf16.mxu0 0
        %4055 = vmatpush1.bf16.msra.mxu0 0
        %4056 = vmatprep.subr.bf16.mxu0 0
        %4057 = vmatpush1.bf16.msra.mxu0 0
        %4058 = vmatprep.mubr.bf16.mxu0 0
        %4059 = vmatmul.mubr.bf16.gmra.mrb[0].mxu0 %v2670
        %v4060 = vpop.f32.mrb[0].mxu0
        %v4061 = vadd.f32 %v3900, %v4060
        %v4062 = vpop.f32.mrb[0].mxu0
        %v4063 = vpop.f32.mrb[0].mxu0
        %v4064 = vadd.f32 %v3903, %v4063
        %v4065 = vpop.f32.mrb[0].mxu0
        %4066 = vmatprep.mubr.bf16.mxu0 0
        %4067 = vmatmul.mubr.bf16.gmra.mrb[0].mxu0 %v2679
        %v4068 = vpop.f32.mrb[0].mxu0
        %v4069 = vadd.f32 %v3908, %v4068
        %v4070 = vpop.f32.mrb[0].mxu0
        %v4071 = vpop.f32.mrb[0].mxu0
        %v4072 = vadd.f32 %v3911, %v4071
        %v4073 = vpop.f32.mrb[0].mxu0
        %4074 = vmatprep.mubr.bf16.mxu0 0
        %4075 = vmatmul.mubr.bf16.gmra.mrb[0].mxu0 %v2688
        %v4076 = vpop.f32.mrb[0].mxu0
        %v4077 = vadd.f32 %v3916, %v4076
        %v4078 = vpop.f32.mrb[0].mxu0
        %v4079 = vpop.f32.mrb[0].mxu0
        %v4080 = vadd.f32 %v3919, %v4079
        %v4081 = vpop.f32.mrb[0].mxu0
        %4082 = vmatprep.mubr.bf16.mxu0 0
        %4083 = vmatmul.mubr.bf16.gmra.mrb[0].mxu0 %v2697
        %v4084 = vpop.f32.mrb[0].mxu0
        %v4085 = vadd.f32 %v3924, %v4084
        %v4086 = vpop.f32.mrb[0].mxu0
        %v4087 = vpop.f32.mrb[0].mxu0
        %v4088 = vadd.f32 %v3927, %v4087
        %v4089 = vpop.f32.mrb[0].mxu0
        %4090 = vmatprep.mubr.bf16.mxu0 0
        %4091 = vmatmul.mubr.bf16.gmra.mrb[0].mxu0 %v2706
        %v4092 = vpop.f32.mrb[0].mxu0
        %v4093 = vadd.f32 %v3932, %v4092
        %v4094 = vpop.f32.mrb[0].mxu0
        %v4095 = vpop.f32.mrb[0].mxu0
        %v4096 = vadd.f32 %v3935, %v4095
        %v4097 = vpop.f32.mrb[0].mxu0
        %4098 = vmatprep.mubr.bf16.mxu0 0
        %4099 = vmatmul.mubr.bf16.gmra.mrb[0].mxu0 %v2715
        %v4100 = vpop.f32.mrb[0].mxu0
        %v4101 = vadd.f32 %v3940, %v4100
        %v4102 = vpop.f32.mrb[0].mxu0
        %v4103 = vpop.f32.mrb[0].mxu0
        %v4104 = vadd.f32 %v3943, %v4103
        %v4105 = vpop.f32.mrb[0].mxu0
        %4106 = vmatprep.mubr.bf16.mxu0 0
        %4107 = vmatmul.mubr.bf16.gmra.mrb[0].mxu0 %v2724
        %v4108 = vpop.f32.mrb[0].mxu0
        %v4109 = vadd.f32 %v3948, %v4108
        %v4110 = vpop.f32.mrb[0].mxu0
        %v4111 = vpop.f32.mrb[0].mxu0
        %v4112 = vadd.f32 %v3951, %v4111
        %v4113 = vpop.f32.mrb[0].mxu0
        %4114 = vmatprep.mubr.bf16.mxu0 0
        %4115 = vmatmul.mubr.bf16.gmra.mrb[0].mxu0 %v2733
        %v4116 = vpop.f32.mrb[0].mxu0
        %v4117 = vadd.f32 %v3956, %v4116
        %v4118 = vpop.f32.mrb[0].mxu0
        %v4119 = vpop.f32.mrb[0].mxu0
        %v4120 = vadd.f32 %v3959, %v4119
        %v4121 = vpop.f32.mrb[0].mxu0
        %4122 = vmatprep.mubr.bf16.mxu0 0
        %4123 = vmatmul.mubr.bf16.gmra.mrb[0].mxu0 %v2742
        %v4124 = vpop.f32.mrb[0].mxu0
        %v4125 = vadd.f32 %v3964, %v4124
        %v4126 = vpop.f32.mrb[0].mxu0
        %v4127 = vpop.f32.mrb[0].mxu0
        %v4128 = vadd.f32 %v3967, %v4127
        %v4129 = vpop.f32.mrb[0].mxu0
        %4130 = vmatprep.mubr.bf16.mxu0 0
        %4131 = vmatmul.mubr.bf16.gmra.mrb[0].mxu0 %v2751
        %v4132 = vpop.f32.mrb[0].mxu0
        %v4133 = vadd.f32 %v3972, %v4132
        %v4134 = vpop.f32.mrb[0].mxu0
        %v4135 = vpop.f32.mrb[0].mxu0
        %v4136 = vadd.f32 %v3975, %v4135
        %v4137 = vpop.f32.mrb[0].mxu0
        %4138 = vmatprep.mubr.bf16.mxu0 0
        %4139 = vmatmul.mubr.bf16.gmra.mrb[0].mxu0 %v2760
        %v4140 = vpop.f32.mrb[0].mxu0
        %v4141 = vadd.f32 %v3980, %v4140
        %v4142 = vpop.f32.mrb[0].mxu0
        %v4143 = vpop.f32.mrb[0].mxu0
        %v4144 = vadd.f32 %v3983, %v4143
        %v4145 = vpop.f32.mrb[0].mxu0
        %4146 = vmatprep.mubr.bf16.mxu0 0
        %4147 = vmatmul.mubr.bf16.gmra.mrb[0].mxu0 %v2769
        %v4148 = vpop.f32.mrb[0].mxu0
        %v4149 = vadd.f32 %v3988, %v4148
        %v4150 = vpop.f32.mrb[0].mxu0
        %v4151 = vpop.f32.mrb[0].mxu0
        %v4152 = vadd.f32 %v3991, %v4151
        %v4153 = vpop.f32.mrb[0].mxu0
        %4154 = vmatprep.mubr.bf16.mxu0 0
        %4155 = vmatmul.mubr.bf16.gmra.mrb[0].mxu0 %v2778
        %v4156 = vpop.f32.mrb[0].mxu0
        %v4157 = vadd.f32 %v3996, %v4156
        %v4158 = vpop.f32.mrb[0].mxu0
        %v4159 = vpop.f32.mrb[0].mxu0
        %v4160 = vadd.f32 %v3999, %v4159
        %v4161 = vpop.f32.mrb[0].mxu0
        %4162 = vmatprep.mubr.bf16.mxu0 0
        %4163 = vmatmul.mubr.bf16.gmra.mrb[0].mxu0 %v2787
        %v4164 = vpop.f32.mrb[0].mxu0
        %v4165 = vadd.f32 %v4004, %v4164
        %v4166 = vpop.f32.mrb[0].mxu0
        %v4167 = vpop.f32.mrb[0].mxu0
        %v4168 = vadd.f32 %v4007, %v4167
        %v4169 = vpop.f32.mrb[0].mxu0
        %4170 = vmatprep.mubr.bf16.mxu0 0
        %4171 = vmatmul.mubr.bf16.gmra.mrb[0].mxu0 %v2796
        %v4172 = vpop.f32.mrb[0].mxu0
        %v4173 = vadd.f32 %v4012, %v4172
        %v4174 = vpop.f32.mrb[0].mxu0
        %v4175 = vpop.f32.mrb[0].mxu0
        %v4176 = vadd.f32 %v4015, %v4175
        %v4177 = vpop.f32.mrb[0].mxu0
        %4178 = vmatprep.mubr.bf16.mxu0 0
        %4179 = vmatmul.mubr.bf16.gmra.mrb[0].mxu0 %v2805
        %v4180 = vpop.f32.mrb[0].mxu0
        %v4181 = vadd.f32 %v4020, %v4180
        %v4182 = vpop.f32.mrb[0].mxu0
        %v4183 = vpop.f32.mrb[0].mxu0
        %v4184 = vadd.f32 %v4023, %v4183
        %v4185 = vpop.f32.mrb[0].mxu0
        %4186 = vdwg.mxu0
        %v4187 = vmax.f32 %v4061, 0.0
        %v4188 = vmax.f32 %v4064, 0.0
        %v4189 = vmax.f32 %v4069, 0.0
        %v4190 = vmax.f32 %v4072, 0.0
        %v4191 = vmax.f32 %v4077, 0.0
        %v4192 = vmax.f32 %v4080, 0.0
        %v4193 = vmax.f32 %v4085, 0.0
        %v4194 = vmax.f32 %v4088, 0.0
        %v4195 = vmax.f32 %v4093, 0.0
        %v4196 = vmax.f32 %v4096, 0.0
        %v4197 = vmax.f32 %v4101, 0.0
        %v4198 = vmax.f32 %v4104, 0.0
        %v4199 = vmax.f32 %v4109, 0.0
        %v4200 = vmax.f32 %v4112, 0.0
        %v4201 = vmax.f32 %v4117, 0.0
        %v4202 = vmax.f32 %v4120, 0.0
        %v4203 = vmax.f32 %v4125, 0.0
        %v4204 = vmax.f32 %v4128, 0.0
        %v4205 = vmax.f32 %v4133, 0.0
        %v4206 = vmax.f32 %v4136, 0.0
        %v4207 = vmax.f32 %v4141, 0.0
        %v4208 = vmax.f32 %v4144, 0.0
        %v4209 = vmax.f32 %v4149, 0.0
        %v4210 = vmax.f32 %v4152, 0.0
        %v4211 = vmax.f32 %v4157, 0.0
        %v4212 = vmax.f32 %v4160, 0.0
        %v4213 = vmax.f32 %v4165, 0.0
        %v4214 = vmax.f32 %v4168, 0.0
        %v4215 = vmax.f32 %v4173, 0.0
        %v4216 = vmax.f32 %v4176, 0.0
        %v4217 = vmax.f32 %v4181, 0.0
        %v4218 = vmax.f32 %v4184, 0.0
        %v4219 = vpack.c.bf16 %v4188, %v4187
        %v4220 = vpack.c.bf16 %v4190, %v4189
        %v4221 = vpack.c.bf16 %v4192, %v4191
        %v4222 = vpack.c.bf16 %v4194, %v4193
        %v4223 = vpack.c.bf16 %v4196, %v4195
        %v4224 = vpack.c.bf16 %v4198, %v4197
        %v4225 = vpack.c.bf16 %v4200, %v4199
        %v4226 = vpack.c.bf16 %v4202, %v4201
        %v4227 = vpack.c.bf16 %v4204, %v4203
        %v4228 = vpack.c.bf16 %v4206, %v4205
        %v4229 = vpack.c.bf16 %v4208, %v4207
        %v4230 = vpack.c.bf16 %v4210, %v4209
        %v4231 = vpack.c.bf16 %v4212, %v4211
        %v4232 = vpack.c.bf16 %v4214, %v4213
        %v4233 = vpack.c.bf16 %v4216, %v4215
        %v4234 = vpack.c.bf16 %v4218, %v4217
        %v4235 = vld [vmem:[%s3] sm:$0xff]
        %v4236 = vld [vmem:[%s3 + $0x8] sm:$0xff]
        %v4237 = vld [vmem:[%s3 + $0x10] sm:$0xff]
        %v4238 = vld [vmem:[%s3 + $0x18] sm:$0xff]
        %v4239 = vld [vmem:[%s3 + $0x20] sm:$0xff]
        %v4240 = vld [vmem:[%s3 + $0x28] sm:$0xff]
        %v4241 = vld [vmem:[%s3 + $0x30] sm:$0xff]
        %v4242 = vld [vmem:[%s3 + $0x38] sm:$0xff]
        %v4243 = vld [vmem:[%s3 + $0x40] sm:$0xff]
        %v4244 = vld [vmem:[%s3 + $0x48] sm:$0xff]
        %v4245 = vld [vmem:[%s3 + $0x50] sm:$0xff]
        %v4246 = vld [vmem:[%s3 + $0x58] sm:$0xff]
        %v4247 = vld [vmem:[%s3 + $0x60] sm:$0xff]
        %v4248 = vld [vmem:[%s3 + $0x68] sm:$0xff]
        %v4249 = vld [vmem:[%s3 + $0x70] sm:$0xff]
        %v4250 = vld [vmem:[%s3 + $0x78] sm:$0xff]
        %v4267 = vunpack.c.l.b16 %v4235
        %v4268 = vunpack.c.h.b16 %v4235
        %v4269 = vunpack.c.l.b16 %v4236
        %v4270 = vunpack.c.h.b16 %v4236
        %v4271 = vunpack.c.l.b16 %v4237
        %v4272 = vunpack.c.h.b16 %v4237
        %v4273 = vunpack.c.l.b16 %v4238
        %v4274 = vunpack.c.h.b16 %v4238
        %v4275 = vunpack.c.l.b16 %v4239
        %v4276 = vunpack.c.h.b16 %v4239
        %v4277 = vunpack.c.l.b16 %v4240
        %v4278 = vunpack.c.h.b16 %v4240
        %v4279 = vunpack.c.l.b16 %v4241
        %v4280 = vunpack.c.h.b16 %v4241
        %v4281 = vunpack.c.l.b16 %v4242
        %v4282 = vunpack.c.h.b16 %v4242
        %v4283 = vunpack.c.l.b16 %v4243
        %v4284 = vunpack.c.h.b16 %v4243
        %v4285 = vunpack.c.l.b16 %v4244
        %v4286 = vunpack.c.h.b16 %v4244
        %v4287 = vunpack.c.l.b16 %v4245
        %v4288 = vunpack.c.h.b16 %v4245
        %v4289 = vunpack.c.l.b16 %v4246
        %v4290 = vunpack.c.h.b16 %v4246
        %v4291 = vunpack.c.l.b16 %v4247
        %v4292 = vunpack.c.h.b16 %v4247
        %v4293 = vunpack.c.l.b16 %v4248
        %v4294 = vunpack.c.h.b16 %v4248
        %v4295 = vunpack.c.l.b16 %v4249
        %v4296 = vunpack.c.h.b16 %v4249
        %v4297 = vunpack.c.l.b16 %v4250
        %v4298 = vunpack.c.h.b16 %v4250
        %v4299 = vpack.c.b16 %v4269, %v4267
        %v4300 = vpack.c.b16 %v4270, %v4268
        %v4301 = vpack.c.b16 %v4273, %v4271
        %v4302 = vpack.c.b16 %v4274, %v4272
        %v4303 = vpack.c.b16 %v4277, %v4275
        %v4304 = vpack.c.b16 %v4278, %v4276
        %v4305 = vpack.c.b16 %v4281, %v4279
        %v4306 = vpack.c.b16 %v4282, %v4280
        %v4307 = vpack.c.b16 %v4285, %v4283
        %v4308 = vpack.c.b16 %v4286, %v4284
        %v4309 = vpack.c.b16 %v4289, %v4287
        %v4310 = vpack.c.b16 %v4290, %v4288
        %v4311 = vpack.c.b16 %v4293, %v4291
        %v4312 = vpack.c.b16 %v4294, %v4292
        %v4313 = vpack.c.b16 %v4297, %v4295
        %v4314 = vpack.c.b16 %v4298, %v4296
        %4331 = vmatprep.subr.bf16.mxu0 %v4300
        %4332 = vmatpush1.bf16.msra.mxu0 %v4299
        %4333 = vmatprep.subr.bf16.mxu0 %v4302
        %4334 = vmatpush1.bf16.msra.mxu0 %v4301
        %4335 = vmatprep.subr.bf16.mxu0 %v4304
        %4336 = vmatpush1.bf16.msra.mxu0 %v4303
        %4337 = vmatprep.subr.bf16.mxu0 %v4306
        %4338 = vmatpush1.bf16.msra.mxu0 %v4305
        %4339 = vmatprep.subr.bf16.mxu0 %v4308
        %4340 = vmatpush1.bf16.msra.mxu0 %v4307
        %4341 = vmatprep.subr.bf16.mxu0 %v4310
        %4342 = vmatpush1.bf16.msra.mxu0 %v4309
        %4343 = vmatprep.subr.bf16.mxu0 %v4312
        %4344 = vmatpush1.bf16.msra.mxu0 %v4311
        %4345 = vmatprep.subr.bf16.mxu0 %v4314
        %4346 = vmatpush1.bf16.msra.mxu0 %v4313
        %4347 = vmatprep.subr.bf16.mxu0 0
        %4348 = vmatpush1.bf16.msra.mxu0 0
        %4349 = vmatprep.subr.bf16.mxu0 0
        %4350 = vmatpush1.bf16.msra.mxu0 0
        %4351 = vmatprep.subr.bf16.mxu0 0
        %4352 = vmatpush1.bf16.msra.mxu0 0
        %4353 = vmatprep.subr.bf16.mxu0 0
        %4354 = vmatpush1.bf16.msra.mxu0 0
        %4355 = vmatprep.subr.bf16.mxu0 0
        %4356 = vmatpush1.bf16.msra.mxu0 0
        %4357 = vmatprep.subr.bf16.mxu0 0
        %4358 = vmatpush1.bf16.msra.mxu0 0
        %4359 = vmatprep.subr.bf16.mxu0 0
        %4360 = vmatpush1.bf16.msra.mxu0 0
        %4361 = vmatprep.subr.bf16.mxu0 0
        %4362 = vmatpush1.bf16.msra.mxu0 0
        %4363 = vmatprep.mubr.bf16.mxu0 0
        %4364 = vmatmul.mubr.bf16.gmra.mrb[0].mxu0 %v4219
        %v4365 = vpop.f32.mrb[0].mxu0
        %v4366 = vadd.f32 0.0, %v4365
        %v4367 = vpop.f32.mrb[0].mxu0
        %v4368 = vadd.f32 0.0, %v4367
        %v4369 = vpop.f32.mrb[0].mxu0
        %v4370 = vadd.f32 0.0, %v4369
        %v4371 = vpop.f32.mrb[0].mxu0
        %v4372 = vadd.f32 0.0, %v4371
        %4373 = vmatprep.mubr.bf16.mxu0 0
        %4374 = vmatmul.mubr.bf16.gmra.mrb[0].mxu0 %v4220
        %v4375 = vpop.f32.mrb[0].mxu0
        %v4376 = vadd.f32 0.0, %v4375
        %v4377 = vpop.f32.mrb[0].mxu0
        %v4378 = vadd.f32 0.0, %v4377
        %v4379 = vpop.f32.mrb[0].mxu0
        %v4380 = vadd.f32 0.0, %v4379
        %v4381 = vpop.f32.mrb[0].mxu0
        %v4382 = vadd.f32 0.0, %v4381
        %4383 = vmatprep.mubr.bf16.mxu0 0
        %4384 = vmatmul.mubr.bf16.gmra.mrb[0].mxu0 %v4221
        %v4385 = vpop.f32.mrb[0].mxu0
        %v4386 = vadd.f32 0.0, %v4385
        %v4387 = vpop.f32.mrb[0].mxu0
        %v4388 = vadd.f32 0.0, %v4387
        %v4389 = vpop.f32.mrb[0].mxu0
        %v4390 = vadd.f32 0.0, %v4389
        %v4391 = vpop.f32.mrb[0].mxu0
        %v4392 = vadd.f32 0.0, %v4391
        %4393 = vmatprep.mubr.bf16.mxu0 0
        %4394 = vmatmul.mubr.bf16.gmra.mrb[0].mxu0 %v4222
        %v4395 = vpop.f32.mrb[0].mxu0
        %v4396 = vadd.f32 0.0, %v4395
        %v4397 = vpop.f32.mrb[0].mxu0
        %v4398 = vadd.f32 0.0, %v4397
        %v4399 = vpop.f32.mrb[0].mxu0
        %v4400 = vadd.f32 0.0, %v4399
        %v4401 = vpop.f32.mrb[0].mxu0
        %v4402 = vadd.f32 0.0, %v4401
        %4403 = vmatprep.mubr.bf16.mxu0 0
        %4404 = vmatmul.mubr.bf16.gmra.mrb[0].mxu0 %v4223
        %v4405 = vpop.f32.mrb[0].mxu0
        %v4406 = vadd.f32 0.0, %v4405
        %v4407 = vpop.f32.mrb[0].mxu0
        %v4408 = vadd.f32 0.0, %v4407
        %v4409 = vpop.f32.mrb[0].mxu0
        %v4410 = vadd.f32 0.0, %v4409
        %v4411 = vpop.f32.mrb[0].mxu0
        %v4412 = vadd.f32 0.0, %v4411
        %4413 = vmatprep.mubr.bf16.mxu0 0
        %4414 = vmatmul.mubr.bf16.gmra.mrb[0].mxu0 %v4224
        %v4415 = vpop.f32.mrb[0].mxu0
        %v4416 = vadd.f32 0.0, %v4415
        %v4417 = vpop.f32.mrb[0].mxu0
        %v4418 = vadd.f32 0.0, %v4417
        %v4419 = vpop.f32.mrb[0].mxu0
        %v4420 = vadd.f32 0.0, %v4419
        %v4421 = vpop.f32.mrb[0].mxu0
        %v4422 = vadd.f32 0.0, %v4421
        %4423 = vmatprep.mubr.bf16.mxu0 0
        %4424 = vmatmul.mubr.bf16.gmra.mrb[0].mxu0 %v4225
        %v4425 = vpop.f32.mrb[0].mxu0
        %v4426 = vadd.f32 0.0, %v4425
        %v4427 = vpop.f32.mrb[0].mxu0
        %v4428 = vadd.f32 0.0, %v4427
        %v4429 = vpop.f32.mrb[0].mxu0
        %v4430 = vadd.f32 0.0, %v4429
        %v4431 = vpop.f32.mrb[0].mxu0
        %v4432 = vadd.f32 0.0, %v4431
        %4433 = vmatprep.mubr.bf16.mxu0 0
        %4434 = vmatmul.mubr.bf16.gmra.mrb[0].mxu0 %v4226
        %v4435 = vpop.f32.mrb[0].mxu0
        %v4436 = vadd.f32 0.0, %v4435
        %v4437 = vpop.f32.mrb[0].mxu0
        %v4438 = vadd.f32 0.0, %v4437
        %v4439 = vpop.f32.mrb[0].mxu0
        %v4440 = vadd.f32 0.0, %v4439
        %v4441 = vpop.f32.mrb[0].mxu0
        %v4442 = vadd.f32 0.0, %v4441
        %4443 = vmatprep.mubr.bf16.mxu0 0
        %4444 = vmatmul.mubr.bf16.gmra.mrb[0].mxu0 %v4227
        %v4445 = vpop.f32.mrb[0].mxu0
        %v4446 = vadd.f32 0.0, %v4445
        %v4447 = vpop.f32.mrb[0].mxu0
        %v4448 = vadd.f32 0.0, %v4447
        %v4449 = vpop.f32.mrb[0].mxu0
        %v4450 = vadd.f32 0.0, %v4449
        %v4451 = vpop.f32.mrb[0].mxu0
        %v4452 = vadd.f32 0.0, %v4451
        %4453 = vmatprep.mubr.bf16.mxu0 0
        %4454 = vmatmul.mubr.bf16.gmra.mrb[0].mxu0 %v4228
        %v4455 = vpop.f32.mrb[0].mxu0
        %v4456 = vadd.f32 0.0, %v4455
        %v4457 = vpop.f32.mrb[0].mxu0
        %v4458 = vadd.f32 0.0, %v4457
        %v4459 = vpop.f32.mrb[0].mxu0
        %v4460 = vadd.f32 0.0, %v4459
        %v4461 = vpop.f32.mrb[0].mxu0
        %v4462 = vadd.f32 0.0, %v4461
        %4463 = vmatprep.mubr.bf16.mxu0 0
        %4464 = vmatmul.mubr.bf16.gmra.mrb[0].mxu0 %v4229
        %v4465 = vpop.f32.mrb[0].mxu0
        %v4466 = vadd.f32 0.0, %v4465
        %v4467 = vpop.f32.mrb[0].mxu0
        %v4468 = vadd.f32 0.0, %v4467
        %v4469 = vpop.f32.mrb[0].mxu0
        %v4470 = vadd.f32 0.0, %v4469
        %v4471 = vpop.f32.mrb[0].mxu0
        %v4472 = vadd.f32 0.0, %v4471
        %4473 = vmatprep.mubr.bf16.mxu0 0
        %4474 = vmatmul.mubr.bf16.gmra.mrb[0].mxu0 %v4230
        %v4475 = vpop.f32.mrb[0].mxu0
        %v4476 = vadd.f32 0.0, %v4475
        %v4477 = vpop.f32.mrb[0].mxu0
        %v4478 = vadd.f32 0.0, %v4477
        %v4479 = vpop.f32.mrb[0].mxu0
        %v4480 = vadd.f32 0.0, %v4479
        %v4481 = vpop.f32.mrb[0].mxu0
        %v4482 = vadd.f32 0.0, %v4481
        %4483 = vmatprep.mubr.bf16.mxu0 0
        %4484 = vmatmul.mubr.bf16.gmra.mrb[0].mxu0 %v4231
        %v4485 = vpop.f32.mrb[0].mxu0
        %v4486 = vadd.f32 0.0, %v4485
        %v4487 = vpop.f32.mrb[0].mxu0
        %v4488 = vadd.f32 0.0, %v4487
        %v4489 = vpop.f32.mrb[0].mxu0
        %v4490 = vadd.f32 0.0, %v4489
        %v4491 = vpop.f32.mrb[0].mxu0
        %v4492 = vadd.f32 0.0, %v4491
        %4493 = vmatprep.mubr.bf16.mxu0 0
        %4494 = vmatmul.mubr.bf16.gmra.mrb[0].mxu0 %v4232
        %v4495 = vpop.f32.mrb[0].mxu0
        %v4496 = vadd.f32 0.0, %v4495
        %v4497 = vpop.f32.mrb[0].mxu0
        %v4498 = vadd.f32 0.0, %v4497
        %v4499 = vpop.f32.mrb[0].mxu0
        %v4500 = vadd.f32 0.0, %v4499
        %v4501 = vpop.f32.mrb[0].mxu0
        %v4502 = vadd.f32 0.0, %v4501
        %4503 = vmatprep.mubr.bf16.mxu0 0
        %4504 = vmatmul.mubr.bf16.gmra.mrb[0].mxu0 %v4233
        %v4505 = vpop.f32.mrb[0].mxu0
        %v4506 = vadd.f32 0.0, %v4505
        %v4507 = vpop.f32.mrb[0].mxu0
        %v4508 = vadd.f32 0.0, %v4507
        %v4509 = vpop.f32.mrb[0].mxu0
        %v4510 = vadd.f32 0.0, %v4509
        %v4511 = vpop.f32.mrb[0].mxu0
        %v4512 = vadd.f32 0.0, %v4511
        %4513 = vmatprep.mubr.bf16.mxu0 0
        %4514 = vmatmul.mubr.bf16.gmra.mrb[0].mxu0 %v4234
        %v4515 = vpop.f32.mrb[0].mxu0
        %v4516 = vadd.f32 0.0, %v4515
        %v4517 = vpop.f32.mrb[0].mxu0
        %v4518 = vadd.f32 0.0, %v4517
        %v4519 = vpop.f32.mrb[0].mxu0
        %v4520 = vadd.f32 0.0, %v4519
        %v4521 = vpop.f32.mrb[0].mxu0
        %v4522 = vadd.f32 0.0, %v4521
        %4523 = vdwg.mxu0
        %v4524 = vmax.f32 %v4366, 0.0
        %v4525 = vmax.f32 %v4368, 0.0
        %v4526 = vmax.f32 %v4370, 0.0
        %v4527 = vmax.f32 %v4372, 0.0
        %v4528 = vmax.f32 %v4376, 0.0
        %v4529 = vmax.f32 %v4378, 0.0
        %v4530 = vmax.f32 %v4380, 0.0
        %v4531 = vmax.f32 %v4382, 0.0
        %v4532 = vmax.f32 %v4386, 0.0
        %v4533 = vmax.f32 %v4388, 0.0
        %v4534 = vmax.f32 %v4390, 0.0
        %v4535 = vmax.f32 %v4392, 0.0
        %v4536 = vmax.f32 %v4396, 0.0
        %v4537 = vmax.f32 %v4398, 0.0
        %v4538 = vmax.f32 %v4400, 0.0
        %v4539 = vmax.f32 %v4402, 0.0
        %v4540 = vmax.f32 %v4406, 0.0
        %v4541 = vmax.f32 %v4408, 0.0
        %v4542 = vmax.f32 %v4410, 0.0
        %v4543 = vmax.f32 %v4412, 0.0
        %v4544 = vmax.f32 %v4416, 0.0
        %v4545 = vmax.f32 %v4418, 0.0
        %v4546 = vmax.f32 %v4420, 0.0
        %v4547 = vmax.f32 %v4422, 0.0
        %v4548 = vmax.f32 %v4426, 0.0
        %v4549 = vmax.f32 %v4428, 0.0
        %v4550 = vmax.f32 %v4430, 0.0
        %v4551 = vmax.f32 %v4432, 0.0
        %v4552 = vmax.f32 %v4436, 0.0
        %v4553 = vmax.f32 %v4438, 0.0
        %v4554 = vmax.f32 %v4440, 0.0
        %v4555 = vmax.f32 %v4442, 0.0
        %v4556 = vmax.f32 %v4446, 0.0
        %v4557 = vmax.f32 %v4448, 0.0
        %v4558 = vmax.f32 %v4450, 0.0
        %v4559 = vmax.f32 %v4452, 0.0
        %v4560 = vmax.f32 %v4456, 0.0
        %v4561 = vmax.f32 %v4458, 0.0
        %v4562 = vmax.f32 %v4460, 0.0
        %v4563 = vmax.f32 %v4462, 0.0
        %v4564 = vmax.f32 %v4466, 0.0
        %v4565 = vmax.f32 %v4468, 0.0
        %v4566 = vmax.f32 %v4470, 0.0
        %v4567 = vmax.f32 %v4472, 0.0
        %v4568 = vmax.f32 %v4476, 0.0
        %v4569 = vmax.f32 %v4478, 0.0
        %v4570 = vmax.f32 %v4480, 0.0
        %v4571 = vmax.f32 %v4482, 0.0
        %v4572 = vmax.f32 %v4486, 0.0
        %v4573 = vmax.f32 %v4488, 0.0
        %v4574 = vmax.f32 %v4490, 0.0
        %v4575 = vmax.f32 %v4492, 0.0
        %v4576 = vmax.f32 %v4496, 0.0
        %v4577 = vmax.f32 %v4498, 0.0
        %v4578 = vmax.f32 %v4500, 0.0
        %v4579 = vmax.f32 %v4502, 0.0
        %v4580 = vmax.f32 %v4506, 0.0
        %v4581 = vmax.f32 %v4508, 0.0
        %v4582 = vmax.f32 %v4510, 0.0
        %v4583 = vmax.f32 %v4512, 0.0
        %v4584 = vmax.f32 %v4516, 0.0
        %v4585 = vmax.f32 %v4518, 0.0
        %v4586 = vmax.f32 %v4520, 0.0
        %v4587 = vmax.f32 %v4522, 0.0
        %v4588 = vld [vmem:[%s205] sm:$0xff]
        %v4589 = vld [vmem:[%s205 + $0x8] sm:$0xff]
        %v4590 = vld [vmem:[%s205 + $0x10] sm:$0xff]
        %v4591 = vld [vmem:[%s205 + $0x18] sm:$0xff]
        %v4592 = vld [vmem:[%s205 + $0x20] sm:$0xff]
        %v4593 = vld [vmem:[%s205 + $0x28] sm:$0xff]
        %v4594 = vld [vmem:[%s205 + $0x30] sm:$0xff]
        %v4595 = vld [vmem:[%s205 + $0x38] sm:$0xff]
        %v4596 = vld [vmem:[%s205 + $0x40] sm:$0xff]
        %v4597 = vld [vmem:[%s205 + $0x48] sm:$0xff]
        %v4598 = vld [vmem:[%s205 + $0x50] sm:$0xff]
        %v4599 = vld [vmem:[%s205 + $0x58] sm:$0xff]
        %v4600 = vld [vmem:[%s205 + $0x60] sm:$0xff]
        %v4601 = vld [vmem:[%s205 + $0x68] sm:$0xff]
        %v4602 = vld [vmem:[%s205 + $0x70] sm:$0xff]
        %v4603 = vld [vmem:[%s205 + $0x78] sm:$0xff]
        %v4604 = vld [vmem:[%s205 + $0x80] sm:$0xff]
        %v4605 = vld [vmem:[%s205 + $0x88] sm:$0xff]
        %v4606 = vld [vmem:[%s205 + $0x90] sm:$0xff]
        %v4607 = vld [vmem:[%s205 + $0x98] sm:$0xff]
        %v4608 = vld [vmem:[%s205 + $0xa0] sm:$0xff]
        %v4609 = vld [vmem:[%s205 + $0xa8] sm:$0xff]
        %v4610 = vld [vmem:[%s205 + $0xb0] sm:$0xff]
        %v4611 = vld [vmem:[%s205 + $0xb8] sm:$0xff]
        %v4612 = vld [vmem:[%s205 + $0xc0] sm:$0xff]
        %v4613 = vld [vmem:[%s205 + $0xc8] sm:$0xff]
        %v4614 = vld [vmem:[%s205 + $0xd0] sm:$0xff]
        %v4615 = vld [vmem:[%s205 + $0xd8] sm:$0xff]
        %v4616 = vld [vmem:[%s205 + $0xe0] sm:$0xff]
        %v4617 = vld [vmem:[%s205 + $0xe8] sm:$0xff]
        %v4618 = vld [vmem:[%s205 + $0xf0] sm:$0xff]
        %v4619 = vld [vmem:[%s205 + $0xf8] sm:$0xff]
        %v4620 = vld [vmem:[%s205 + $0x100] sm:$0xff]
        %v4621 = vld [vmem:[%s205 + $0x108] sm:$0xff]
        %v4622 = vld [vmem:[%s205 + $0x110] sm:$0xff]
        %v4623 = vld [vmem:[%s205 + $0x118] sm:$0xff]
        %v4624 = vld [vmem:[%s205 + $0x120] sm:$0xff]
        %v4625 = vld [vmem:[%s205 + $0x128] sm:$0xff]
        %v4626 = vld [vmem:[%s205 + $0x130] sm:$0xff]
        %v4627 = vld [vmem:[%s205 + $0x138] sm:$0xff]
        %v4628 = vld [vmem:[%s205 + $0x140] sm:$0xff]
        %v4629 = vld [vmem:[%s205 + $0x148] sm:$0xff]
        %v4630 = vld [vmem:[%s205 + $0x150] sm:$0xff]
        %v4631 = vld [vmem:[%s205 + $0x158] sm:$0xff]
        %v4632 = vld [vmem:[%s205 + $0x160] sm:$0xff]
        %v4633 = vld [vmem:[%s205 + $0x168] sm:$0xff]
        %v4634 = vld [vmem:[%s205 + $0x170] sm:$0xff]
        %v4635 = vld [vmem:[%s205 + $0x178] sm:$0xff]
        %v4636 = vld [vmem:[%s205 + $0x180] sm:$0xff]
        %v4637 = vld [vmem:[%s205 + $0x188] sm:$0xff]
        %v4638 = vld [vmem:[%s205 + $0x190] sm:$0xff]
        %v4639 = vld [vmem:[%s205 + $0x198] sm:$0xff]
        %v4640 = vld [vmem:[%s205 + $0x1a0] sm:$0xff]
        %v4641 = vld [vmem:[%s205 + $0x1a8] sm:$0xff]
        %v4642 = vld [vmem:[%s205 + $0x1b0] sm:$0xff]
        %v4643 = vld [vmem:[%s205 + $0x1b8] sm:$0xff]
        %v4644 = vld [vmem:[%s205 + $0x1c0] sm:$0xff]
        %v4645 = vld [vmem:[%s205 + $0x1c8] sm:$0xff]
        %v4646 = vld [vmem:[%s205 + $0x1d0] sm:$0xff]
        %v4647 = vld [vmem:[%s205 + $0x1d8] sm:$0xff]
        %v4648 = vld [vmem:[%s205 + $0x1e0] sm:$0xff]
        %v4649 = vld [vmem:[%s205 + $0x1e8] sm:$0xff]
        %v4650 = vld [vmem:[%s205 + $0x1f0] sm:$0xff]
        %v4651 = vld [vmem:[%s205 + $0x1f8] sm:$0xff]
        %v4652 = vadd.f32 %v4588, %v4524
        %v4653 = vadd.f32 %v4589, %v4525
        %v4654 = vadd.f32 %v4590, %v4526
        %v4655 = vadd.f32 %v4591, %v4527
        %v4656 = vadd.f32 %v4592, %v4528
        %v4657 = vadd.f32 %v4593, %v4529
        %v4658 = vadd.f32 %v4594, %v4530
        %v4659 = vadd.f32 %v4595, %v4531
        %v4660 = vadd.f32 %v4596, %v4532
        %v4661 = vadd.f32 %v4597, %v4533
        %v4662 = vadd.f32 %v4598, %v4534
        %v4663 = vadd.f32 %v4599, %v4535
        %v4664 = vadd.f32 %v4600, %v4536
        %v4665 = vadd.f32 %v4601, %v4537
        %v4666 = vadd.f32 %v4602, %v4538
        %v4667 = vadd.f32 %v4603, %v4539
        %v4668 = vadd.f32 %v4604, %v4540
        %v4669 = vadd.f32 %v4605, %v4541
        %v4670 = vadd.f32 %v4606, %v4542
        %v4671 = vadd.f32 %v4607, %v4543
        %v4672 = vadd.f32 %v4608, %v4544
        %v4673 = vadd.f32 %v4609, %v4545
        %v4674 = vadd.f32 %v4610, %v4546
        %v4675 = vadd.f32 %v4611, %v4547
        %v4676 = vadd.f32 %v4612, %v4548
        %v4677 = vadd.f32 %v4613, %v4549
        %v4678 = vadd.f32 %v4614, %v4550
        %v4679 = vadd.f32 %v4615, %v4551
        %v4680 = vadd.f32 %v4616, %v4552
        %v4681 = vadd.f32 %v4617, %v4553
        %v4682 = vadd.f32 %v4618, %v4554
        %v4683 = vadd.f32 %v4619, %v4555
        %v4684 = vadd.f32 %v4620, %v4556
        %v4685 = vadd.f32 %v4621, %v4557
        %v4686 = vadd.f32 %v4622, %v4558
        %v4687 = vadd.f32 %v4623, %v4559
        %v4688 = vadd.f32 %v4624, %v4560
        %v4689 = vadd.f32 %v4625, %v4561
        %v4690 = vadd.f32 %v4626, %v4562
        %v4691 = vadd.f32 %v4627, %v4563
        %v4692 = vadd.f32 %v4628, %v4564
        %v4693 = vadd.f32 %v4629, %v4565
        %v4694 = vadd.f32 %v4630, %v4566
        %v4695 = vadd.f32 %v4631, %v4567
        %v4696 = vadd.f32 %v4632, %v4568
        %v4697 = vadd.f32 %v4633, %v4569
        %v4698 = vadd.f32 %v4634, %v4570
        %v4699 = vadd.f32 %v4635, %v4571
        %v4700 = vadd.f32 %v4636, %v4572
        %v4701 = vadd.f32 %v4637, %v4573
        %v4702 = vadd.f32 %v4638, %v4574
        %v4703 = vadd.f32 %v4639, %v4575
        %v4704 = vadd.f32 %v4640, %v4576
        %v4705 = vadd.f32 %v4641, %v4577
        %v4706 = vadd.f32 %v4642, %v4578
        %v4707 = vadd.f32 %v4643, %v4579
        %v4708 = vadd.f32 %v4644, %v4580
        %v4709 = vadd.f32 %v4645, %v4581
        %v4710 = vadd.f32 %v4646, %v4582
        %v4711 = vadd.f32 %v4647, %v4583
        %v4712 = vadd.f32 %v4648, %v4584
        %v4713 = vadd.f32 %v4649, %v4585
        %v4714 = vadd.f32 %v4650, %v4586
        %v4715 = vadd.f32 %v4651, %v4587
        %4716 = vst [vmem:[%s205] sm:$0xff] %v4652
        %4717 = vst [vmem:[%s205 + $0x8] sm:$0xff] %v4653
        %4718 = vst [vmem:[%s205 + $0x10] sm:$0xff] %v4654
        %4719 = vst [vmem:[%s205 + $0x18] sm:$0xff] %v4655
        %4720 = vst [vmem:[%s205 + $0x20] sm:$0xff] %v4656
        %4721 = vst [vmem:[%s205 + $0x28] sm:$0xff] %v4657
        %4722 = vst [vmem:[%s205 + $0x30] sm:$0xff] %v4658
        %4723 = vst [vmem:[%s205 + $0x38] sm:$0xff] %v4659
        %4724 = vst [vmem:[%s205 + $0x40] sm:$0xff] %v4660
        %4725 = vst [vmem:[%s205 + $0x48] sm:$0xff] %v4661
        %4726 = vst [vmem:[%s205 + $0x50] sm:$0xff] %v4662
        %4727 = vst [vmem:[%s205 + $0x58] sm:$0xff] %v4663
        %4728 = vst [vmem:[%s205 + $0x60] sm:$0xff] %v4664
        %4729 = vst [vmem:[%s205 + $0x68] sm:$0xff] %v4665
        %4730 = vst [vmem:[%s205 + $0x70] sm:$0xff] %v4666
        %4731 = vst [vmem:[%s205 + $0x78] sm:$0xff] %v4667
        %4732 = vst [vmem:[%s205 + $0x80] sm:$0xff] %v4668
        %4733 = vst [vmem:[%s205 + $0x88] sm:$0xff] %v4669
        %4734 = vst [vmem:[%s205 + $0x90] sm:$0xff] %v4670
        %4735 = vst [vmem:[%s205 + $0x98] sm:$0xff] %v4671
        %4736 = vst [vmem:[%s205 + $0xa0] sm:$0xff] %v4672
        %4737 = vst [vmem:[%s205 + $0xa8] sm:$0xff] %v4673
        %4738 = vst [vmem:[%s205 + $0xb0] sm:$0xff] %v4674
        %4739 = vst [vmem:[%s205 + $0xb8] sm:$0xff] %v4675
        %4740 = vst [vmem:[%s205 + $0xc0] sm:$0xff] %v4676
        %4741 = vst [vmem:[%s205 + $0xc8] sm:$0xff] %v4677
        %4742 = vst [vmem:[%s205 + $0xd0] sm:$0xff] %v4678
        %4743 = vst [vmem:[%s205 + $0xd8] sm:$0xff] %v4679
        %4744 = vst [vmem:[%s205 + $0xe0] sm:$0xff] %v4680
        %4745 = vst [vmem:[%s205 + $0xe8] sm:$0xff] %v4681
        %4746 = vst [vmem:[%s205 + $0xf0] sm:$0xff] %v4682
        %4747 = vst [vmem:[%s205 + $0xf8] sm:$0xff] %v4683
        %4748 = vst [vmem:[%s205 + $0x100] sm:$0xff] %v4684
        %4749 = vst [vmem:[%s205 + $0x108] sm:$0xff] %v4685
        %4750 = vst [vmem:[%s205 + $0x110] sm:$0xff] %v4686
        %4751 = vst [vmem:[%s205 + $0x118] sm:$0xff] %v4687
        %4752 = vst [vmem:[%s205 + $0x120] sm:$0xff] %v4688
        %4753 = vst [vmem:[%s205 + $0x128] sm:$0xff] %v4689
        %4754 = vst [vmem:[%s205 + $0x130] sm:$0xff] %v4690
        %4755 = vst [vmem:[%s205 + $0x138] sm:$0xff] %v4691
        %4756 = vst [vmem:[%s205 + $0x140] sm:$0xff] %v4692
        %4757 = vst [vmem:[%s205 + $0x148] sm:$0xff] %v4693
        %4758 = vst [vmem:[%s205 + $0x150] sm:$0xff] %v4694
        %4759 = vst [vmem:[%s205 + $0x158] sm:$0xff] %v4695
        %4760 = vst [vmem:[%s205 + $0x160] sm:$0xff] %v4696
        %4761 = vst [vmem:[%s205 + $0x168] sm:$0xff] %v4697
        %4762 = vst [vmem:[%s205 + $0x170] sm:$0xff] %v4698
        %4763 = vst [vmem:[%s205 + $0x178] sm:$0xff] %v4699
        %4764 = vst [vmem:[%s205 + $0x180] sm:$0xff] %v4700
        %4765 = vst [vmem:[%s205 + $0x188] sm:$0xff] %v4701
        %4766 = vst [vmem:[%s205 + $0x190] sm:$0xff] %v4702
        %4767 = vst [vmem:[%s205 + $0x198] sm:$0xff] %v4703
        %4768 = vst [vmem:[%s205 + $0x1a0] sm:$0xff] %v4704
        %4769 = vst [vmem:[%s205 + $0x1a8] sm:$0xff] %v4705
        %4770 = vst [vmem:[%s205 + $0x1b0] sm:$0xff] %v4706
        %4771 = vst [vmem:[%s205 + $0x1b8] sm:$0xff] %v4707
        %4772 = vst [vmem:[%s205 + $0x1c0] sm:$0xff] %v4708
        %4773 = vst [vmem:[%s205 + $0x1c8] sm:$0xff] %v4709
        %4774 = vst [vmem:[%s205 + $0x1d0] sm:$0xff] %v4710
        %4775 = vst [vmem:[%s205 + $0x1d8] sm:$0xff] %v4711
        %4776 = vst [vmem:[%s205 + $0x1e0] sm:$0xff] %v4712
        %4777 = vst [vmem:[%s205 + $0x1e8] sm:$0xff] %v4713
        %4778 = vst [vmem:[%s205 + $0x1f0] sm:$0xff] %v4714
        %4779 = vst [vmem:[%s205 + $0x1f8] sm:$0xff] %v4715
        %s4780 = sand.u32 %s116, 1
        %s4781 = scalar_lea.sflag [#allocation6], %s4780
        %s4782 = sand.u32 %s116, 1
        %s4783 = smul.addr %s4782, 512
        %s4784 = scalar_lea.vmem [#allocation7], %s4783
        // Predicated region
        $region41: #{tpu_custom_call.1} parent=35 // pred_check
          %p4785 = pneg %p126
        $region42: #{tpu_custom_call.1} parent=35 // pred_check_branch
          %4787 = sbr.rel (%p4785) target = $region44
        $region43: #{tpu_custom_call.1} parent=35 // pred_region
          %s4789 = ssub.s32 8192, 8192
          %4790 = vsyncadd %s4781, %s4789
          %s4791 = smul.addr %s19, 64
          %s4792 = smul.addr %s4791, 128
          %s4793 = scalar_lea.hbm %s4, %s4792
          %s4794 = sshll.u32 %s4784, 4
          %s4795 = int_to_ptr.vmem [resolvable:$true] %s4794
          %4800 = dma.vmem_to_hbm [thread:$0]  %s4795, 8192, %s4793, %s4781, 256, 256, 16
        $region44: #{tpu_custom_call.1} parent=35 // pred_fallthru
          _
      $region36: #{tpu_custom_call.1} parent=5 // pred_fallthru
        _
      %p4801 = scmp.le.s32.totalorder 2, %s14
      // Predicated region
      $region45: #{tpu_custom_call.1} parent=5 // pred_check
        %p4802 = pneg %p4801
      $region46: #{tpu_custom_call.1} parent=5 // pred_check_branch
        %4804 = sbr.rel (%p4802) target = $region48
      $region47: #{tpu_custom_call.1} parent=5 // pred_region
        %s4805 = ssub.s32 %s14, 2
        // Predicated region
        $region49: #{tpu_custom_call.1} parent=47 // pred_check
          %p4806 = pneg %p132
        $region50: #{tpu_custom_call.1} parent=47 // pred_check_branch
          %4808 = sbr.rel (%p4806) target = $region52
        $region51: #{tpu_custom_call.1} parent=47 // pred_region
          %s4809 = sand.u32 %s117, 1
          %s4810 = scalar_lea.sflag [#allocation6], %s4809
          %s4811 = sand.u32 %s117, 1
          %s4812 = smul.addr %s4811, 512
          %s4813 = scalar_lea.vmem [#allocation7], %s4812
          %4814 = dma.done %s4810, 8192
        $region52: #{tpu_custom_call.1} parent=47 // pred_fallthru
          _
      $region48: #{tpu_custom_call.1} parent=5 // pred_fallthru
        _
    $region6: #{tpu_custom_call.1} parent=1 // loop_footer
      %s18 = sadd.s32 1, %s14
    $region7: #{tpu_custom_call.1} parent=1 // loop_footer_branch
      %13 = sbr.rel target = $region3
    $region8: #{tpu_custom_call.1} parent=1 // loop_exit
      _
    %4815 = vsyncpa [#allocation5], 1
    %s4816 = scalar_lea.sflag [#allocation5], 1
    %4817 = vsyncpa %s4816, 1
    %4818 = vsyncpa [#allocation6], 1
    %s4819 = scalar_lea.sflag [#allocation6], 1
    %4820 = vsyncpa %s4819, 1

</llo_original>
